<compile_context>
chip_gen: v7x
topology: tpu7x:2x2x1
jax: 0.10.0
libtpu: 0.0.40
codegen_flags: <defaults>
</compile_context>

<pallas_src>
import jax
import jax.numpy as jnp
from jax.experimental import pallas as pl
from jax.experimental.pallas import tpu as pltpu

# Logical dims (PyTorch module) and lane-padded internal dims.
D_IN = 784          # image features (28*28); used directly (full-extent blocks)
D_H, D_H_P = 400, 512    # hidden, padded to 4*128 (internal only, never DMA'd)
D_Z, D_Z_P = 20, 128     # latent, padded to 1*128


def _round_up(n, m):
    return ((n + m - 1) // m) * m


def _cdiv(a, b):
    return (a + b - 1) // b


def _vae_kernel(x_ref, eps_ref,
                w1_ref, b1_ref,
                wh_ref, bh_ref,
                w3_ref, b3_ref,
                w4_ref, b4_ref,
                recon_ref, stats_ref):
    # ---- encode ----
    x = x_ref[...].astype(jnp.bfloat16)                   # (TB, 784)
    h1 = jnp.dot(x, w1_ref[...],
                 preferred_element_type=jnp.float32) + b1_ref[...]
    h1 = jnp.maximum(h1, 0.0)                              # relu, (TB, 512) f32

    # Fused mu/logvar heads: (TB, 512) @ (512, 256) -> (TB, 256)
    heads = jnp.dot(h1.astype(jnp.bfloat16), wh_ref[...],
                    preferred_element_type=jnp.float32) + bh_ref[...]
    mu = heads[:, :D_Z_P]                                  # (TB, 128); lanes 20: are 0
    logvar = heads[:, D_Z_P:]                              # (TB, 128); lanes 20: are 0

    # ---- reparameterize (f32 elementwise; padded lanes feed zero w3 rows) ----
    std = jnp.exp(0.5 * logvar)
    z = mu + eps_ref[...] * std                            # (TB, 128)

    # ---- decode ----
    h3 = jnp.dot(z.astype(jnp.bfloat16), w3_ref[...],
                 preferred_element_type=jnp.float32) + b3_ref[...]
    h3 = jnp.maximum(h3, 0.0)                              # (TB, 512)

    logits = jnp.dot(h3.astype(jnp.bfloat16), w4_ref[...],
                     preferred_element_type=jnp.float32) + b4_ref[...]
    recon_ref[...] = jax.nn.sigmoid(logits).astype(jnp.bfloat16)   # (TB, 784) bf16
    stats_ref[...] = heads                                          # packed mu|logvar


def vae_forward(x_img, eps, params, *, tb=256):
    """x_img: (B,1,28,28) f32; eps: (B,128) f32 (only the first 20 lanes are the
    logical reparam noise); params: output of prepare_params.

    Returns (recon (B,784) bf16, mu (B,20) f32, logvar (B,20) f32)."""
    w1, b1, wh, bh, w3, b3, w4, b4 = params
    B = x_img.shape[0]
    x = x_img.reshape(B, D_IN)                             # view under jit, no copy
    assert eps.shape == (B, D_Z_P)

    # Batch tile: guarantee >= 2 grid steps when possible (v7x: 2 TCs/chip).
    if B > 8:
        tb_eff = min(tb, _round_up(_cdiv(B, 2), 8))
    else:
        tb_eff = _round_up(max(B, 1), 8)
    grid = (_cdiv(B, tb_eff),)

    def batched(ncols):
        return pl.BlockSpec((tb_eff, ncols), lambda i: (i, 0))

    def resident(arr):  # whole array, same block every step -> stays in VMEM
        return pl.BlockSpec(arr.shape, lambda i: (0, 0))

    flops = 2 * B * (D_IN * D_H_P + D_H_P * 2 * D_Z_P
                     + D_Z_P * D_H_P + D_H_P * D_IN)
    transcendentals = B * (D_Z_P + D_IN)                   # exp + sigmoid
    bytes_accessed = (
        B * D_IN * 4 + B * D_Z_P * 4                       # x, eps reads
        + sum(int(a.size) * a.dtype.itemsize for a in params)
        + B * D_IN * 2 + B * 2 * D_Z_P * 4)                # recon, stats writes

    recon, stats = pl.pallas_call(
        _vae_kernel,
        out_shape=(
            jax.ShapeDtypeStruct((B, D_IN), jnp.bfloat16),      # recon
            jax.ShapeDtypeStruct((B, 2 * D_Z_P), jnp.float32),  # packed mu|logvar
        ),
        grid=grid,
        in_specs=[
            batched(D_IN), batched(D_Z_P),
            resident(w1), resident(b1),
            resident(wh), resident(bh),
            resident(w3), resident(b3),
            resident(w4), resident(b4),
        ],
        out_specs=(batched(D_IN), batched(2 * D_Z_P)),
        compiler_params=pltpu.CompilerParams(
            dimension_semantics=("parallel",)),
        cost_estimate=pl.CostEstimate(
            flops=flops, transcendentals=transcendentals,
            bytes_accessed=bytes_accessed),
    )(x, eps, w1, b1, wh, bh, w3, b3, w4, b4)

    mu = stats[:, :D_Z]
    logvar = stats[:, D_Z_P:D_Z_P + D_Z]
    return recon, mu, logvar


# ----------------------------------------------------------------------------
# Parameter construction (PyTorch nn.Linear-style init) and kernel-layout prep.
# ----------------------------------------------------------------------------
def _init_linear(key, fan_in, fan_out):
    """U(-1/sqrt(fan_in), 1/sqrt(fan_in)); weight stored (in, out): y = x @ W + b."""
    kw, kb = jax.random.split(key)
    bound = 1.0 / jnp.sqrt(float(fan_in))
    w = jax.random.uniform(kw, (fan_in, fan_out), jnp.float32, -bound, bound)
    b = jax.random.uniform(kb, (fan_out,), jnp.float32, -bound, bound)
    return w, b


def init_vae_params(key):
    k1, k2, k3, k4, k5 = jax.random.split(key, 5)
    w1, b1 = _init_linear(k1, 784, 400)    # fc1
    w21, b21 = _init_linear(k2, 400, 20)   # fc21 (mu head)
    w22, b22 = _init_linear(k3, 400, 20)   # fc22 (logvar head)
    w3, b3 = _init_linear(k4, 20, 400)     # fc3
    w4, b4 = _init_linear(k5, 400, 784)    # fc4
    return (w1, b1, w21, b21, w22, b22, w3, b3, w4, b4)


def prepare_params(params):
    """Pad hidden/latent dims to lane multiples, fuse the mu/logvar heads, cast
    weights to bf16.  Padding is zero-filled so the forward math is exact;
    biases stay f32.  The 784 feature dim is NOT padded (kernel I/O stays at
    the logical shape)."""
    w1, b1, w21, b21, w22, b22, w3, b3, w4, b4 = params
    bf16 = jnp.bfloat16

    w1p = jnp.zeros((D_IN, D_H_P), jnp.float32).at[:, :D_H].set(w1)     # (784,512)
    b1p = jnp.zeros((1, D_H_P), jnp.float32).at[0, :D_H].set(b1)

    # mu head in lanes [0:20], logvar head in lanes [128:148].
    whp = (jnp.zeros((D_H_P, 2 * D_Z_P), jnp.float32)
           .at[:D_H, :D_Z].set(w21)
           .at[:D_H, D_Z_P:D_Z_P + D_Z].set(w22))
    bhp = (jnp.zeros((1, 2 * D_Z_P), jnp.float32)
           .at[0, :D_Z].set(b21)
           .at[0, D_Z_P:D_Z_P + D_Z].set(b22))

    w3p = jnp.zeros((D_Z_P, D_H_P), jnp.float32).at[:D_Z, :D_H].set(w3)  # (128,512)
    b3p = jnp.zeros((1, D_H_P), jnp.float32).at[0, :D_H].set(b3)

    w4p = jnp.zeros((D_H_P, D_IN), jnp.float32).at[:D_H, :].set(w4)      # (512,784)
    b4p = b4.reshape(1, D_IN).astype(jnp.float32)

    return (w1p.astype(bf16), b1p, whp.astype(bf16), bhp,
            w3p.astype(bf16), b3p, w4p.astype(bf16), b4p)


def _reference_forward(x_img, eps, params):
    """Pure-JAX reference using the same prepared (bf16, padded) params."""
    w1, b1, wh, bh, w3, b3, w4, b4 = params
    B = x_img.shape[0]
    x = x_img.reshape(B, D_IN).astype(jnp.bfloat16)
    h1 = jnp.maximum(jnp.dot(x, w1, preferred_element_type=jnp.float32) + b1, 0.0)
    heads = jnp.dot(h1.astype(jnp.bfloat16), wh,
                    preferred_element_type=jnp.float32) + bh
    mu, logvar = heads[:, :D_Z_P], heads[:, D_Z_P:]
    z = mu + eps * jnp.exp(0.5 * logvar)
    h3 = jnp.maximum(jnp.dot(z.astype(jnp.bfloat16), w3,
                             preferred_element_type=jnp.float32) + b3, 0.0)
    recon = jax.nn.sigmoid(jnp.dot(h3.astype(jnp.bfloat16), w4,
                                   preferred_element_type=jnp.float32) + b4)
    return recon.astype(jnp.bfloat16), mu[:, :D_Z], logvar[:, :D_Z]


if __name__ == "__main__":
    key = jax.random.PRNGKey(0)
    k_params, k_x, k_eps = jax.random.split(key, 3)

    B = 16  # small batch; exercises 2 grid steps (TB=8)
    params = prepare_params(init_vae_params(k_params))
    x_img = jax.random.uniform(k_x, (B, 1, 28, 28), jnp.float32)    # MNIST-like
    # Reparam noise: only the first 20 lanes are the logical eps; the padded
    # lanes feed zero rows of fc3 and never affect the outputs.
    eps = jax.random.normal(k_eps, (B, D_Z_P), jnp.float32)

    recon, mu, logvar = jax.block_until_ready(
        jax.jit(vae_forward)(x_img, eps, params))

    r_ref, mu_ref, lv_ref = _reference_forward(x_img, eps, params)
    assert recon.shape == (B, 784) and mu.shape == (B, 20) and logvar.shape == (B, 20)
    assert jnp.allclose(recon.astype(jnp.float32), r_ref.astype(jnp.float32),
                        atol=1e-2, rtol=1e-2)
    assert jnp.allclose(mu, mu_ref, atol=2e-3, rtol=2e-3)
    assert jnp.allclose(logvar, lv_ref, atol=2e-3, rtol=2e-3)

    print("KERNEL_OK")
</pallas_src>

<mosaic_0001>
module attributes {stable_mosaic.version = 11 : i64} {
  func.func @_vae_kernel(%arg0: i32, %arg1: memref<8x784xf32, #tpu.memory_space<vmem>>, %arg2: memref<8x128xf32, #tpu.memory_space<vmem>>, %arg3: memref<784x512xbf16, #tpu.memory_space<vmem>>, %arg4: memref<1x512xf32, #tpu.memory_space<vmem>>, %arg5: memref<512x256xbf16, #tpu.memory_space<vmem>>, %arg6: memref<1x256xf32, #tpu.memory_space<vmem>>, %arg7: memref<128x512xbf16, #tpu.memory_space<vmem>>, %arg8: memref<1x512xf32, #tpu.memory_space<vmem>>, %arg9: memref<512x784xbf16, #tpu.memory_space<vmem>>, %arg10: memref<1x784xf32, #tpu.memory_space<vmem>>, %arg11: memref<8x784xbf16, #tpu.memory_space<vmem>>, %arg12: memref<8x256xf32, #tpu.memory_space<vmem>>) attributes {dimension_semantics = [#tpu.dimension_semantics<parallel>], iteration_bounds = array<i64: 2>, scalar_prefetch = 0 : i64, scratch_operands = 0 : i64, tpu.core_type = #tpu.core_type<tc>, window_params = [{transform_indices = @transform_0, window_bounds = array<i64: 8, 784>}, {transform_indices = @transform_1, window_bounds = array<i64: 8, 128>}, {pipeline_mode = #tpu.pipeline_mode<synchronous>, transform_indices = @transform_2, window_bounds = array<i64: 784, 512>}, {pipeline_mode = #tpu.pipeline_mode<synchronous>, transform_indices = @transform_3, window_bounds = array<i64: 1, 512>}, {pipeline_mode = #tpu.pipeline_mode<synchronous>, transform_indices = @transform_4, window_bounds = array<i64: 512, 256>}, {pipeline_mode = #tpu.pipeline_mode<synchronous>, transform_indices = @transform_5, window_bounds = array<i64: 1, 256>}, {pipeline_mode = #tpu.pipeline_mode<synchronous>, transform_indices = @transform_6, window_bounds = array<i64: 128, 512>}, {pipeline_mode = #tpu.pipeline_mode<synchronous>, transform_indices = @transform_7, window_bounds = array<i64: 1, 512>}, {pipeline_mode = #tpu.pipeline_mode<synchronous>, transform_indices = @transform_8, window_bounds = array<i64: 512, 784>}, {pipeline_mode = #tpu.pipeline_mode<synchronous>, transform_indices = @transform_9, window_bounds = array<i64: 1, 784>}, {transform_indices = @transform_10, window_bounds = array<i64: 8, 784>}, {transform_indices = @transform_11, window_bounds = array<i64: 8, 256>}]} {
    %c0 = arith.constant 0 : index
    %c0_0 = arith.constant 0 : index
    %0 = vector.load %arg1[%c0, %c0_0] : memref<8x784xf32, #tpu.memory_space<vmem>>, vector<8x784xf32>
    %1 = arith.truncf %0 : vector<8x784xf32> to vector<8x784xbf16>
    %c0_1 = arith.constant 0 : index
    %c0_2 = arith.constant 0 : index
    %2 = vector.load %arg3[%c0_1, %c0_2] : memref<784x512xbf16, #tpu.memory_space<vmem>>, vector<784x512xbf16>
    %cst = arith.constant dense<0.000000e+00> : vector<8x512xf32>
    %3 = tpu.matmul %1, %2, %cst {dimension_numbers = #tpu.dot_dimension_numbers<[1], [0], [0], [1], [0, 0, 1, 1], [], []>} : vector<8x784xbf16>, vector<784x512xbf16>, vector<8x512xf32> -> vector<8x512xf32>
    %c0_3 = arith.constant 0 : index
    %c0_4 = arith.constant 0 : index
    %4 = vector.load %arg4[%c0_3, %c0_4] : memref<1x512xf32, #tpu.memory_space<vmem>>, vector<1x512xf32>
    %5 = vector.broadcast %4 : vector<1x512xf32> to vector<8x512xf32>
    %6 = arith.addf %3, %5 : vector<8x512xf32>
    %cst_5 = arith.constant 0.000000e+00 : f32
    %7 = vector.broadcast %cst_5 : f32 to vector<8x512xf32>
    %8 = arith.maximumf %6, %7 : vector<8x512xf32>
    %9 = arith.truncf %8 : vector<8x512xf32> to vector<8x512xbf16>
    %c0_6 = arith.constant 0 : index
    %c0_7 = arith.constant 0 : index
    %10 = vector.load %arg5[%c0_6, %c0_7] : memref<512x256xbf16, #tpu.memory_space<vmem>>, vector<512x256xbf16>
    %cst_8 = arith.constant dense<0.000000e+00> : vector<8x256xf32>
    %11 = tpu.matmul %9, %10, %cst_8 {dimension_numbers = #tpu.dot_dimension_numbers<[1], [0], [0], [1], [0, 0, 1, 1], [], []>} : vector<8x512xbf16>, vector<512x256xbf16>, vector<8x256xf32> -> vector<8x256xf32>
    %c0_9 = arith.constant 0 : index
    %c0_10 = arith.constant 0 : index
    %12 = vector.load %arg6[%c0_9, %c0_10] : memref<1x256xf32, #tpu.memory_space<vmem>>, vector<1x256xf32>
    %13 = vector.broadcast %12 : vector<1x256xf32> to vector<8x256xf32>
    %14 = arith.addf %11, %13 : vector<8x256xf32>
    %15 = vector.extract_strided_slice %14 {offsets = [0, 0], sizes = [8, 128], strides = [1, 1]} : vector<8x256xf32> to vector<8x128xf32>
    %16 = vector.extract_strided_slice %14 {offsets = [0, 128], sizes = [8, 128], strides = [1, 1]} : vector<8x256xf32> to vector<8x128xf32>
    %cst_11 = arith.constant 5.000000e-01 : f32
    %17 = vector.broadcast %cst_11 : f32 to vector<8x128xf32>
    %18 = arith.mulf %17, %16 : vector<8x128xf32>
    %19 = math.exp %18 : vector<8x128xf32>
    %c0_12 = arith.constant 0 : index
    %c0_13 = arith.constant 0 : index
    %20 = vector.load %arg2[%c0_12, %c0_13] : memref<8x128xf32, #tpu.memory_space<vmem>>, vector<8x128xf32>
    %21 = arith.mulf %20, %19 : vector<8x128xf32>
    %22 = arith.addf %15, %21 : vector<8x128xf32>
    %23 = arith.truncf %22 : vector<8x128xf32> to vector<8x128xbf16>
    %c0_14 = arith.constant 0 : index
    %c0_15 = arith.constant 0 : index
    %24 = vector.load %arg7[%c0_14, %c0_15] : memref<128x512xbf16, #tpu.memory_space<vmem>>, vector<128x512xbf16>
    %cst_16 = arith.constant dense<0.000000e+00> : vector<8x512xf32>
    %25 = tpu.matmul %23, %24, %cst_16 {dimension_numbers = #tpu.dot_dimension_numbers<[1], [0], [0], [1], [0, 0, 1, 1], [], []>} : vector<8x128xbf16>, vector<128x512xbf16>, vector<8x512xf32> -> vector<8x512xf32>
    %c0_17 = arith.constant 0 : index
    %c0_18 = arith.constant 0 : index
    %26 = vector.load %arg8[%c0_17, %c0_18] : memref<1x512xf32, #tpu.memory_space<vmem>>, vector<1x512xf32>
    %27 = vector.broadcast %26 : vector<1x512xf32> to vector<8x512xf32>
    %28 = arith.addf %25, %27 : vector<8x512xf32>
    %cst_19 = arith.constant 0.000000e+00 : f32
    %29 = vector.broadcast %cst_19 : f32 to vector<8x512xf32>
    %30 = arith.maximumf %28, %29 : vector<8x512xf32>
    %31 = arith.truncf %30 : vector<8x512xf32> to vector<8x512xbf16>
    %c0_20 = arith.constant 0 : index
    %c0_21 = arith.constant 0 : index
    %32 = vector.load %arg9[%c0_20, %c0_21] : memref<512x784xbf16, #tpu.memory_space<vmem>>, vector<512x784xbf16>
    %cst_22 = arith.constant dense<0.000000e+00> : vector<8x784xf32>
    %33 = tpu.matmul %31, %32, %cst_22 {dimension_numbers = #tpu.dot_dimension_numbers<[1], [0], [0], [1], [0, 0, 1, 1], [], []>} : vector<8x512xbf16>, vector<512x784xbf16>, vector<8x784xf32> -> vector<8x784xf32>
    %c0_23 = arith.constant 0 : index
    %c0_24 = arith.constant 0 : index
    %34 = vector.load %arg10[%c0_23, %c0_24] : memref<1x784xf32, #tpu.memory_space<vmem>>, vector<1x784xf32>
    %35 = vector.broadcast %34 : vector<1x784xf32> to vector<8x784xf32>
    %36 = arith.addf %33, %35 : vector<8x784xf32>
    %37 = arith.negf %36 : vector<8x784xf32>
    %38 = math.exp %37 : vector<8x784xf32>
    %cst_25 = arith.constant 1.000000e+00 : f32
    %39 = vector.broadcast %cst_25 : f32 to vector<8x784xf32>
    %40 = arith.addf %39, %38 : vector<8x784xf32>
    %41 = arith.divf %39, %40 : vector<8x784xf32>
    %42 = arith.truncf %41 : vector<8x784xf32> to vector<8x784xbf16>
    %c0_26 = arith.constant 0 : index
    %c0_27 = arith.constant 0 : index
    %43 = vector.load %arg11[%c0_26, %c0_27] : memref<8x784xbf16, #tpu.memory_space<vmem>>, vector<8x784xbf16>
    tpu.vector_store %arg11[%c0_26, %c0_27], %42 {strides = array<i32>} : memref<8x784xbf16, #tpu.memory_space<vmem>>, vector<8x784xbf16>,
    %c0_28 = arith.constant 0 : index
    %c0_29 = arith.constant 0 : index
    %44 = vector.load %arg12[%c0_28, %c0_29] : memref<8x256xf32, #tpu.memory_space<vmem>>, vector<8x256xf32>
    tpu.vector_store %arg12[%c0_28, %c0_29], %14 {strides = array<i32>} : memref<8x256xf32, #tpu.memory_space<vmem>>, vector<8x256xf32>,
    return
  }
  func.func @transform_0(%arg0: i32) -> (i32, i32) {
    %c0_i32 = arith.constant 0 : i32
    %c0_i32_0 = arith.constant 0 : i32
    return %arg0, %c0_i32 : i32, i32
  }
  func.func @transform_1(%arg0: i32) -> (i32, i32) {
    %c0_i32 = arith.constant 0 : i32
    %c0_i32_0 = arith.constant 0 : i32
    return %arg0, %c0_i32 : i32, i32
  }
  func.func @transform_2(%arg0: i32) -> (i32, i32) {
    %c0_i32 = arith.constant 0 : i32
    %c0_i32_0 = arith.constant 0 : i32
    %c0_i32_1 = arith.constant 0 : i32
    return %c0_i32, %c0_i32_0 : i32, i32
  }
  func.func @transform_3(%arg0: i32) -> (i32, i32) {
    %c0_i32 = arith.constant 0 : i32
    %c0_i32_0 = arith.constant 0 : i32
    %c0_i32_1 = arith.constant 0 : i32
    return %c0_i32, %c0_i32_0 : i32, i32
  }
  func.func @transform_4(%arg0: i32) -> (i32, i32) {
    %c0_i32 = arith.constant 0 : i32
    %c0_i32_0 = arith.constant 0 : i32
    %c0_i32_1 = arith.constant 0 : i32
    return %c0_i32, %c0_i32_0 : i32, i32
  }
  func.func @transform_5(%arg0: i32) -> (i32, i32) {
    %c0_i32 = arith.constant 0 : i32
    %c0_i32_0 = arith.constant 0 : i32
    %c0_i32_1 = arith.constant 0 : i32
    return %c0_i32, %c0_i32_0 : i32, i32
  }
  func.func @transform_6(%arg0: i32) -> (i32, i32) {
    %c0_i32 = arith.constant 0 : i32
    %c0_i32_0 = arith.constant 0 : i32
    %c0_i32_1 = arith.constant 0 : i32
    return %c0_i32, %c0_i32_0 : i32, i32
  }
  func.func @transform_7(%arg0: i32) -> (i32, i32) {
    %c0_i32 = arith.constant 0 : i32
    %c0_i32_0 = arith.constant 0 : i32
    %c0_i32_1 = arith.constant 0 : i32
    return %c0_i32, %c0_i32_0 : i32, i32
  }
  func.func @transform_8(%arg0: i32) -> (i32, i32) {
    %c0_i32 = arith.constant 0 : i32
    %c0_i32_0 = arith.constant 0 : i32
    %c0_i32_1 = arith.constant 0 : i32
    return %c0_i32, %c0_i32_0 : i32, i32
  }
  func.func @transform_9(%arg0: i32) -> (i32, i32) {
    %c0_i32 = arith.constant 0 : i32
    %c0_i32_0 = arith.constant 0 : i32
    %c0_i32_1 = arith.constant 0 : i32
    return %c0_i32, %c0_i32_0 : i32, i32
  }
  func.func @transform_10(%arg0: i32) -> (i32, i32) {
    %c0_i32 = arith.constant 0 : i32
    %c0_i32_0 = arith.constant 0 : i32
    return %arg0, %c0_i32 : i32, i32
  }
  func.func @transform_11(%arg0: i32) -> (i32, i32) {
    %c0_i32 = arith.constant 0 : i32
    %c0_i32_0 = arith.constant 0 : i32
    return %arg0, %c0_i32 : i32, i32
  }
}

</mosaic_0001>

<llo_original>
// kernel: vae_forward.1
$region0: #{vae_forward.1}
  #allocation0 [shape = 'u32[]', space=smem, size = 0x4, offset = 0x4, fixed_abs, tag = 'smem constant byte address 0x4 - core index']
  #allocation1 [shape = 'u32[144,128]{1,0:T(1,128)}', space=vmem, size = 0x12000, scoped, tag = 'internal scratch']
  %s0 = inlined_call_operand.vmem [shape: f32[16,784], index: 0, kind: input, shape index: {}]
  %s1 = inlined_call_operand.vmem [shape: f32[16,128], index: 1, kind: input, shape index: {}]
  %s2 = inlined_call_operand.vmem [shape: bf16[784,512], index: 2, kind: input, shape index: {}]
  %s3 = inlined_call_operand.vmem [shape: f32[1,512], index: 3, kind: input, shape index: {}]
  %s4 = inlined_call_operand.vmem [shape: bf16[512,256], index: 4, kind: input, shape index: {}]
  %s5 = inlined_call_operand.vmem [shape: f32[1,256], index: 5, kind: input, shape index: {}]
  %s6 = inlined_call_operand.vmem [shape: bf16[128,512], index: 6, kind: input, shape index: {}]
  %s7 = inlined_call_operand.vmem [shape: f32[1,512], index: 7, kind: input, shape index: {}]
  %s8 = inlined_call_operand.vmem [shape: bf16[512,784], index: 8, kind: input, shape index: {}]
  %s9 = inlined_call_operand.vmem [shape: f32[1,784], index: 9, kind: input, shape index: {}]
  %s10 = inlined_call_operand.hbm [shape: bf16[16,784], index: 10, kind: output, shape index: {0}]
  %s11 = inlined_call_operand.vmem [shape: f32[16,256], index: 11, kind: output, shape index: {1}]
  %12 = xla_tuple %s10, %s11
  %s13 = sld [smem:[#allocation0]]
  $region81: #{vae_forward.1} parent=0
    _
  %s15 = ssub.s32 1, %s13
  %s16 = scalar_select 0, %s15, %s13
  $region1: #{vae_forward.1} parent=0
    #allocation2 [shape = 'u8[28672]{0}', space=vmem, size = 0x7000, scoped, tag = 'output window, operand 0']
    #allocation3 [shape = 's32[2]{0}', space=sflag, size = 0x8, scoped, tag = 'scoped memory for vae_forward.1']
    %17 = vsyncpa [#allocation3], 0
    %s18 = scalar_lea.sflag [#allocation3], 1
    %19 = vsyncpa %s18, 0
    loop: start=0, step=1, limit=4
    $region2: #{vae_forward.1} parent=1 // loop_pre_header
      _
    $region3: #{vae_forward.1} parent=1 // loop_header
      %s21 = sphi 0, %s25
      %p22 = scmp.ge.s32.totalorder %s21, 4
      %s31 = sphi 0, %s33
      %s34 = sphi 0, %s31
      %s35 = sphi 0, %s34
      %s51 = sphi 0, %s35
      %s57 = sphi 0, %s59
      %s60 = sphi 0, %s57
      %s61 = sphi 0, %s60
      %s77 = sphi 0, %s61
      %s81 = sphi 0, %s81
      %s83 = sphi 0, %s81
      %s84 = sphi 0, %s83
      %s98 = sphi 0, %s84
      %s102 = sphi 0, %s102
      %s104 = sphi 0, %s102
      %s105 = sphi 0, %s104
      %s119 = sphi 0, %s105
      %s123 = sphi 0, %s123
      %s125 = sphi 0, %s123
      %s126 = sphi 0, %s125
      %s140 = sphi 0, %s126
      %s144 = sphi 0, %s144
      %s146 = sphi 0, %s144
      %s147 = sphi 0, %s146
      %s161 = sphi 0, %s147
      %s165 = sphi 0, %s165
      %s167 = sphi 0, %s165
      %s168 = sphi 0, %s167
      %s182 = sphi 0, %s168
      %s186 = sphi 0, %s186
      %s188 = sphi 0, %s186
      %s189 = sphi 0, %s188
      %s203 = sphi 0, %s189
      %s207 = sphi 0, %s207
      %s209 = sphi 0, %s207
      %s210 = sphi 0, %s209
      %s224 = sphi 0, %s210
      %s228 = sphi 0, %s228
      %s230 = sphi 0, %s228
      %s231 = sphi 0, %s230
      %s245 = sphi 0, %s231
      %s251 = sphi 0, %s253
      %s254 = sphi 0, %s251
      %s255 = sphi 0, %s254
      %s271 = sphi 0, %s255
      %s277 = sphi 0, %s279
      %s280 = sphi 0, %s277
      %s281 = sphi 0, %s280
      %s297 = sphi 0, %s281
    $region4: #{vae_forward.1} parent=1 // loop_header_branch
      %24 = sbr.rel (%p22) target = $region8
    $region5: #{vae_forward.1} parent=1 // loop_body
      %s26 = ssub.s32 %s21, 1
      %s27 = ssub.s32 %s21, 2
      %s28 = sadd.s32 %s21, 1
      %s29 = ssub.s32 %s21, %s28
      %p30 = scmp.eq.s32.totalorder %s29, 0
      %s32 = sadd.s32 %s31, 1
      %s33 = scalar_select %p30, %s31, %s32
      %p36 = pneg %p30
      %p37 = scmp.eq.s32.totalorder %s21, 1
      %p38 = por %p36, %p37
      %p39 = scmp.ne.s32.totalorder %s31, %s34
      %p40 = scmp.eq.s32.totalorder %s21, 0
      %p41 = por %p39, %p40
      %p42 = scmp.ne.s32.totalorder %s31, %s34
      %p43 = scmp.eq.s32.totalorder %s26, 1
      %p44 = por %p42, %p43
      %p45 = scmp.ne.s32.totalorder %s34, %s35
      %p46 = scmp.eq.s32.totalorder %s26, 0
      %p47 = por %p45, %p46
      %p48 = scmp.ne.s32.totalorder %s34, %s35
      %p49 = scmp.eq.s32.totalorder %s27, 1
      %p50 = por %p48, %p49
      %p52 = scmp.ne.s32.totalorder %s35, %s51
      %p53 = scmp.eq.s32.totalorder %s27, 0
      %p54 = por %p52, %p53
      %s55 = ssub.s32 %s21, %s28
      %p56 = scmp.eq.s32.totalorder %s55, 0
      %s58 = sadd.s32 %s57, 1
      %s59 = scalar_select %p56, %s57, %s58
      %p62 = pneg %p56
      %p63 = scmp.eq.s32.totalorder %s21, 1
      %p64 = por %p62, %p63
      %p65 = scmp.ne.s32.totalorder %s57, %s60
      %p66 = scmp.eq.s32.totalorder %s21, 0
      %p67 = por %p65, %p66
      %p68 = scmp.ne.s32.totalorder %s57, %s60
      %p69 = scmp.eq.s32.totalorder %s26, 1
      %p70 = por %p68, %p69
      %p71 = scmp.ne.s32.totalorder %s60, %s61
      %p72 = scmp.eq.s32.totalorder %s26, 0
      %p73 = por %p71, %p72
      %p74 = scmp.ne.s32.totalorder %s60, %s61
      %p75 = scmp.eq.s32.totalorder %s27, 1
      %p76 = por %p74, %p75
      %p78 = scmp.ne.s32.totalorder %s61, %s77
      %p79 = scmp.eq.s32.totalorder %s27, 0
      %p80 = por %p78, %p79
      %s82 = sadd.s32 %s81, 1
      %p85 = scmp.eq.s32.totalorder %s21, 1
      %p86 = scmp.ne.s32.totalorder %s81, %s83
      %p87 = scmp.eq.s32.totalorder %s21, 0
      %p88 = por %p86, %p87
      %p89 = scmp.ne.s32.totalorder %s81, %s83
      %p90 = scmp.eq.s32.totalorder %s26, 1
      %p91 = por %p89, %p90
      %p92 = scmp.ne.s32.totalorder %s83, %s84
      %p93 = scmp.eq.s32.totalorder %s26, 0
      %p94 = por %p92, %p93
      %p95 = scmp.ne.s32.totalorder %s83, %s84
      %p96 = scmp.eq.s32.totalorder %s27, 1
      %p97 = por %p95, %p96
      %p99 = scmp.ne.s32.totalorder %s84, %s98
      %p100 = scmp.eq.s32.totalorder %s27, 0
      %p101 = por %p99, %p100
      %s103 = sadd.s32 %s102, 1
      %p106 = scmp.eq.s32.totalorder %s21, 1
      %p107 = scmp.ne.s32.totalorder %s102, %s104
      %p108 = scmp.eq.s32.totalorder %s21, 0
      %p109 = por %p107, %p108
      %p110 = scmp.ne.s32.totalorder %s102, %s104
      %p111 = scmp.eq.s32.totalorder %s26, 1
      %p112 = por %p110, %p111
      %p113 = scmp.ne.s32.totalorder %s104, %s105
      %p114 = scmp.eq.s32.totalorder %s26, 0
      %p115 = por %p113, %p114
      %p116 = scmp.ne.s32.totalorder %s104, %s105
      %p117 = scmp.eq.s32.totalorder %s27, 1
      %p118 = por %p116, %p117
      %p120 = scmp.ne.s32.totalorder %s105, %s119
      %p121 = scmp.eq.s32.totalorder %s27, 0
      %p122 = por %p120, %p121
      %s124 = sadd.s32 %s123, 1
      %p127 = scmp.eq.s32.totalorder %s21, 1
      %p128 = scmp.ne.s32.totalorder %s123, %s125
      %p129 = scmp.eq.s32.totalorder %s21, 0
      %p130 = por %p128, %p129
      %p131 = scmp.ne.s32.totalorder %s123, %s125
      %p132 = scmp.eq.s32.totalorder %s26, 1
      %p133 = por %p131, %p132
      %p134 = scmp.ne.s32.totalorder %s125, %s126
      %p135 = scmp.eq.s32.totalorder %s26, 0
      %p136 = por %p134, %p135
      %p137 = scmp.ne.s32.totalorder %s125, %s126
      %p138 = scmp.eq.s32.totalorder %s27, 1
      %p139 = por %p137, %p138
      %p141 = scmp.ne.s32.totalorder %s126, %s140
      %p142 = scmp.eq.s32.totalorder %s27, 0
      %p143 = por %p141, %p142
      %s145 = sadd.s32 %s144, 1
      %p148 = scmp.eq.s32.totalorder %s21, 1
      %p149 = scmp.ne.s32.totalorder %s144, %s146
      %p150 = scmp.eq.s32.totalorder %s21, 0
      %p151 = por %p149, %p150
      %p152 = scmp.ne.s32.totalorder %s144, %s146
      %p153 = scmp.eq.s32.totalorder %s26, 1
      %p154 = por %p152, %p153
      %p155 = scmp.ne.s32.totalorder %s146, %s147
      %p156 = scmp.eq.s32.totalorder %s26, 0
      %p157 = por %p155, %p156
      %p158 = scmp.ne.s32.totalorder %s146, %s147
      %p159 = scmp.eq.s32.totalorder %s27, 1
      %p160 = por %p158, %p159
      %p162 = scmp.ne.s32.totalorder %s147, %s161
      %p163 = scmp.eq.s32.totalorder %s27, 0
      %p164 = por %p162, %p163
      %s166 = sadd.s32 %s165, 1
      %p169 = scmp.eq.s32.totalorder %s21, 1
      %p170 = scmp.ne.s32.totalorder %s165, %s167
      %p171 = scmp.eq.s32.totalorder %s21, 0
      %p172 = por %p170, %p171
      %p173 = scmp.ne.s32.totalorder %s165, %s167
      %p174 = scmp.eq.s32.totalorder %s26, 1
      %p175 = por %p173, %p174
      %p176 = scmp.ne.s32.totalorder %s167, %s168
      %p177 = scmp.eq.s32.totalorder %s26, 0
      %p178 = por %p176, %p177
      %p179 = scmp.ne.s32.totalorder %s167, %s168
      %p180 = scmp.eq.s32.totalorder %s27, 1
      %p181 = por %p179, %p180
      %p183 = scmp.ne.s32.totalorder %s168, %s182
      %p184 = scmp.eq.s32.totalorder %s27, 0
      %p185 = por %p183, %p184
      %s187 = sadd.s32 %s186, 1
      %p190 = scmp.eq.s32.totalorder %s21, 1
      %p191 = scmp.ne.s32.totalorder %s186, %s188
      %p192 = scmp.eq.s32.totalorder %s21, 0
      %p193 = por %p191, %p192
      %p194 = scmp.ne.s32.totalorder %s186, %s188
      %p195 = scmp.eq.s32.totalorder %s26, 1
      %p196 = por %p194, %p195
      %p197 = scmp.ne.s32.totalorder %s188, %s189
      %p198 = scmp.eq.s32.totalorder %s26, 0
      %p199 = por %p197, %p198
      %p200 = scmp.ne.s32.totalorder %s188, %s189
      %p201 = scmp.eq.s32.totalorder %s27, 1
      %p202 = por %p200, %p201
      %p204 = scmp.ne.s32.totalorder %s189, %s203
      %p205 = scmp.eq.s32.totalorder %s27, 0
      %p206 = por %p204, %p205
      %s208 = sadd.s32 %s207, 1
      %p211 = scmp.eq.s32.totalorder %s21, 1
      %p212 = scmp.ne.s32.totalorder %s207, %s209
      %p213 = scmp.eq.s32.totalorder %s21, 0
      %p214 = por %p212, %p213
      %p215 = scmp.ne.s32.totalorder %s207, %s209
      %p216 = scmp.eq.s32.totalorder %s26, 1
      %p217 = por %p215, %p216
      %p218 = scmp.ne.s32.totalorder %s209, %s210
      %p219 = scmp.eq.s32.totalorder %s26, 0
      %p220 = por %p218, %p219
      %p221 = scmp.ne.s32.totalorder %s209, %s210
      %p222 = scmp.eq.s32.totalorder %s27, 1
      %p223 = por %p221, %p222
      %p225 = scmp.ne.s32.totalorder %s210, %s224
      %p226 = scmp.eq.s32.totalorder %s27, 0
      %p227 = por %p225, %p226
      %s229 = sadd.s32 %s228, 1
      %p232 = scmp.eq.s32.totalorder %s21, 1
      %p233 = scmp.ne.s32.totalorder %s228, %s230
      %p234 = scmp.eq.s32.totalorder %s21, 0
      %p235 = por %p233, %p234
      %p236 = scmp.ne.s32.totalorder %s228, %s230
      %p237 = scmp.eq.s32.totalorder %s26, 1
      %p238 = por %p236, %p237
      %p239 = scmp.ne.s32.totalorder %s230, %s231
      %p240 = scmp.eq.s32.totalorder %s26, 0
      %p241 = por %p239, %p240
      %p242 = scmp.ne.s32.totalorder %s230, %s231
      %p243 = scmp.eq.s32.totalorder %s27, 1
      %p244 = por %p242, %p243
      %p246 = scmp.ne.s32.totalorder %s231, %s245
      %p247 = scmp.eq.s32.totalorder %s27, 0
      %p248 = por %p246, %p247
      %s249 = ssub.s32 %s21, %s28
      %p250 = scmp.eq.s32.totalorder %s249, 0
      %s252 = sadd.s32 %s251, 1
      %s253 = scalar_select %p250, %s251, %s252
      %p256 = pneg %p250
      %p257 = scmp.eq.s32.totalorder %s21, 1
      %p258 = por %p256, %p257
      %p259 = scmp.ne.s32.totalorder %s251, %s254
      %p260 = scmp.eq.s32.totalorder %s21, 0
      %p261 = por %p259, %p260
      %p262 = scmp.ne.s32.totalorder %s251, %s254
      %p263 = scmp.eq.s32.totalorder %s26, 1
      %p264 = por %p262, %p263
      %p265 = scmp.ne.s32.totalorder %s254, %s255
      %p266 = scmp.eq.s32.totalorder %s26, 0
      %p267 = por %p265, %p266
      %p268 = scmp.ne.s32.totalorder %s254, %s255
      %p269 = scmp.eq.s32.totalorder %s27, 1
      %p270 = por %p268, %p269
      %p272 = scmp.ne.s32.totalorder %s255, %s271
      %p273 = scmp.eq.s32.totalorder %s27, 0
      %p274 = por %p272, %p273
      %s275 = ssub.s32 %s21, %s28
      %p276 = scmp.eq.s32.totalorder %s275, 0
      %s278 = sadd.s32 %s277, 1
      %s279 = scalar_select %p276, %s277, %s278
      %p282 = pneg %p276
      %p283 = scmp.eq.s32.totalorder %s21, 1
      %p284 = por %p282, %p283
      %p285 = scmp.ne.s32.totalorder %s277, %s280
      %p286 = scmp.eq.s32.totalorder %s21, 0
      %p287 = por %p285, %p286
      %p288 = scmp.ne.s32.totalorder %s277, %s280
      %p289 = scmp.eq.s32.totalorder %s26, 1
      %p290 = por %p288, %p289
      %p291 = scmp.ne.s32.totalorder %s280, %s281
      %p292 = scmp.eq.s32.totalorder %s26, 0
      %p293 = por %p291, %p292
      %p294 = scmp.ne.s32.totalorder %s280, %s281
      %p295 = scmp.eq.s32.totalorder %s27, 1
      %p296 = por %p294, %p295
      %p298 = scmp.ne.s32.totalorder %s281, %s297
      %p299 = scmp.eq.s32.totalorder %s27, 0
      %p300 = por %p298, %p299
      %p301 = scmp.le.s32.totalorder 1, %s21
      %p302 = scmp.lt.s32.totalorder %s21, 3
      %p303 = pnand %p301, %p302
      %p304 = pneg %p303
      // Predicated region
      $region9: #{vae_forward.1} parent=5 // pred_check
        _
      $region10: #{vae_forward.1} parent=5 // pred_check_branch
        %306 = sbr.rel (%p303) target = $region12
      $region11: #{vae_forward.1} parent=5 // pred_region
        %s307 = ssub.s32 %s21, 1
        // Predicated region
        $region13: #{vae_forward.1} parent=11 // pred_check
          %p308 = pneg %p94
        $region14: #{vae_forward.1} parent=11 // pred_check_branch
          %310 = sbr.rel (%p308) target = $region16
        $region15: #{vae_forward.1} parent=11 // pred_region
          _
        $region16: #{vae_forward.1} parent=11 // pred_fallthru
          _
        // Predicated region
        $region17: #{vae_forward.1} parent=11 // pred_check
          %p311 = pneg %p115
        $region18: #{vae_forward.1} parent=11 // pred_check_branch
          %313 = sbr.rel (%p311) target = $region20
        $region19: #{vae_forward.1} parent=11 // pred_region
          _
        $region20: #{vae_forward.1} parent=11 // pred_fallthru
          _
        // Predicated region
        $region21: #{vae_forward.1} parent=11 // pred_check
          %p314 = pneg %p136
        $region22: #{vae_forward.1} parent=11 // pred_check_branch
          %316 = sbr.rel (%p314) target = $region24
        $region23: #{vae_forward.1} parent=11 // pred_region
          _
        $region24: #{vae_forward.1} parent=11 // pred_fallthru
          _
        // Predicated region
        $region25: #{vae_forward.1} parent=11 // pred_check
          %p317 = pneg %p157
        $region26: #{vae_forward.1} parent=11 // pred_check_branch
          %319 = sbr.rel (%p317) target = $region28
        $region27: #{vae_forward.1} parent=11 // pred_region
          _
        $region28: #{vae_forward.1} parent=11 // pred_fallthru
          _
        // Predicated region
        $region29: #{vae_forward.1} parent=11 // pred_check
          %p320 = pneg %p178
        $region30: #{vae_forward.1} parent=11 // pred_check_branch
          %322 = sbr.rel (%p320) target = $region32
        $region31: #{vae_forward.1} parent=11 // pred_region
          _
        $region32: #{vae_forward.1} parent=11 // pred_fallthru
          _
        // Predicated region
        $region33: #{vae_forward.1} parent=11 // pred_check
          %p323 = pneg %p199
        $region34: #{vae_forward.1} parent=11 // pred_check_branch
          %325 = sbr.rel (%p323) target = $region36
        $region35: #{vae_forward.1} parent=11 // pred_region
          _
        $region36: #{vae_forward.1} parent=11 // pred_fallthru
          _
        // Predicated region
        $region37: #{vae_forward.1} parent=11 // pred_check
          %p326 = pneg %p220
        $region38: #{vae_forward.1} parent=11 // pred_check_branch
          %328 = sbr.rel (%p326) target = $region40
        $region39: #{vae_forward.1} parent=11 // pred_region
          _
        $region40: #{vae_forward.1} parent=11 // pred_fallthru
          _
        // Predicated region
        $region41: #{vae_forward.1} parent=11 // pred_check
          %p329 = pneg %p241
        $region42: #{vae_forward.1} parent=11 // pred_check_branch
          %331 = sbr.rel (%p329) target = $region44
        $region43: #{vae_forward.1} parent=11 // pred_region
          _
        $region44: #{vae_forward.1} parent=11 // pred_fallthru
          _
      $region12: #{vae_forward.1} parent=5 // pred_fallthru
        _
      %p332 = scmp.lt.s32.totalorder %s21, 2
      // Predicated region
      $region45: #{vae_forward.1} parent=5 // pred_check
        %p333 = pneg %p332
      $region46: #{vae_forward.1} parent=5 // pred_check_branch
        %335 = sbr.rel (%p333) target = $region48
      $region47: #{vae_forward.1} parent=5 // pred_region
        // Predicated region
        $region49: #{vae_forward.1} parent=47 // pred_check
          %p336 = pneg %p41
        $region50: #{vae_forward.1} parent=47 // pred_check_branch
          %338 = sbr.rel (%p336) target = $region52
        $region51: #{vae_forward.1} parent=47 // pred_region
          %p339 = scmp.lt.s32.totalorder %s21, 1
          %s340 = scalar_select %p339, %s21, 1
          %s341 = smul.addr %s340, 7
          %s342 = smul.addr %s341, 8
          %s343 = scalar_lea.vmem %s0, %s342
        $region52: #{vae_forward.1} parent=47 // pred_fallthru
          _
        // Predicated region
        $region53: #{vae_forward.1} parent=47 // pred_check
          %p344 = pneg %p67
        $region54: #{vae_forward.1} parent=47 // pred_check_branch
          %346 = sbr.rel (%p344) target = $region56
        $region55: #{vae_forward.1} parent=47 // pred_region
          %p347 = scmp.lt.s32.totalorder %s21, 1
          %s348 = scalar_select %p347, %s21, 1
          %s349 = smul.addr %s348, 8
          %s350 = scalar_lea.vmem %s1, %s349
        $region56: #{vae_forward.1} parent=47 // pred_fallthru
          _
      $region48: #{vae_forward.1} parent=5 // pred_fallthru
        _
      %p351 = scmp.le.s32.totalorder 1, %s21
      %p352 = scmp.lt.s32.totalorder %s21, 3
      %p353 = pnand %p351, %p352
      %p354 = pneg %p353
      // Predicated region
      $region57: #{vae_forward.1} parent=5 // pred_check
        _
      $region58: #{vae_forward.1} parent=5 // pred_check_branch
        %356 = sbr.rel (%p353) target = $region60
      $region59: #{vae_forward.1} parent=5 // pred_region
        %s357 = ssub.s32 %s21, 1
        %p358 = scmp.lt.s32.totalorder %s26, 1
        %s359 = scalar_select %p358, %s26, 1
        %s360 = smul.addr %s359, 7
        %s361 = smul.addr %s360, 8
        %s362 = scalar_lea.vmem %s0, %s361
        %p363 = pneg %p47
        %p364 = pneg %p44
        %p365 = scmp.lt.s32.totalorder %s26, 1
        %s366 = scalar_select %p365, %s26, 1
        %s367 = smul.addr %s366, 8
        %s368 = scalar_lea.vmem %s1, %s367
        %p369 = pneg %p73
        %p370 = pneg %p70
        %p371 = pneg %p94
        %p372 = pneg %p91
        %p373 = pneg %p115
        %p374 = pneg %p112
        %p375 = pneg %p136
        %p376 = pneg %p133
        %p377 = pneg %p157
        %p378 = pneg %p154
        %p379 = pneg %p178
        %p380 = pneg %p175
        %p381 = pneg %p199
        %p382 = pneg %p196
        %p383 = pneg %p220
        %p384 = pneg %p217
        %p385 = pneg %p241
        %p386 = pneg %p238
        %p387 = pneg %p267
        %p388 = pneg %p264
        %s389 = sand.u32 %s254, 1
        %s390 = scalar_lea.sflag [#allocation3], %s389
        %s391 = sand.u32 %s254, 1
        %s392 = smul.addr %s391, 28
        %s393 = scalar_lea.vmem [#allocation2], %s392
        %p394 = pneg %p293
        %p395 = pneg %p290
        %p396 = scmp.lt.s32.totalorder %s26, 1
        %s397 = scalar_select %p396, %s26, 1
        %s398 = smul.addr %s397, 2
        %s399 = smul.addr %s398, 8
        %s400 = scalar_lea.vmem %s11, %s399
        %p401 = scmp.lt.s32.totalorder %s26, 1
        %s402 = scalar_select %p401, %s26, 1
        %s403 = smul.addr %s402, 7
        %s404 = smul.addr %s403, 8
        %s405 = scalar_lea.vmem %s0, %s404
        %p406 = scmp.lt.s32.totalorder %s26, 1
        %s407 = scalar_select %p406, %s26, 1
        %s408 = smul.addr %s407, 8
        %s409 = scalar_lea.vmem %s1, %s408
        %p410 = scmp.lt.s32.totalorder %s26, 1
        %s411 = scalar_select %p410, %s26, 1
        %s412 = smul.addr %s411, 2
        %s413 = smul.addr %s412, 8
        %s414 = scalar_lea.vmem %s11, %s413
        %v416 = vld [vmem:[%s405] sm:$0xff]
        %v417 = vld [vmem:[%s405 + $0x8] sm:$0xff]
        %v418 = vld [vmem:[%s405 + $0x10] sm:$0xff]
        %v419 = vld [vmem:[%s405 + $0x18] sm:$0xff]
        %v420 = vld [vmem:[%s405 + $0x20] sm:$0xff]
        %v421 = vld [vmem:[%s405 + $0x28] sm:$0xff]
        %v422 = vld [vmem:[%s405 + $0x30] sm:$0xff]
        %v423 = vpack.c.bf16 %v416, %v416
        %v424 = vpack.c.bf16 %v417, %v417
        %v425 = vpack.c.bf16 %v418, %v418
        %v426 = vpack.c.bf16 %v419, %v419
        %v427 = vpack.c.bf16 %v420, %v420
        %v428 = vpack.c.bf16 %v421, %v421
        %v429 = vpack.c.bf16 %v422, %v422
        %v430 = vld [vmem:[%s2] sm:$0xff]
        %v431 = vld [vmem:[%s2 + $0x8] sm:$0xff]
        %v432 = vld [vmem:[%s2 + $0x10] sm:$0xff]
        %v433 = vld [vmem:[%s2 + $0x18] sm:$0xff]
        %v434 = vld [vmem:[%s2 + $0x20] sm:$0xff]
        %v435 = vld [vmem:[%s2 + $0x28] sm:$0xff]
        %v436 = vld [vmem:[%s2 + $0x30] sm:$0xff]
        %v437 = vld [vmem:[%s2 + $0x38] sm:$0xff]
        %v438 = vld [vmem:[%s2 + $0x40] sm:$0xff]
        %v439 = vld [vmem:[%s2 + $0x48] sm:$0xff]
        %v440 = vld [vmem:[%s2 + $0x50] sm:$0xff]
        %v441 = vld [vmem:[%s2 + $0x58] sm:$0xff]
        %v442 = vld [vmem:[%s2 + $0x60] sm:$0xff]
        %v443 = vld [vmem:[%s2 + $0x68] sm:$0xff]
        %v444 = vld [vmem:[%s2 + $0x70] sm:$0xff]
        %v445 = vld [vmem:[%s2 + $0x78] sm:$0xff]
        %v446 = vld [vmem:[%s2 + $0x80] sm:$0xff]
        %v447 = vld [vmem:[%s2 + $0x88] sm:$0xff]
        %v448 = vld [vmem:[%s2 + $0x90] sm:$0xff]
        %v449 = vld [vmem:[%s2 + $0x98] sm:$0xff]
        %v450 = vld [vmem:[%s2 + $0xa0] sm:$0xff]
        %v451 = vld [vmem:[%s2 + $0xa8] sm:$0xff]
        %v452 = vld [vmem:[%s2 + $0xb0] sm:$0xff]
        %v453 = vld [vmem:[%s2 + $0xb8] sm:$0xff]
        %v454 = vld [vmem:[%s2 + $0xc0] sm:$0xff]
        %v455 = vld [vmem:[%s2 + $0xc8] sm:$0xff]
        %v456 = vld [vmem:[%s2 + $0xd0] sm:$0xff]
        %v457 = vld [vmem:[%s2 + $0xd8] sm:$0xff]
        %v458 = vld [vmem:[%s2 + $0xe0] sm:$0xff]
        %v459 = vld [vmem:[%s2 + $0xe8] sm:$0xff]
        %v460 = vld [vmem:[%s2 + $0xf0] sm:$0xff]
        %v461 = vld [vmem:[%s2 + $0xf8] sm:$0xff]
        %v462 = vld [vmem:[%s2 + $0x100] sm:$0xff]
        %v463 = vld [vmem:[%s2 + $0x108] sm:$0xff]
        %v464 = vld [vmem:[%s2 + $0x110] sm:$0xff]
        %v465 = vld [vmem:[%s2 + $0x118] sm:$0xff]
        %v466 = vld [vmem:[%s2 + $0x120] sm:$0xff]
        %v467 = vld [vmem:[%s2 + $0x128] sm:$0xff]
        %v468 = vld [vmem:[%s2 + $0x130] sm:$0xff]
        %v469 = vld [vmem:[%s2 + $0x138] sm:$0xff]
        %v470 = vld [vmem:[%s2 + $0x140] sm:$0xff]
        %v471 = vld [vmem:[%s2 + $0x148] sm:$0xff]
        %v472 = vld [vmem:[%s2 + $0x150] sm:$0xff]
        %v473 = vld [vmem:[%s2 + $0x158] sm:$0xff]
        %v474 = vld [vmem:[%s2 + $0x160] sm:$0xff]
        %v475 = vld [vmem:[%s2 + $0x168] sm:$0xff]
        %v476 = vld [vmem:[%s2 + $0x170] sm:$0xff]
        %v477 = vld [vmem:[%s2 + $0x178] sm:$0xff]
        %v478 = vld [vmem:[%s2 + $0x180] sm:$0xff]
        %v479 = vld [vmem:[%s2 + $0x188] sm:$0xff]
        %v480 = vld [vmem:[%s2 + $0x190] sm:$0xff]
        %v481 = vld [vmem:[%s2 + $0x198] sm:$0xff]
        %v482 = vld [vmem:[%s2 + $0x1a0] sm:$0xff]
        %v483 = vld [vmem:[%s2 + $0x1a8] sm:$0xff]
        %v484 = vld [vmem:[%s2 + $0x1b0] sm:$0xff]
        %v485 = vld [vmem:[%s2 + $0x1b8] sm:$0xff]
        %v486 = vld [vmem:[%s2 + $0x1c0] sm:$0xff]
        %v487 = vld [vmem:[%s2 + $0x1c8] sm:$0xff]
        %v488 = vld [vmem:[%s2 + $0x1d0] sm:$0xff]
        %v489 = vld [vmem:[%s2 + $0x1d8] sm:$0xff]
        %v490 = vld [vmem:[%s2 + $0x1e0] sm:$0xff]
        %v491 = vld [vmem:[%s2 + $0x1e8] sm:$0xff]
        %v492 = vld [vmem:[%s2 + $0x1f0] sm:$0xff]
        %v493 = vld [vmem:[%s2 + $0x1f8] sm:$0xff]
        %v494 = vld [vmem:[%s2 + $0x200] sm:$0xff]
        %v495 = vld [vmem:[%s2 + $0x208] sm:$0xff]
        %v496 = vld [vmem:[%s2 + $0x210] sm:$0xff]
        %v497 = vld [vmem:[%s2 + $0x218] sm:$0xff]
        %v498 = vld [vmem:[%s2 + $0x220] sm:$0xff]
        %v499 = vld [vmem:[%s2 + $0x228] sm:$0xff]
        %v500 = vld [vmem:[%s2 + $0x230] sm:$0xff]
        %v501 = vld [vmem:[%s2 + $0x238] sm:$0xff]
        %v502 = vld [vmem:[%s2 + $0x240] sm:$0xff]
        %v503 = vld [vmem:[%s2 + $0x248] sm:$0xff]
        %v504 = vld [vmem:[%s2 + $0x250] sm:$0xff]
        %v505 = vld [vmem:[%s2 + $0x258] sm:$0xff]
        %v506 = vld [vmem:[%s2 + $0x260] sm:$0xff]
        %v507 = vld [vmem:[%s2 + $0x268] sm:$0xff]
        %v508 = vld [vmem:[%s2 + $0x270] sm:$0xff]
        %v509 = vld [vmem:[%s2 + $0x278] sm:$0xff]
        %v510 = vld [vmem:[%s2 + $0x280] sm:$0xff]
        %v511 = vld [vmem:[%s2 + $0x288] sm:$0xff]
        %v512 = vld [vmem:[%s2 + $0x290] sm:$0xff]
        %v513 = vld [vmem:[%s2 + $0x298] sm:$0xff]
        %v514 = vld [vmem:[%s2 + $0x2a0] sm:$0xff]
        %v515 = vld [vmem:[%s2 + $0x2a8] sm:$0xff]
        %v516 = vld [vmem:[%s2 + $0x2b0] sm:$0xff]
        %v517 = vld [vmem:[%s2 + $0x2b8] sm:$0xff]
        %v518 = vld [vmem:[%s2 + $0x2c0] sm:$0xff]
        %v519 = vld [vmem:[%s2 + $0x2c8] sm:$0xff]
        %v520 = vld [vmem:[%s2 + $0x2d0] sm:$0xff]
        %v521 = vld [vmem:[%s2 + $0x2d8] sm:$0xff]
        %v522 = vld [vmem:[%s2 + $0x2e0] sm:$0xff]
        %v523 = vld [vmem:[%s2 + $0x2e8] sm:$0xff]
        %v524 = vld [vmem:[%s2 + $0x2f0] sm:$0xff]
        %v525 = vld [vmem:[%s2 + $0x2f8] sm:$0xff]
        %v526 = vld [vmem:[%s2 + $0x300] sm:$0xff]
        %v527 = vld [vmem:[%s2 + $0x308] sm:$0xff]
        %v528 = vld [vmem:[%s2 + $0x310] sm:$0xff]
        %v529 = vld [vmem:[%s2 + $0x318] sm:$0xff]
        %v530 = vld [vmem:[%s2 + $0x320] sm:$0xff]
        %v531 = vld [vmem:[%s2 + $0x328] sm:$0xff]
        %v532 = vld [vmem:[%s2 + $0x330] sm:$0xff]
        %v533 = vld [vmem:[%s2 + $0x338] sm:$0xff]
        %v534 = vld [vmem:[%s2 + $0x340] sm:$0xff]
        %v535 = vld [vmem:[%s2 + $0x348] sm:$0xff]
        %v536 = vld [vmem:[%s2 + $0x350] sm:$0xff]
        %v537 = vld [vmem:[%s2 + $0x358] sm:$0xff]
        %v538 = vld [vmem:[%s2 + $0x360] sm:$0xff]
        %v539 = vld [vmem:[%s2 + $0x368] sm:$0xff]
        %v540 = vld [vmem:[%s2 + $0x370] sm:$0xff]
        %v541 = vld [vmem:[%s2 + $0x378] sm:$0xff]
        %v542 = vld [vmem:[%s2 + $0x380] sm:$0xff]
        %v543 = vld [vmem:[%s2 + $0x388] sm:$0xff]
        %v544 = vld [vmem:[%s2 + $0x390] sm:$0xff]
        %v545 = vld [vmem:[%s2 + $0x398] sm:$0xff]
        %v546 = vld [vmem:[%s2 + $0x3a0] sm:$0xff]
        %v547 = vld [vmem:[%s2 + $0x3a8] sm:$0xff]
        %v548 = vld [vmem:[%s2 + $0x3b0] sm:$0xff]
        %v549 = vld [vmem:[%s2 + $0x3b8] sm:$0xff]
        %v550 = vld [vmem:[%s2 + $0x3c0] sm:$0xff]
        %v551 = vld [vmem:[%s2 + $0x3c8] sm:$0xff]
        %v552 = vld [vmem:[%s2 + $0x3d0] sm:$0xff]
        %v553 = vld [vmem:[%s2 + $0x3d8] sm:$0xff]
        %v554 = vld [vmem:[%s2 + $0x3e0] sm:$0xff]
        %v555 = vld [vmem:[%s2 + $0x3e8] sm:$0xff]
        %v556 = vld [vmem:[%s2 + $0x3f0] sm:$0xff]
        %v557 = vld [vmem:[%s2 + $0x3f8] sm:$0xff]
        %v558 = vld [vmem:[%s2 + $0x400] sm:$0xff]
        %v559 = vld [vmem:[%s2 + $0x408] sm:$0xff]
        %v560 = vld [vmem:[%s2 + $0x410] sm:$0xff]
        %v561 = vld [vmem:[%s2 + $0x418] sm:$0xff]
        %v562 = vld [vmem:[%s2 + $0x420] sm:$0xff]
        %v563 = vld [vmem:[%s2 + $0x428] sm:$0xff]
        %v564 = vld [vmem:[%s2 + $0x430] sm:$0xff]
        %v565 = vld [vmem:[%s2 + $0x438] sm:$0xff]
        %v566 = vld [vmem:[%s2 + $0x440] sm:$0xff]
        %v567 = vld [vmem:[%s2 + $0x448] sm:$0xff]
        %v568 = vld [vmem:[%s2 + $0x450] sm:$0xff]
        %v569 = vld [vmem:[%s2 + $0x458] sm:$0xff]
        %v570 = vld [vmem:[%s2 + $0x460] sm:$0xff]
        %v571 = vld [vmem:[%s2 + $0x468] sm:$0xff]
        %v572 = vld [vmem:[%s2 + $0x470] sm:$0xff]
        %v573 = vld [vmem:[%s2 + $0x478] sm:$0xff]
        %v574 = vld [vmem:[%s2 + $0x480] sm:$0xff]
        %v575 = vld [vmem:[%s2 + $0x488] sm:$0xff]
        %v576 = vld [vmem:[%s2 + $0x490] sm:$0xff]
        %v577 = vld [vmem:[%s2 + $0x498] sm:$0xff]
        %v578 = vld [vmem:[%s2 + $0x4a0] sm:$0xff]
        %v579 = vld [vmem:[%s2 + $0x4a8] sm:$0xff]
        %v580 = vld [vmem:[%s2 + $0x4b0] sm:$0xff]
        %v581 = vld [vmem:[%s2 + $0x4b8] sm:$0xff]
        %v582 = vld [vmem:[%s2 + $0x4c0] sm:$0xff]
        %v583 = vld [vmem:[%s2 + $0x4c8] sm:$0xff]
        %v584 = vld [vmem:[%s2 + $0x4d0] sm:$0xff]
        %v585 = vld [vmem:[%s2 + $0x4d8] sm:$0xff]
        %v586 = vld [vmem:[%s2 + $0x4e0] sm:$0xff]
        %v587 = vld [vmem:[%s2 + $0x4e8] sm:$0xff]
        %v588 = vld [vmem:[%s2 + $0x4f0] sm:$0xff]
        %v589 = vld [vmem:[%s2 + $0x4f8] sm:$0xff]
        %v590 = vld [vmem:[%s2 + $0x500] sm:$0xff]
        %v591 = vld [vmem:[%s2 + $0x508] sm:$0xff]
        %v592 = vld [vmem:[%s2 + $0x510] sm:$0xff]
        %v593 = vld [vmem:[%s2 + $0x518] sm:$0xff]
        %v594 = vld [vmem:[%s2 + $0x520] sm:$0xff]
        %v595 = vld [vmem:[%s2 + $0x528] sm:$0xff]
        %v596 = vld [vmem:[%s2 + $0x530] sm:$0xff]
        %v597 = vld [vmem:[%s2 + $0x538] sm:$0xff]
        %v598 = vld [vmem:[%s2 + $0x540] sm:$0xff]
        %v599 = vld [vmem:[%s2 + $0x548] sm:$0xff]
        %v600 = vld [vmem:[%s2 + $0x550] sm:$0xff]
        %v601 = vld [vmem:[%s2 + $0x558] sm:$0xff]
        %v602 = vld [vmem:[%s2 + $0x560] sm:$0xff]
        %v603 = vld [vmem:[%s2 + $0x568] sm:$0xff]
        %v604 = vld [vmem:[%s2 + $0x570] sm:$0xff]
        %v605 = vld [vmem:[%s2 + $0x578] sm:$0xff]
        %v606 = vld [vmem:[%s2 + $0x580] sm:$0xff]
        %v607 = vld [vmem:[%s2 + $0x588] sm:$0xff]
        %v608 = vld [vmem:[%s2 + $0x590] sm:$0xff]
        %v609 = vld [vmem:[%s2 + $0x598] sm:$0xff]
        %v610 = vld [vmem:[%s2 + $0x5a0] sm:$0xff]
        %v611 = vld [vmem:[%s2 + $0x5a8] sm:$0xff]
        %v612 = vld [vmem:[%s2 + $0x5b0] sm:$0xff]
        %v613 = vld [vmem:[%s2 + $0x5b8] sm:$0xff]
        %v614 = vld [vmem:[%s2 + $0x5c0] sm:$0xff]
        %v615 = vld [vmem:[%s2 + $0x5c8] sm:$0xff]
        %v616 = vld [vmem:[%s2 + $0x5d0] sm:$0xff]
        %v617 = vld [vmem:[%s2 + $0x5d8] sm:$0xff]
        %v618 = vld [vmem:[%s2 + $0x5e0] sm:$0xff]
        %v619 = vld [vmem:[%s2 + $0x5e8] sm:$0xff]
        %v620 = vld [vmem:[%s2 + $0x5f0] sm:$0xff]
        %v621 = vld [vmem:[%s2 + $0x5f8] sm:$0xff]
        %v622 = vld [vmem:[%s2 + $0x600] sm:$0xff]
        %v623 = vld [vmem:[%s2 + $0x608] sm:$0xff]
        %v624 = vld [vmem:[%s2 + $0x610] sm:$0xff]
        %v625 = vld [vmem:[%s2 + $0x618] sm:$0xff]
        %v626 = vld [vmem:[%s3] sm:$0xf]
        %v628 = vlaneseq
        %v629 = vshrl.u32 %v628, 7
        %v630 = vsub.s32 0, %v629
        %v631 = vrot.slane %v626, %v630
        %v632 = vlaneseq
        %v633 = vshrl.u32 %v632, 7
        %v634 = vsub.s32 1, %v633
        %v635 = vrot.slane %v626, %v634
        %v636 = vlaneseq
        %v637 = vshrl.u32 %v636, 7
        %v638 = vsub.s32 2, %v637
        %v639 = vrot.slane %v626, %v638
        %v640 = vlaneseq
        %v641 = vshrl.u32 %v640, 7
        %v642 = vsub.s32 3, %v641
        %v643 = vrot.slane %v626, %v642
        %v844 = vunpack.c.l.b16 %v430
        %v845 = vunpack.c.h.b16 %v430
        %v846 = vunpack.c.l.b16 %v431
        %v847 = vunpack.c.h.b16 %v431
        %v848 = vunpack.c.l.b16 %v432
        %v849 = vunpack.c.h.b16 %v432
        %v850 = vunpack.c.l.b16 %v433
        %v851 = vunpack.c.h.b16 %v433
        %v852 = vunpack.c.l.b16 %v434
        %v853 = vunpack.c.h.b16 %v434
        %v854 = vunpack.c.l.b16 %v435
        %v855 = vunpack.c.h.b16 %v435
        %v856 = vunpack.c.l.b16 %v436
        %v857 = vunpack.c.h.b16 %v436
        %v858 = vunpack.c.l.b16 %v437
        %v859 = vunpack.c.h.b16 %v437
        %v860 = vunpack.c.l.b16 %v438
        %v861 = vunpack.c.h.b16 %v438
        %v862 = vunpack.c.l.b16 %v439
        %v863 = vunpack.c.h.b16 %v439
        %v864 = vunpack.c.l.b16 %v440
        %v865 = vunpack.c.h.b16 %v440
        %v866 = vunpack.c.l.b16 %v441
        %v867 = vunpack.c.h.b16 %v441
        %v868 = vunpack.c.l.b16 %v442
        %v869 = vunpack.c.h.b16 %v442
        %v870 = vunpack.c.l.b16 %v443
        %v871 = vunpack.c.h.b16 %v443
        %v872 = vunpack.c.l.b16 %v444
        %v873 = vunpack.c.h.b16 %v444
        %v874 = vunpack.c.l.b16 %v445
        %v875 = vunpack.c.h.b16 %v445
        %v876 = vunpack.c.l.b16 %v446
        %v877 = vunpack.c.h.b16 %v446
        %v878 = vunpack.c.l.b16 %v447
        %v879 = vunpack.c.h.b16 %v447
        %v880 = vunpack.c.l.b16 %v448
        %v881 = vunpack.c.h.b16 %v448
        %v882 = vunpack.c.l.b16 %v449
        %v883 = vunpack.c.h.b16 %v449
        %v884 = vunpack.c.l.b16 %v450
        %v885 = vunpack.c.h.b16 %v450
        %v886 = vunpack.c.l.b16 %v451
        %v887 = vunpack.c.h.b16 %v451
        %v888 = vunpack.c.l.b16 %v452
        %v889 = vunpack.c.h.b16 %v452
        %v890 = vunpack.c.l.b16 %v453
        %v891 = vunpack.c.h.b16 %v453
        %v892 = vunpack.c.l.b16 %v454
        %v893 = vunpack.c.h.b16 %v454
        %v894 = vunpack.c.l.b16 %v455
        %v895 = vunpack.c.h.b16 %v455
        %v896 = vunpack.c.l.b16 %v456
        %v897 = vunpack.c.h.b16 %v456
        %v898 = vunpack.c.l.b16 %v457
        %v899 = vunpack.c.h.b16 %v457
        %v900 = vunpack.c.l.b16 %v458
        %v901 = vunpack.c.h.b16 %v458
        %v902 = vunpack.c.l.b16 %v459
        %v903 = vunpack.c.h.b16 %v459
        %v904 = vunpack.c.l.b16 %v460
        %v905 = vunpack.c.h.b16 %v460
        %v906 = vunpack.c.l.b16 %v461
        %v907 = vunpack.c.h.b16 %v461
        %v908 = vunpack.c.l.b16 %v462
        %v909 = vunpack.c.h.b16 %v462
        %v910 = vunpack.c.l.b16 %v463
        %v911 = vunpack.c.h.b16 %v463
        %v912 = vunpack.c.l.b16 %v464
        %v913 = vunpack.c.h.b16 %v464
        %v914 = vunpack.c.l.b16 %v465
        %v915 = vunpack.c.h.b16 %v465
        %v916 = vunpack.c.l.b16 %v466
        %v917 = vunpack.c.h.b16 %v466
        %v918 = vunpack.c.l.b16 %v467
        %v919 = vunpack.c.h.b16 %v467
        %v920 = vunpack.c.l.b16 %v468
        %v921 = vunpack.c.h.b16 %v468
        %v922 = vunpack.c.l.b16 %v469
        %v923 = vunpack.c.h.b16 %v469
        %v924 = vunpack.c.l.b16 %v470
        %v925 = vunpack.c.h.b16 %v470
        %v926 = vunpack.c.l.b16 %v471
        %v927 = vunpack.c.h.b16 %v471
        %v928 = vunpack.c.l.b16 %v472
        %v929 = vunpack.c.h.b16 %v472
        %v930 = vunpack.c.l.b16 %v473
        %v931 = vunpack.c.h.b16 %v473
        %v932 = vunpack.c.l.b16 %v474
        %v933 = vunpack.c.h.b16 %v474
        %v934 = vunpack.c.l.b16 %v475
        %v935 = vunpack.c.h.b16 %v475
        %v936 = vunpack.c.l.b16 %v476
        %v937 = vunpack.c.h.b16 %v476
        %v938 = vunpack.c.l.b16 %v477
        %v939 = vunpack.c.h.b16 %v477
        %v940 = vunpack.c.l.b16 %v478
        %v941 = vunpack.c.h.b16 %v478
        %v942 = vunpack.c.l.b16 %v479
        %v943 = vunpack.c.h.b16 %v479
        %v944 = vunpack.c.l.b16 %v480
        %v945 = vunpack.c.h.b16 %v480
        %v946 = vunpack.c.l.b16 %v481
        %v947 = vunpack.c.h.b16 %v481
        %v948 = vunpack.c.l.b16 %v482
        %v949 = vunpack.c.h.b16 %v482
        %v950 = vunpack.c.l.b16 %v483
        %v951 = vunpack.c.h.b16 %v483
        %v952 = vunpack.c.l.b16 %v484
        %v953 = vunpack.c.h.b16 %v484
        %v954 = vunpack.c.l.b16 %v485
        %v955 = vunpack.c.h.b16 %v485
        %v956 = vunpack.c.l.b16 %v486
        %v957 = vunpack.c.h.b16 %v486
        %v958 = vunpack.c.l.b16 %v487
        %v959 = vunpack.c.h.b16 %v487
        %v960 = vunpack.c.l.b16 %v488
        %v961 = vunpack.c.h.b16 %v488
        %v962 = vunpack.c.l.b16 %v489
        %v963 = vunpack.c.h.b16 %v489
        %v964 = vunpack.c.l.b16 %v490
        %v965 = vunpack.c.h.b16 %v490
        %v966 = vunpack.c.l.b16 %v491
        %v967 = vunpack.c.h.b16 %v491
        %v968 = vunpack.c.l.b16 %v492
        %v969 = vunpack.c.h.b16 %v492
        %v970 = vunpack.c.l.b16 %v493
        %v971 = vunpack.c.h.b16 %v493
        %v972 = vunpack.c.l.b16 %v494
        %v973 = vunpack.c.h.b16 %v494
        %v974 = vunpack.c.l.b16 %v495
        %v975 = vunpack.c.h.b16 %v495
        %v976 = vunpack.c.l.b16 %v496
        %v977 = vunpack.c.h.b16 %v496
        %v978 = vunpack.c.l.b16 %v497
        %v979 = vunpack.c.h.b16 %v497
        %v980 = vunpack.c.l.b16 %v498
        %v981 = vunpack.c.h.b16 %v498
        %v982 = vunpack.c.l.b16 %v499
        %v983 = vunpack.c.h.b16 %v499
        %v984 = vunpack.c.l.b16 %v500
        %v985 = vunpack.c.h.b16 %v500
        %v986 = vunpack.c.l.b16 %v501
        %v987 = vunpack.c.h.b16 %v501
        %v988 = vunpack.c.l.b16 %v502
        %v989 = vunpack.c.h.b16 %v502
        %v990 = vunpack.c.l.b16 %v503
        %v991 = vunpack.c.h.b16 %v503
        %v992 = vunpack.c.l.b16 %v504
        %v993 = vunpack.c.h.b16 %v504
        %v994 = vunpack.c.l.b16 %v505
        %v995 = vunpack.c.h.b16 %v505
        %v996 = vunpack.c.l.b16 %v506
        %v997 = vunpack.c.h.b16 %v506
        %v998 = vunpack.c.l.b16 %v507
        %v999 = vunpack.c.h.b16 %v507
        %v1000 = vunpack.c.l.b16 %v508
        %v1001 = vunpack.c.h.b16 %v508
        %v1002 = vunpack.c.l.b16 %v509
        %v1003 = vunpack.c.h.b16 %v509
        %v1004 = vunpack.c.l.b16 %v510
        %v1005 = vunpack.c.h.b16 %v510
        %v1006 = vunpack.c.l.b16 %v511
        %v1007 = vunpack.c.h.b16 %v511
        %v1008 = vunpack.c.l.b16 %v512
        %v1009 = vunpack.c.h.b16 %v512
        %v1010 = vunpack.c.l.b16 %v513
        %v1011 = vunpack.c.h.b16 %v513
        %v1012 = vunpack.c.l.b16 %v514
        %v1013 = vunpack.c.h.b16 %v514
        %v1014 = vunpack.c.l.b16 %v515
        %v1015 = vunpack.c.h.b16 %v515
        %v1016 = vunpack.c.l.b16 %v516
        %v1017 = vunpack.c.h.b16 %v516
        %v1018 = vunpack.c.l.b16 %v517
        %v1019 = vunpack.c.h.b16 %v517
        %v1020 = vunpack.c.l.b16 %v518
        %v1021 = vunpack.c.h.b16 %v518
        %v1022 = vunpack.c.l.b16 %v519
        %v1023 = vunpack.c.h.b16 %v519
        %v1024 = vunpack.c.l.b16 %v520
        %v1025 = vunpack.c.h.b16 %v520
        %v1026 = vunpack.c.l.b16 %v521
        %v1027 = vunpack.c.h.b16 %v521
        %v1028 = vunpack.c.l.b16 %v522
        %v1029 = vunpack.c.h.b16 %v522
        %v1030 = vunpack.c.l.b16 %v523
        %v1031 = vunpack.c.h.b16 %v523
        %v1032 = vunpack.c.l.b16 %v524
        %v1033 = vunpack.c.h.b16 %v524
        %v1034 = vunpack.c.l.b16 %v525
        %v1035 = vunpack.c.h.b16 %v525
        %v1036 = vunpack.c.l.b16 %v526
        %v1037 = vunpack.c.h.b16 %v526
        %v1038 = vunpack.c.l.b16 %v527
        %v1039 = vunpack.c.h.b16 %v527
        %v1040 = vunpack.c.l.b16 %v528
        %v1041 = vunpack.c.h.b16 %v528
        %v1042 = vunpack.c.l.b16 %v529
        %v1043 = vunpack.c.h.b16 %v529
        %v1044 = vunpack.c.l.b16 %v530
        %v1045 = vunpack.c.h.b16 %v530
        %v1046 = vunpack.c.l.b16 %v531
        %v1047 = vunpack.c.h.b16 %v531
        %v1048 = vunpack.c.l.b16 %v532
        %v1049 = vunpack.c.h.b16 %v532
        %v1050 = vunpack.c.l.b16 %v533
        %v1051 = vunpack.c.h.b16 %v533
        %v1052 = vunpack.c.l.b16 %v534
        %v1053 = vunpack.c.h.b16 %v534
        %v1054 = vunpack.c.l.b16 %v535
        %v1055 = vunpack.c.h.b16 %v535
        %v1056 = vunpack.c.l.b16 %v536
        %v1057 = vunpack.c.h.b16 %v536
        %v1058 = vunpack.c.l.b16 %v537
        %v1059 = vunpack.c.h.b16 %v537
        %v1060 = vunpack.c.l.b16 %v538
        %v1061 = vunpack.c.h.b16 %v538
        %v1062 = vunpack.c.l.b16 %v539
        %v1063 = vunpack.c.h.b16 %v539
        %v1064 = vunpack.c.l.b16 %v540
        %v1065 = vunpack.c.h.b16 %v540
        %v1066 = vunpack.c.l.b16 %v541
        %v1067 = vunpack.c.h.b16 %v541
        %v1068 = vunpack.c.l.b16 %v542
        %v1069 = vunpack.c.h.b16 %v542
        %v1070 = vunpack.c.l.b16 %v543
        %v1071 = vunpack.c.h.b16 %v543
        %v1072 = vunpack.c.l.b16 %v544
        %v1073 = vunpack.c.h.b16 %v544
        %v1074 = vunpack.c.l.b16 %v545
        %v1075 = vunpack.c.h.b16 %v545
        %v1076 = vunpack.c.l.b16 %v546
        %v1077 = vunpack.c.h.b16 %v546
        %v1078 = vunpack.c.l.b16 %v547
        %v1079 = vunpack.c.h.b16 %v547
        %v1080 = vunpack.c.l.b16 %v548
        %v1081 = vunpack.c.h.b16 %v548
        %v1082 = vunpack.c.l.b16 %v549
        %v1083 = vunpack.c.h.b16 %v549
        %v1084 = vunpack.c.l.b16 %v550
        %v1085 = vunpack.c.h.b16 %v550
        %v1086 = vunpack.c.l.b16 %v551
        %v1087 = vunpack.c.h.b16 %v551
        %v1088 = vunpack.c.l.b16 %v552
        %v1089 = vunpack.c.h.b16 %v552
        %v1090 = vunpack.c.l.b16 %v553
        %v1091 = vunpack.c.h.b16 %v553
        %v1092 = vunpack.c.l.b16 %v554
        %v1093 = vunpack.c.h.b16 %v554
        %v1094 = vunpack.c.l.b16 %v555
        %v1095 = vunpack.c.h.b16 %v555
        %v1096 = vunpack.c.l.b16 %v556
        %v1097 = vunpack.c.h.b16 %v556
        %v1098 = vunpack.c.l.b16 %v557
        %v1099 = vunpack.c.h.b16 %v557
        %v1100 = vunpack.c.l.b16 %v558
        %v1101 = vunpack.c.h.b16 %v558
        %v1102 = vunpack.c.l.b16 %v559
        %v1103 = vunpack.c.h.b16 %v559
        %v1104 = vunpack.c.l.b16 %v560
        %v1105 = vunpack.c.h.b16 %v560
        %v1106 = vunpack.c.l.b16 %v561
        %v1107 = vunpack.c.h.b16 %v561
        %v1108 = vunpack.c.l.b16 %v562
        %v1109 = vunpack.c.h.b16 %v562
        %v1110 = vunpack.c.l.b16 %v563
        %v1111 = vunpack.c.h.b16 %v563
        %v1112 = vunpack.c.l.b16 %v564
        %v1113 = vunpack.c.h.b16 %v564
        %v1114 = vunpack.c.l.b16 %v565
        %v1115 = vunpack.c.h.b16 %v565
        %v1116 = vunpack.c.l.b16 %v566
        %v1117 = vunpack.c.h.b16 %v566
        %v1118 = vunpack.c.l.b16 %v567
        %v1119 = vunpack.c.h.b16 %v567
        %v1120 = vunpack.c.l.b16 %v568
        %v1121 = vunpack.c.h.b16 %v568
        %v1122 = vunpack.c.l.b16 %v569
        %v1123 = vunpack.c.h.b16 %v569
        %v1124 = vunpack.c.l.b16 %v570
        %v1125 = vunpack.c.h.b16 %v570
        %v1126 = vunpack.c.l.b16 %v571
        %v1127 = vunpack.c.h.b16 %v571
        %v1128 = vunpack.c.l.b16 %v572
        %v1129 = vunpack.c.h.b16 %v572
        %v1130 = vunpack.c.l.b16 %v573
        %v1131 = vunpack.c.h.b16 %v573
        %v1132 = vunpack.c.l.b16 %v574
        %v1133 = vunpack.c.h.b16 %v574
        %v1134 = vunpack.c.l.b16 %v575
        %v1135 = vunpack.c.h.b16 %v575
        %v1136 = vunpack.c.l.b16 %v576
        %v1137 = vunpack.c.h.b16 %v576
        %v1138 = vunpack.c.l.b16 %v577
        %v1139 = vunpack.c.h.b16 %v577
        %v1140 = vunpack.c.l.b16 %v578
        %v1141 = vunpack.c.h.b16 %v578
        %v1142 = vunpack.c.l.b16 %v579
        %v1143 = vunpack.c.h.b16 %v579
        %v1144 = vunpack.c.l.b16 %v580
        %v1145 = vunpack.c.h.b16 %v580
        %v1146 = vunpack.c.l.b16 %v581
        %v1147 = vunpack.c.h.b16 %v581
        %v1148 = vunpack.c.l.b16 %v582
        %v1149 = vunpack.c.h.b16 %v582
        %v1150 = vunpack.c.l.b16 %v583
        %v1151 = vunpack.c.h.b16 %v583
        %v1152 = vunpack.c.l.b16 %v584
        %v1153 = vunpack.c.h.b16 %v584
        %v1154 = vunpack.c.l.b16 %v585
        %v1155 = vunpack.c.h.b16 %v585
        %v1156 = vunpack.c.l.b16 %v586
        %v1157 = vunpack.c.h.b16 %v586
        %v1158 = vunpack.c.l.b16 %v587
        %v1159 = vunpack.c.h.b16 %v587
        %v1160 = vunpack.c.l.b16 %v588
        %v1161 = vunpack.c.h.b16 %v588
        %v1162 = vunpack.c.l.b16 %v589
        %v1163 = vunpack.c.h.b16 %v589
        %v1164 = vunpack.c.l.b16 %v590
        %v1165 = vunpack.c.h.b16 %v590
        %v1166 = vunpack.c.l.b16 %v591
        %v1167 = vunpack.c.h.b16 %v591
        %v1168 = vunpack.c.l.b16 %v592
        %v1169 = vunpack.c.h.b16 %v592
        %v1170 = vunpack.c.l.b16 %v593
        %v1171 = vunpack.c.h.b16 %v593
        %v1172 = vunpack.c.l.b16 %v594
        %v1173 = vunpack.c.h.b16 %v594
        %v1174 = vunpack.c.l.b16 %v595
        %v1175 = vunpack.c.h.b16 %v595
        %v1176 = vunpack.c.l.b16 %v596
        %v1177 = vunpack.c.h.b16 %v596
        %v1178 = vunpack.c.l.b16 %v597
        %v1179 = vunpack.c.h.b16 %v597
        %v1180 = vunpack.c.l.b16 %v598
        %v1181 = vunpack.c.h.b16 %v598
        %v1182 = vunpack.c.l.b16 %v599
        %v1183 = vunpack.c.h.b16 %v599
        %v1184 = vunpack.c.l.b16 %v600
        %v1185 = vunpack.c.h.b16 %v600
        %v1186 = vunpack.c.l.b16 %v601
        %v1187 = vunpack.c.h.b16 %v601
        %v1188 = vunpack.c.l.b16 %v602
        %v1189 = vunpack.c.h.b16 %v602
        %v1190 = vunpack.c.l.b16 %v603
        %v1191 = vunpack.c.h.b16 %v603
        %v1192 = vunpack.c.l.b16 %v604
        %v1193 = vunpack.c.h.b16 %v604
        %v1194 = vunpack.c.l.b16 %v605
        %v1195 = vunpack.c.h.b16 %v605
        %v1196 = vunpack.c.l.b16 %v606
        %v1197 = vunpack.c.h.b16 %v606
        %v1198 = vunpack.c.l.b16 %v607
        %v1199 = vunpack.c.h.b16 %v607
        %v1200 = vunpack.c.l.b16 %v608
        %v1201 = vunpack.c.h.b16 %v608
        %v1202 = vunpack.c.l.b16 %v609
        %v1203 = vunpack.c.h.b16 %v609
        %v1204 = vunpack.c.l.b16 %v610
        %v1205 = vunpack.c.h.b16 %v610
        %v1206 = vunpack.c.l.b16 %v611
        %v1207 = vunpack.c.h.b16 %v611
        %v1208 = vunpack.c.l.b16 %v612
        %v1209 = vunpack.c.h.b16 %v612
        %v1210 = vunpack.c.l.b16 %v613
        %v1211 = vunpack.c.h.b16 %v613
        %v1212 = vunpack.c.l.b16 %v614
        %v1213 = vunpack.c.h.b16 %v614
        %v1214 = vunpack.c.l.b16 %v615
        %v1215 = vunpack.c.h.b16 %v615
        %v1216 = vunpack.c.l.b16 %v616
        %v1217 = vunpack.c.h.b16 %v616
        %v1218 = vunpack.c.l.b16 %v617
        %v1219 = vunpack.c.h.b16 %v617
        %v1220 = vunpack.c.l.b16 %v618
        %v1221 = vunpack.c.h.b16 %v618
        %v1222 = vunpack.c.l.b16 %v619
        %v1223 = vunpack.c.h.b16 %v619
        %v1224 = vunpack.c.l.b16 %v620
        %v1225 = vunpack.c.h.b16 %v620
        %v1226 = vunpack.c.l.b16 %v621
        %v1227 = vunpack.c.h.b16 %v621
        %v1228 = vunpack.c.l.b16 %v622
        %v1229 = vunpack.c.h.b16 %v622
        %v1230 = vunpack.c.l.b16 %v623
        %v1231 = vunpack.c.h.b16 %v623
        %v1232 = vunpack.c.l.b16 %v624
        %v1233 = vunpack.c.h.b16 %v624
        %v1234 = vunpack.c.l.b16 %v625
        %v1235 = vunpack.c.h.b16 %v625
        %v1236 = vpack.c.b16 %v848, %v844
        %v1237 = vpack.c.b16 %v849, %v845
        %v1238 = vpack.c.b16 %v850, %v846
        %v1239 = vpack.c.b16 %v851, %v847
        %v1240 = vpack.c.b16 %v856, %v852
        %v1241 = vpack.c.b16 %v857, %v853
        %v1242 = vpack.c.b16 %v858, %v854
        %v1243 = vpack.c.b16 %v859, %v855
        %v1244 = vpack.c.b16 %v864, %v860
        %v1245 = vpack.c.b16 %v865, %v861
        %v1246 = vpack.c.b16 %v866, %v862
        %v1247 = vpack.c.b16 %v867, %v863
        %v1248 = vpack.c.b16 %v872, %v868
        %v1249 = vpack.c.b16 %v873, %v869
        %v1250 = vpack.c.b16 %v874, %v870
        %v1251 = vpack.c.b16 %v875, %v871
        %v1252 = vpack.c.b16 %v880, %v876
        %v1253 = vpack.c.b16 %v881, %v877
        %v1254 = vpack.c.b16 %v882, %v878
        %v1255 = vpack.c.b16 %v883, %v879
        %v1256 = vpack.c.b16 %v888, %v884
        %v1257 = vpack.c.b16 %v889, %v885
        %v1258 = vpack.c.b16 %v890, %v886
        %v1259 = vpack.c.b16 %v891, %v887
        %v1260 = vpack.c.b16 %v896, %v892
        %v1261 = vpack.c.b16 %v897, %v893
        %v1262 = vpack.c.b16 %v898, %v894
        %v1263 = vpack.c.b16 %v899, %v895
        %v1264 = vpack.c.b16 %v904, %v900
        %v1265 = vpack.c.b16 %v905, %v901
        %v1266 = vpack.c.b16 %v906, %v902
        %v1267 = vpack.c.b16 %v907, %v903
        %v1268 = vpack.c.b16 %v912, %v908
        %v1269 = vpack.c.b16 %v913, %v909
        %v1270 = vpack.c.b16 %v914, %v910
        %v1271 = vpack.c.b16 %v915, %v911
        %v1272 = vpack.c.b16 %v920, %v916
        %v1273 = vpack.c.b16 %v921, %v917
        %v1274 = vpack.c.b16 %v922, %v918
        %v1275 = vpack.c.b16 %v923, %v919
        %v1276 = vpack.c.b16 %v928, %v924
        %v1277 = vpack.c.b16 %v929, %v925
        %v1278 = vpack.c.b16 %v930, %v926
        %v1279 = vpack.c.b16 %v931, %v927
        %v1280 = vpack.c.b16 %v936, %v932
        %v1281 = vpack.c.b16 %v937, %v933
        %v1282 = vpack.c.b16 %v938, %v934
        %v1283 = vpack.c.b16 %v939, %v935
        %v1284 = vpack.c.b16 %v944, %v940
        %v1285 = vpack.c.b16 %v945, %v941
        %v1286 = vpack.c.b16 %v946, %v942
        %v1287 = vpack.c.b16 %v947, %v943
        %v1288 = vpack.c.b16 %v952, %v948
        %v1289 = vpack.c.b16 %v953, %v949
        %v1290 = vpack.c.b16 %v954, %v950
        %v1291 = vpack.c.b16 %v955, %v951
        %v1292 = vpack.c.b16 %v960, %v956
        %v1293 = vpack.c.b16 %v961, %v957
        %v1294 = vpack.c.b16 %v962, %v958
        %v1295 = vpack.c.b16 %v963, %v959
        %v1296 = vpack.c.b16 %v968, %v964
        %v1297 = vpack.c.b16 %v969, %v965
        %v1298 = vpack.c.b16 %v970, %v966
        %v1299 = vpack.c.b16 %v971, %v967
        %v1300 = vpack.c.b16 %v976, %v972
        %v1301 = vpack.c.b16 %v977, %v973
        %v1302 = vpack.c.b16 %v978, %v974
        %v1303 = vpack.c.b16 %v979, %v975
        %v1304 = vpack.c.b16 %v984, %v980
        %v1305 = vpack.c.b16 %v985, %v981
        %v1306 = vpack.c.b16 %v986, %v982
        %v1307 = vpack.c.b16 %v987, %v983
        %v1308 = vpack.c.b16 %v992, %v988
        %v1309 = vpack.c.b16 %v993, %v989
        %v1310 = vpack.c.b16 %v994, %v990
        %v1311 = vpack.c.b16 %v995, %v991
        %v1312 = vpack.c.b16 %v1000, %v996
        %v1313 = vpack.c.b16 %v1001, %v997
        %v1314 = vpack.c.b16 %v1002, %v998
        %v1315 = vpack.c.b16 %v1003, %v999
        %v1316 = vpack.c.b16 %v1008, %v1004
        %v1317 = vpack.c.b16 %v1009, %v1005
        %v1318 = vpack.c.b16 %v1010, %v1006
        %v1319 = vpack.c.b16 %v1011, %v1007
        %v1320 = vpack.c.b16 %v1016, %v1012
        %v1321 = vpack.c.b16 %v1017, %v1013
        %v1322 = vpack.c.b16 %v1018, %v1014
        %v1323 = vpack.c.b16 %v1019, %v1015
        %v1324 = vpack.c.b16 %v1024, %v1020
        %v1325 = vpack.c.b16 %v1025, %v1021
        %v1326 = vpack.c.b16 %v1026, %v1022
        %v1327 = vpack.c.b16 %v1027, %v1023
        %v1328 = vpack.c.b16 %v1032, %v1028
        %v1329 = vpack.c.b16 %v1033, %v1029
        %v1330 = vpack.c.b16 %v1034, %v1030
        %v1331 = vpack.c.b16 %v1035, %v1031
        %v1332 = vpack.c.b16 %v1040, %v1036
        %v1333 = vpack.c.b16 %v1041, %v1037
        %v1334 = vpack.c.b16 %v1042, %v1038
        %v1335 = vpack.c.b16 %v1043, %v1039
        %v1336 = vpack.c.b16 %v1048, %v1044
        %v1337 = vpack.c.b16 %v1049, %v1045
        %v1338 = vpack.c.b16 %v1050, %v1046
        %v1339 = vpack.c.b16 %v1051, %v1047
        %v1340 = vpack.c.b16 %v1056, %v1052
        %v1341 = vpack.c.b16 %v1057, %v1053
        %v1342 = vpack.c.b16 %v1058, %v1054
        %v1343 = vpack.c.b16 %v1059, %v1055
        %v1344 = vpack.c.b16 %v1064, %v1060
        %v1345 = vpack.c.b16 %v1065, %v1061
        %v1346 = vpack.c.b16 %v1066, %v1062
        %v1347 = vpack.c.b16 %v1067, %v1063
        %v1348 = vpack.c.b16 %v1072, %v1068
        %v1349 = vpack.c.b16 %v1073, %v1069
        %v1350 = vpack.c.b16 %v1074, %v1070
        %v1351 = vpack.c.b16 %v1075, %v1071
        %v1352 = vpack.c.b16 %v1080, %v1076
        %v1353 = vpack.c.b16 %v1081, %v1077
        %v1354 = vpack.c.b16 %v1082, %v1078
        %v1355 = vpack.c.b16 %v1083, %v1079
        %v1356 = vpack.c.b16 %v1088, %v1084
        %v1357 = vpack.c.b16 %v1089, %v1085
        %v1358 = vpack.c.b16 %v1090, %v1086
        %v1359 = vpack.c.b16 %v1091, %v1087
        %v1360 = vpack.c.b16 %v1096, %v1092
        %v1361 = vpack.c.b16 %v1097, %v1093
        %v1362 = vpack.c.b16 %v1098, %v1094
        %v1363 = vpack.c.b16 %v1099, %v1095
        %v1364 = vpack.c.b16 %v1104, %v1100
        %v1365 = vpack.c.b16 %v1105, %v1101
        %v1366 = vpack.c.b16 %v1106, %v1102
        %v1367 = vpack.c.b16 %v1107, %v1103
        %v1368 = vpack.c.b16 %v1112, %v1108
        %v1369 = vpack.c.b16 %v1113, %v1109
        %v1370 = vpack.c.b16 %v1114, %v1110
        %v1371 = vpack.c.b16 %v1115, %v1111
        %v1372 = vpack.c.b16 %v1120, %v1116
        %v1373 = vpack.c.b16 %v1121, %v1117
        %v1374 = vpack.c.b16 %v1122, %v1118
        %v1375 = vpack.c.b16 %v1123, %v1119
        %v1376 = vpack.c.b16 %v1128, %v1124
        %v1377 = vpack.c.b16 %v1129, %v1125
        %v1378 = vpack.c.b16 %v1130, %v1126
        %v1379 = vpack.c.b16 %v1131, %v1127
        %v1380 = vpack.c.b16 %v1136, %v1132
        %v1381 = vpack.c.b16 %v1137, %v1133
        %v1382 = vpack.c.b16 %v1138, %v1134
        %v1383 = vpack.c.b16 %v1139, %v1135
        %v1384 = vpack.c.b16 %v1144, %v1140
        %v1385 = vpack.c.b16 %v1145, %v1141
        %v1386 = vpack.c.b16 %v1146, %v1142
        %v1387 = vpack.c.b16 %v1147, %v1143
        %v1388 = vpack.c.b16 %v1152, %v1148
        %v1389 = vpack.c.b16 %v1153, %v1149
        %v1390 = vpack.c.b16 %v1154, %v1150
        %v1391 = vpack.c.b16 %v1155, %v1151
        %v1392 = vpack.c.b16 %v1160, %v1156
        %v1393 = vpack.c.b16 %v1161, %v1157
        %v1394 = vpack.c.b16 %v1162, %v1158
        %v1395 = vpack.c.b16 %v1163, %v1159
        %v1396 = vpack.c.b16 %v1168, %v1164
        %v1397 = vpack.c.b16 %v1169, %v1165
        %v1398 = vpack.c.b16 %v1170, %v1166
        %v1399 = vpack.c.b16 %v1171, %v1167
        %v1400 = vpack.c.b16 %v1176, %v1172
        %v1401 = vpack.c.b16 %v1177, %v1173
        %v1402 = vpack.c.b16 %v1178, %v1174
        %v1403 = vpack.c.b16 %v1179, %v1175
        %v1404 = vpack.c.b16 %v1184, %v1180
        %v1405 = vpack.c.b16 %v1185, %v1181
        %v1406 = vpack.c.b16 %v1186, %v1182
        %v1407 = vpack.c.b16 %v1187, %v1183
        %v1408 = vpack.c.b16 %v1192, %v1188
        %v1409 = vpack.c.b16 %v1193, %v1189
        %v1410 = vpack.c.b16 %v1194, %v1190
        %v1411 = vpack.c.b16 %v1195, %v1191
        %v1412 = vpack.c.b16 %v1200, %v1196
        %v1413 = vpack.c.b16 %v1201, %v1197
        %v1414 = vpack.c.b16 %v1202, %v1198
        %v1415 = vpack.c.b16 %v1203, %v1199
        %v1416 = vpack.c.b16 %v1208, %v1204
        %v1417 = vpack.c.b16 %v1209, %v1205
        %v1418 = vpack.c.b16 %v1210, %v1206
        %v1419 = vpack.c.b16 %v1211, %v1207
        %v1420 = vpack.c.b16 %v1216, %v1212
        %v1421 = vpack.c.b16 %v1217, %v1213
        %v1422 = vpack.c.b16 %v1218, %v1214
        %v1423 = vpack.c.b16 %v1219, %v1215
        %v1424 = vpack.c.b16 %v1224, %v1220
        %v1425 = vpack.c.b16 %v1225, %v1221
        %v1426 = vpack.c.b16 %v1226, %v1222
        %v1427 = vpack.c.b16 %v1227, %v1223
        %v1428 = vpack.c.b16 %v1232, %v1228
        %v1429 = vpack.c.b16 %v1233, %v1229
        %v1430 = vpack.c.b16 %v1234, %v1230
        %v1431 = vpack.c.b16 %v1235, %v1231
        %vm1628 = vcmask 130048
        %v1630 = vsel %vm1628, %v429, 0
        %1632 = vmatprep.subr.bf16.mxu0 %v1237
        %1633 = vmatpush1.bf16.msra.mxu0 %v1236
        %1634 = vmatprep.subr.bf16.mxu0 %v1241
        %1635 = vmatpush1.bf16.msra.mxu0 %v1240
        %1636 = vmatprep.subr.bf16.mxu0 %v1245
        %1637 = vmatpush1.bf16.msra.mxu0 %v1244
        %1638 = vmatprep.subr.bf16.mxu0 %v1249
        %1639 = vmatpush1.bf16.msra.mxu0 %v1248
        %1640 = vmatprep.subr.bf16.mxu0 %v1253
        %1641 = vmatpush1.bf16.msra.mxu0 %v1252
        %1642 = vmatprep.subr.bf16.mxu0 %v1257
        %1643 = vmatpush1.bf16.msra.mxu0 %v1256
        %1644 = vmatprep.subr.bf16.mxu0 %v1261
        %1645 = vmatpush1.bf16.msra.mxu0 %v1260
        %1646 = vmatprep.subr.bf16.mxu0 %v1265
        %1647 = vmatpush1.bf16.msra.mxu0 %v1264
        %1648 = vmatprep.subr.bf16.mxu0 %v1269
        %1649 = vmatpush1.bf16.msra.mxu0 %v1268
        %1650 = vmatprep.subr.bf16.mxu0 %v1273
        %1651 = vmatpush1.bf16.msra.mxu0 %v1272
        %1652 = vmatprep.subr.bf16.mxu0 %v1277
        %1653 = vmatpush1.bf16.msra.mxu0 %v1276
        %1654 = vmatprep.subr.bf16.mxu0 %v1281
        %1655 = vmatpush1.bf16.msra.mxu0 %v1280
        %1656 = vmatprep.subr.bf16.mxu0 %v1285
        %1657 = vmatpush1.bf16.msra.mxu0 %v1284
        %1658 = vmatprep.subr.bf16.mxu0 %v1289
        %1659 = vmatpush1.bf16.msra.mxu0 %v1288
        %1660 = vmatprep.subr.bf16.mxu0 %v1293
        %1661 = vmatpush1.bf16.msra.mxu0 %v1292
        %1662 = vmatprep.subr.bf16.mxu0 %v1297
        %1663 = vmatpush1.bf16.msra.mxu0 %v1296
        %1664 = vmatprep.mubr.bf16.mxu0 %v424
        %1665 = vmatmul.mubr.bf16.gmra.mrb[0].mxu0 %v423
        %v1666 = vpop.f32.mrb[0].mxu0
        %v1667 = vadd.f32 %v631, %v1666
        %v1668 = vpop.f32.mrb[0].mxu0
        %v1669 = vadd.f32 %v635, %v1668
        %v1670 = vpop.f32.mrb[0].mxu0
        %v1671 = vpop.f32.mrb[0].mxu0
        %1672 = vdwg.mxu0
        %1673 = vmatprep.subr.bf16.mxu0 %v1301
        %1674 = vmatpush1.bf16.msra.mxu0 %v1300
        %1675 = vmatprep.subr.bf16.mxu0 %v1305
        %1676 = vmatpush1.bf16.msra.mxu0 %v1304
        %1677 = vmatprep.subr.bf16.mxu0 %v1309
        %1678 = vmatpush1.bf16.msra.mxu0 %v1308
        %1679 = vmatprep.subr.bf16.mxu0 %v1313
        %1680 = vmatpush1.bf16.msra.mxu0 %v1312
        %1681 = vmatprep.subr.bf16.mxu0 %v1317
        %1682 = vmatpush1.bf16.msra.mxu0 %v1316
        %1683 = vmatprep.subr.bf16.mxu0 %v1321
        %1684 = vmatpush1.bf16.msra.mxu0 %v1320
        %1685 = vmatprep.subr.bf16.mxu0 %v1325
        %1686 = vmatpush1.bf16.msra.mxu0 %v1324
        %1687 = vmatprep.subr.bf16.mxu0 %v1329
        %1688 = vmatpush1.bf16.msra.mxu0 %v1328
        %1689 = vmatprep.subr.bf16.mxu0 %v1333
        %1690 = vmatpush1.bf16.msra.mxu0 %v1332
        %1691 = vmatprep.subr.bf16.mxu0 %v1337
        %1692 = vmatpush1.bf16.msra.mxu0 %v1336
        %1693 = vmatprep.subr.bf16.mxu0 %v1341
        %1694 = vmatpush1.bf16.msra.mxu0 %v1340
        %1695 = vmatprep.subr.bf16.mxu0 %v1345
        %1696 = vmatpush1.bf16.msra.mxu0 %v1344
        %1697 = vmatprep.subr.bf16.mxu0 %v1349
        %1698 = vmatpush1.bf16.msra.mxu0 %v1348
        %1699 = vmatprep.subr.bf16.mxu0 %v1353
        %1700 = vmatpush1.bf16.msra.mxu0 %v1352
        %1701 = vmatprep.subr.bf16.mxu0 %v1357
        %1702 = vmatpush1.bf16.msra.mxu0 %v1356
        %1703 = vmatprep.subr.bf16.mxu0 %v1361
        %1704 = vmatpush1.bf16.msra.mxu0 %v1360
        %1705 = vmatprep.mubr.bf16.mxu0 %v426
        %1706 = vmatmul.mubr.bf16.gmra.mrb[0].mxu0 %v425
        %v1707 = vpop.f32.mrb[0].mxu0
        %v1708 = vadd.f32 %v1667, %v1707
        %v1709 = vpop.f32.mrb[0].mxu0
        %v1710 = vadd.f32 %v1669, %v1709
        %v1711 = vpop.f32.mrb[0].mxu0
        %v1712 = vpop.f32.mrb[0].mxu0
        %1713 = vdwg.mxu0
        %1714 = vmatprep.subr.bf16.mxu0 %v1365
        %1715 = vmatpush1.bf16.msra.mxu0 %v1364
        %1716 = vmatprep.subr.bf16.mxu0 %v1369
        %1717 = vmatpush1.bf16.msra.mxu0 %v1368
        %1718 = vmatprep.subr.bf16.mxu0 %v1373
        %1719 = vmatpush1.bf16.msra.mxu0 %v1372
        %1720 = vmatprep.subr.bf16.mxu0 %v1377
        %1721 = vmatpush1.bf16.msra.mxu0 %v1376
        %1722 = vmatprep.subr.bf16.mxu0 %v1381
        %1723 = vmatpush1.bf16.msra.mxu0 %v1380
        %1724 = vmatprep.subr.bf16.mxu0 %v1385
        %1725 = vmatpush1.bf16.msra.mxu0 %v1384
        %1726 = vmatprep.subr.bf16.mxu0 %v1389
        %1727 = vmatpush1.bf16.msra.mxu0 %v1388
        %1728 = vmatprep.subr.bf16.mxu0 %v1393
        %1729 = vmatpush1.bf16.msra.mxu0 %v1392
        %1730 = vmatprep.subr.bf16.mxu0 %v1397
        %1731 = vmatpush1.bf16.msra.mxu0 %v1396
        %1732 = vmatprep.subr.bf16.mxu0 %v1401
        %1733 = vmatpush1.bf16.msra.mxu0 %v1400
        %1734 = vmatprep.subr.bf16.mxu0 %v1405
        %1735 = vmatpush1.bf16.msra.mxu0 %v1404
        %1736 = vmatprep.subr.bf16.mxu0 %v1409
        %1737 = vmatpush1.bf16.msra.mxu0 %v1408
        %1738 = vmatprep.subr.bf16.mxu0 %v1413
        %1739 = vmatpush1.bf16.msra.mxu0 %v1412
        %1740 = vmatprep.subr.bf16.mxu0 %v1417
        %1741 = vmatpush1.bf16.msra.mxu0 %v1416
        %1742 = vmatprep.subr.bf16.mxu0 %v1421
        %1743 = vmatpush1.bf16.msra.mxu0 %v1420
        %1744 = vmatprep.subr.bf16.mxu0 %v1425
        %1745 = vmatpush1.bf16.msra.mxu0 %v1424
        %1746 = vmatprep.mubr.bf16.mxu0 %v428
        %1747 = vmatmul.mubr.bf16.gmra.mrb[0].mxu0 %v427
        %v1748 = vpop.f32.mrb[0].mxu0
        %v1749 = vadd.f32 %v1708, %v1748
        %v1750 = vpop.f32.mrb[0].mxu0
        %v1751 = vadd.f32 %v1710, %v1750
        %v1752 = vpop.f32.mrb[0].mxu0
        %v1753 = vpop.f32.mrb[0].mxu0
        %1754 = vdwg.mxu0
        %1755 = vmatprep.subr.bf16.mxu0 %v1429
        %1756 = vmatpush1.bf16.msra.mxu0 %v1428
        %1757 = vmatprep.subr.bf16.mxu0 0
        %1758 = vmatpush1.bf16.msra.mxu0 0
        %1759 = vmatprep.subr.bf16.mxu0 0
        %1760 = vmatpush1.bf16.msra.mxu0 0
        %1761 = vmatprep.subr.bf16.mxu0 0
        %1762 = vmatpush1.bf16.msra.mxu0 0
        %1763 = vmatprep.subr.bf16.mxu0 0
        %1764 = vmatpush1.bf16.msra.mxu0 0
        %1765 = vmatprep.subr.bf16.mxu0 0
        %1766 = vmatpush1.bf16.msra.mxu0 0
        %1767 = vmatprep.subr.bf16.mxu0 0
        %1768 = vmatpush1.bf16.msra.mxu0 0
        %1769 = vmatprep.subr.bf16.mxu0 0
        %1770 = vmatpush1.bf16.msra.mxu0 0
        %1771 = vmatprep.subr.bf16.mxu0 0
        %1772 = vmatpush1.bf16.msra.mxu0 0
        %1773 = vmatprep.subr.bf16.mxu0 0
        %1774 = vmatpush1.bf16.msra.mxu0 0
        %1775 = vmatprep.subr.bf16.mxu0 0
        %1776 = vmatpush1.bf16.msra.mxu0 0
        %1777 = vmatprep.subr.bf16.mxu0 0
        %1778 = vmatpush1.bf16.msra.mxu0 0
        %1779 = vmatprep.subr.bf16.mxu0 0
        %1780 = vmatpush1.bf16.msra.mxu0 0
        %1781 = vmatprep.subr.bf16.mxu0 0
        %1782 = vmatpush1.bf16.msra.mxu0 0
        %1783 = vmatprep.subr.bf16.mxu0 0
        %1784 = vmatpush1.bf16.msra.mxu0 0
        %1785 = vmatprep.subr.bf16.mxu0 0
        %1786 = vmatpush1.bf16.msra.mxu0 0
        %1787 = vmatprep.mubr.bf16.mxu0 0
        %1788 = vmatmul.mubr.bf16.gmra.mrb[0].mxu0 %v1630
        %v1789 = vpop.f32.mrb[0].mxu0
        %v1790 = vadd.f32 %v1749, %v1789
        %v1791 = vpop.f32.mrb[0].mxu0
        %v1792 = vadd.f32 %v1751, %v1791
        %v1793 = vpop.f32.mrb[0].mxu0
        %v1794 = vpop.f32.mrb[0].mxu0
        %1795 = vdwg.mxu0
        %1796 = vmatprep.subr.bf16.mxu0 %v1239
        %1797 = vmatpush1.bf16.msra.mxu0 %v1238
        %1798 = vmatprep.subr.bf16.mxu0 %v1243
        %1799 = vmatpush1.bf16.msra.mxu0 %v1242
        %1800 = vmatprep.subr.bf16.mxu0 %v1247
        %1801 = vmatpush1.bf16.msra.mxu0 %v1246
        %1802 = vmatprep.subr.bf16.mxu0 %v1251
        %1803 = vmatpush1.bf16.msra.mxu0 %v1250
        %1804 = vmatprep.subr.bf16.mxu0 %v1255
        %1805 = vmatpush1.bf16.msra.mxu0 %v1254
        %1806 = vmatprep.subr.bf16.mxu0 %v1259
        %1807 = vmatpush1.bf16.msra.mxu0 %v1258
        %1808 = vmatprep.subr.bf16.mxu0 %v1263
        %1809 = vmatpush1.bf16.msra.mxu0 %v1262
        %1810 = vmatprep.subr.bf16.mxu0 %v1267
        %1811 = vmatpush1.bf16.msra.mxu0 %v1266
        %1812 = vmatprep.subr.bf16.mxu0 %v1271
        %1813 = vmatpush1.bf16.msra.mxu0 %v1270
        %1814 = vmatprep.subr.bf16.mxu0 %v1275
        %1815 = vmatpush1.bf16.msra.mxu0 %v1274
        %1816 = vmatprep.subr.bf16.mxu0 %v1279
        %1817 = vmatpush1.bf16.msra.mxu0 %v1278
        %1818 = vmatprep.subr.bf16.mxu0 %v1283
        %1819 = vmatpush1.bf16.msra.mxu0 %v1282
        %1820 = vmatprep.subr.bf16.mxu0 %v1287
        %1821 = vmatpush1.bf16.msra.mxu0 %v1286
        %1822 = vmatprep.subr.bf16.mxu0 %v1291
        %1823 = vmatpush1.bf16.msra.mxu0 %v1290
        %1824 = vmatprep.subr.bf16.mxu0 %v1295
        %1825 = vmatpush1.bf16.msra.mxu0 %v1294
        %1826 = vmatprep.subr.bf16.mxu0 %v1299
        %1827 = vmatpush1.bf16.msra.mxu0 %v1298
        %1828 = vmatprep.mubr.bf16.mxu0 %v424
        %1829 = vmatmul.mubr.bf16.gmra.mrb[0].mxu0 %v423
        %v1830 = vpop.f32.mrb[0].mxu0
        %v1831 = vadd.f32 %v639, %v1830
        %v1832 = vpop.f32.mrb[0].mxu0
        %v1833 = vadd.f32 %v643, %v1832
        %v1834 = vpop.f32.mrb[0].mxu0
        %v1835 = vpop.f32.mrb[0].mxu0
        %1836 = vdwg.mxu0
        %1837 = vmatprep.subr.bf16.mxu0 %v1303
        %1838 = vmatpush1.bf16.msra.mxu0 %v1302
        %1839 = vmatprep.subr.bf16.mxu0 %v1307
        %1840 = vmatpush1.bf16.msra.mxu0 %v1306
        %1841 = vmatprep.subr.bf16.mxu0 %v1311
        %1842 = vmatpush1.bf16.msra.mxu0 %v1310
        %1843 = vmatprep.subr.bf16.mxu0 %v1315
        %1844 = vmatpush1.bf16.msra.mxu0 %v1314
        %1845 = vmatprep.subr.bf16.mxu0 %v1319
        %1846 = vmatpush1.bf16.msra.mxu0 %v1318
        %1847 = vmatprep.subr.bf16.mxu0 %v1323
        %1848 = vmatpush1.bf16.msra.mxu0 %v1322
        %1849 = vmatprep.subr.bf16.mxu0 %v1327
        %1850 = vmatpush1.bf16.msra.mxu0 %v1326
        %1851 = vmatprep.subr.bf16.mxu0 %v1331
        %1852 = vmatpush1.bf16.msra.mxu0 %v1330
        %1853 = vmatprep.subr.bf16.mxu0 %v1335
        %1854 = vmatpush1.bf16.msra.mxu0 %v1334
        %1855 = vmatprep.subr.bf16.mxu0 %v1339
        %1856 = vmatpush1.bf16.msra.mxu0 %v1338
        %1857 = vmatprep.subr.bf16.mxu0 %v1343
        %1858 = vmatpush1.bf16.msra.mxu0 %v1342
        %1859 = vmatprep.subr.bf16.mxu0 %v1347
        %1860 = vmatpush1.bf16.msra.mxu0 %v1346
        %1861 = vmatprep.subr.bf16.mxu0 %v1351
        %1862 = vmatpush1.bf16.msra.mxu0 %v1350
        %1863 = vmatprep.subr.bf16.mxu0 %v1355
        %1864 = vmatpush1.bf16.msra.mxu0 %v1354
        %1865 = vmatprep.subr.bf16.mxu0 %v1359
        %1866 = vmatpush1.bf16.msra.mxu0 %v1358
        %1867 = vmatprep.subr.bf16.mxu0 %v1363
        %1868 = vmatpush1.bf16.msra.mxu0 %v1362
        %1869 = vmatprep.mubr.bf16.mxu0 %v426
        %1870 = vmatmul.mubr.bf16.gmra.mrb[0].mxu0 %v425
        %v1871 = vpop.f32.mrb[0].mxu0
        %v1872 = vadd.f32 %v1831, %v1871
        %v1873 = vpop.f32.mrb[0].mxu0
        %v1874 = vadd.f32 %v1833, %v1873
        %v1875 = vpop.f32.mrb[0].mxu0
        %v1876 = vpop.f32.mrb[0].mxu0
        %1877 = vdwg.mxu0
        %1878 = vmatprep.subr.bf16.mxu0 %v1367
        %1879 = vmatpush1.bf16.msra.mxu0 %v1366
        %1880 = vmatprep.subr.bf16.mxu0 %v1371
        %1881 = vmatpush1.bf16.msra.mxu0 %v1370
        %1882 = vmatprep.subr.bf16.mxu0 %v1375
        %1883 = vmatpush1.bf16.msra.mxu0 %v1374
        %1884 = vmatprep.subr.bf16.mxu0 %v1379
        %1885 = vmatpush1.bf16.msra.mxu0 %v1378
        %1886 = vmatprep.subr.bf16.mxu0 %v1383
        %1887 = vmatpush1.bf16.msra.mxu0 %v1382
        %1888 = vmatprep.subr.bf16.mxu0 %v1387
        %1889 = vmatpush1.bf16.msra.mxu0 %v1386
        %1890 = vmatprep.subr.bf16.mxu0 %v1391
        %1891 = vmatpush1.bf16.msra.mxu0 %v1390
        %1892 = vmatprep.subr.bf16.mxu0 %v1395
        %1893 = vmatpush1.bf16.msra.mxu0 %v1394
        %1894 = vmatprep.subr.bf16.mxu0 %v1399
        %1895 = vmatpush1.bf16.msra.mxu0 %v1398
        %1896 = vmatprep.subr.bf16.mxu0 %v1403
        %1897 = vmatpush1.bf16.msra.mxu0 %v1402
        %1898 = vmatprep.subr.bf16.mxu0 %v1407
        %1899 = vmatpush1.bf16.msra.mxu0 %v1406
        %1900 = vmatprep.subr.bf16.mxu0 %v1411
        %1901 = vmatpush1.bf16.msra.mxu0 %v1410
        %1902 = vmatprep.subr.bf16.mxu0 %v1415
        %1903 = vmatpush1.bf16.msra.mxu0 %v1414
        %1904 = vmatprep.subr.bf16.mxu0 %v1419
        %1905 = vmatpush1.bf16.msra.mxu0 %v1418
        %1906 = vmatprep.subr.bf16.mxu0 %v1423
        %1907 = vmatpush1.bf16.msra.mxu0 %v1422
        %1908 = vmatprep.subr.bf16.mxu0 %v1427
        %1909 = vmatpush1.bf16.msra.mxu0 %v1426
        %1910 = vmatprep.mubr.bf16.mxu0 %v428
        %1911 = vmatmul.mubr.bf16.gmra.mrb[0].mxu0 %v427
        %v1912 = vpop.f32.mrb[0].mxu0
        %v1913 = vadd.f32 %v1872, %v1912
        %v1914 = vpop.f32.mrb[0].mxu0
        %v1915 = vadd.f32 %v1874, %v1914
        %v1916 = vpop.f32.mrb[0].mxu0
        %v1917 = vpop.f32.mrb[0].mxu0
        %1918 = vdwg.mxu0
        %1919 = vmatprep.subr.bf16.mxu0 %v1431
        %1920 = vmatpush1.bf16.msra.mxu0 %v1430
        %1921 = vmatprep.subr.bf16.mxu0 0
        %1922 = vmatpush1.bf16.msra.mxu0 0
        %1923 = vmatprep.subr.bf16.mxu0 0
        %1924 = vmatpush1.bf16.msra.mxu0 0
        %1925 = vmatprep.subr.bf16.mxu0 0
        %1926 = vmatpush1.bf16.msra.mxu0 0
        %1927 = vmatprep.subr.bf16.mxu0 0
        %1928 = vmatpush1.bf16.msra.mxu0 0
        %1929 = vmatprep.subr.bf16.mxu0 0
        %1930 = vmatpush1.bf16.msra.mxu0 0
        %1931 = vmatprep.subr.bf16.mxu0 0
        %1932 = vmatpush1.bf16.msra.mxu0 0
        %1933 = vmatprep.subr.bf16.mxu0 0
        %1934 = vmatpush1.bf16.msra.mxu0 0
        %1935 = vmatprep.subr.bf16.mxu0 0
        %1936 = vmatpush1.bf16.msra.mxu0 0
        %1937 = vmatprep.subr.bf16.mxu0 0
        %1938 = vmatpush1.bf16.msra.mxu0 0
        %1939 = vmatprep.subr.bf16.mxu0 0
        %1940 = vmatpush1.bf16.msra.mxu0 0
        %1941 = vmatprep.subr.bf16.mxu0 0
        %1942 = vmatpush1.bf16.msra.mxu0 0
        %1943 = vmatprep.subr.bf16.mxu0 0
        %1944 = vmatpush1.bf16.msra.mxu0 0
        %1945 = vmatprep.subr.bf16.mxu0 0
        %1946 = vmatpush1.bf16.msra.mxu0 0
        %1947 = vmatprep.subr.bf16.mxu0 0
        %1948 = vmatpush1.bf16.msra.mxu0 0
        %1949 = vmatprep.subr.bf16.mxu0 0
        %1950 = vmatpush1.bf16.msra.mxu0 0
        %1951 = vmatprep.mubr.bf16.mxu0 0
        %1952 = vmatmul.mubr.bf16.gmra.mrb[0].mxu0 %v1630
        %v1953 = vpop.f32.mrb[0].mxu0
        %v1954 = vadd.f32 %v1913, %v1953
        %v1955 = vpop.f32.mrb[0].mxu0
        %v1956 = vadd.f32 %v1915, %v1955
        %v1957 = vpop.f32.mrb[0].mxu0
        %v1958 = vpop.f32.mrb[0].mxu0
        %1959 = vdwg.mxu0
        %v1960 = vmax.f32 %v1790, 0.0
        %v1961 = vmax.f32 %v1792, 0.0
        %v1962 = vmax.f32 %v1954, 0.0
        %v1963 = vmax.f32 %v1956, 0.0
        %v1964 = vpack.c.bf16 %v1960, %v1960
        %v1965 = vpack.c.bf16 %v1961, %v1961
        %v1966 = vpack.c.bf16 %v1962, %v1962
        %v1967 = vpack.c.bf16 %v1963, %v1963
        %v1968 = vld [vmem:[%s4] sm:$0xff]
        %v1969 = vld [vmem:[%s4 + $0x8] sm:$0xff]
        %v1970 = vld [vmem:[%s4 + $0x10] sm:$0xff]
        %v1971 = vld [vmem:[%s4 + $0x18] sm:$0xff]
        %v1972 = vld [vmem:[%s4 + $0x20] sm:$0xff]
        %v1973 = vld [vmem:[%s4 + $0x28] sm:$0xff]
        %v1974 = vld [vmem:[%s4 + $0x30] sm:$0xff]
        %v1975 = vld [vmem:[%s4 + $0x38] sm:$0xff]
        %v1976 = vld [vmem:[%s4 + $0x40] sm:$0xff]
        %v1977 = vld [vmem:[%s4 + $0x48] sm:$0xff]
        %v1978 = vld [vmem:[%s4 + $0x50] sm:$0xff]
        %v1979 = vld [vmem:[%s4 + $0x58] sm:$0xff]
        %v1980 = vld [vmem:[%s4 + $0x60] sm:$0xff]
        %v1981 = vld [vmem:[%s4 + $0x68] sm:$0xff]
        %v1982 = vld [vmem:[%s4 + $0x70] sm:$0xff]
        %v1983 = vld [vmem:[%s4 + $0x78] sm:$0xff]
        %v1984 = vld [vmem:[%s4 + $0x80] sm:$0xff]
        %v1985 = vld [vmem:[%s4 + $0x88] sm:$0xff]
        %v1986 = vld [vmem:[%s4 + $0x90] sm:$0xff]
        %v1987 = vld [vmem:[%s4 + $0x98] sm:$0xff]
        %v1988 = vld [vmem:[%s4 + $0xa0] sm:$0xff]
        %v1989 = vld [vmem:[%s4 + $0xa8] sm:$0xff]
        %v1990 = vld [vmem:[%s4 + $0xb0] sm:$0xff]
        %v1991 = vld [vmem:[%s4 + $0xb8] sm:$0xff]
        %v1992 = vld [vmem:[%s4 + $0xc0] sm:$0xff]
        %v1993 = vld [vmem:[%s4 + $0xc8] sm:$0xff]
        %v1994 = vld [vmem:[%s4 + $0xd0] sm:$0xff]
        %v1995 = vld [vmem:[%s4 + $0xd8] sm:$0xff]
        %v1996 = vld [vmem:[%s4 + $0xe0] sm:$0xff]
        %v1997 = vld [vmem:[%s4 + $0xe8] sm:$0xff]
        %v1998 = vld [vmem:[%s4 + $0xf0] sm:$0xff]
        %v1999 = vld [vmem:[%s4 + $0xf8] sm:$0xff]
        %v2000 = vld [vmem:[%s4 + $0x100] sm:$0xff]
        %v2001 = vld [vmem:[%s4 + $0x108] sm:$0xff]
        %v2002 = vld [vmem:[%s4 + $0x110] sm:$0xff]
        %v2003 = vld [vmem:[%s4 + $0x118] sm:$0xff]
        %v2004 = vld [vmem:[%s4 + $0x120] sm:$0xff]
        %v2005 = vld [vmem:[%s4 + $0x128] sm:$0xff]
        %v2006 = vld [vmem:[%s4 + $0x130] sm:$0xff]
        %v2007 = vld [vmem:[%s4 + $0x138] sm:$0xff]
        %v2008 = vld [vmem:[%s4 + $0x140] sm:$0xff]
        %v2009 = vld [vmem:[%s4 + $0x148] sm:$0xff]
        %v2010 = vld [vmem:[%s4 + $0x150] sm:$0xff]
        %v2011 = vld [vmem:[%s4 + $0x158] sm:$0xff]
        %v2012 = vld [vmem:[%s4 + $0x160] sm:$0xff]
        %v2013 = vld [vmem:[%s4 + $0x168] sm:$0xff]
        %v2014 = vld [vmem:[%s4 + $0x170] sm:$0xff]
        %v2015 = vld [vmem:[%s4 + $0x178] sm:$0xff]
        %v2016 = vld [vmem:[%s4 + $0x180] sm:$0xff]
        %v2017 = vld [vmem:[%s4 + $0x188] sm:$0xff]
        %v2018 = vld [vmem:[%s4 + $0x190] sm:$0xff]
        %v2019 = vld [vmem:[%s4 + $0x198] sm:$0xff]
        %v2020 = vld [vmem:[%s4 + $0x1a0] sm:$0xff]
        %v2021 = vld [vmem:[%s4 + $0x1a8] sm:$0xff]
        %v2022 = vld [vmem:[%s4 + $0x1b0] sm:$0xff]
        %v2023 = vld [vmem:[%s4 + $0x1b8] sm:$0xff]
        %v2024 = vld [vmem:[%s4 + $0x1c0] sm:$0xff]
        %v2025 = vld [vmem:[%s4 + $0x1c8] sm:$0xff]
        %v2026 = vld [vmem:[%s4 + $0x1d0] sm:$0xff]
        %v2027 = vld [vmem:[%s4 + $0x1d8] sm:$0xff]
        %v2028 = vld [vmem:[%s4 + $0x1e0] sm:$0xff]
        %v2029 = vld [vmem:[%s4 + $0x1e8] sm:$0xff]
        %v2030 = vld [vmem:[%s4 + $0x1f0] sm:$0xff]
        %v2031 = vld [vmem:[%s4 + $0x1f8] sm:$0xff]
        %v2032 = vld [vmem:[%s5] sm:$0x3]
        %v2034 = vlaneseq
        %v2035 = vshrl.u32 %v2034, 7
        %v2036 = vsub.s32 0, %v2035
        %v2037 = vrot.slane %v2032, %v2036
        %v2038 = vlaneseq
        %v2039 = vshrl.u32 %v2038, 7
        %v2040 = vsub.s32 1, %v2039
        %v2041 = vrot.slane %v2032, %v2040
        %v2108 = vunpack.c.l.b16 %v1968
        %v2109 = vunpack.c.h.b16 %v1968
        %v2110 = vunpack.c.l.b16 %v1969
        %v2111 = vunpack.c.h.b16 %v1969
        %v2112 = vunpack.c.l.b16 %v1970
        %v2113 = vunpack.c.h.b16 %v1970
        %v2114 = vunpack.c.l.b16 %v1971
        %v2115 = vunpack.c.h.b16 %v1971
        %v2116 = vunpack.c.l.b16 %v1972
        %v2117 = vunpack.c.h.b16 %v1972
        %v2118 = vunpack.c.l.b16 %v1973
        %v2119 = vunpack.c.h.b16 %v1973
        %v2120 = vunpack.c.l.b16 %v1974
        %v2121 = vunpack.c.h.b16 %v1974
        %v2122 = vunpack.c.l.b16 %v1975
        %v2123 = vunpack.c.h.b16 %v1975
        %v2124 = vunpack.c.l.b16 %v1976
        %v2125 = vunpack.c.h.b16 %v1976
        %v2126 = vunpack.c.l.b16 %v1977
        %v2127 = vunpack.c.h.b16 %v1977
        %v2128 = vunpack.c.l.b16 %v1978
        %v2129 = vunpack.c.h.b16 %v1978
        %v2130 = vunpack.c.l.b16 %v1979
        %v2131 = vunpack.c.h.b16 %v1979
        %v2132 = vunpack.c.l.b16 %v1980
        %v2133 = vunpack.c.h.b16 %v1980
        %v2134 = vunpack.c.l.b16 %v1981
        %v2135 = vunpack.c.h.b16 %v1981
        %v2136 = vunpack.c.l.b16 %v1982
        %v2137 = vunpack.c.h.b16 %v1982
        %v2138 = vunpack.c.l.b16 %v1983
        %v2139 = vunpack.c.h.b16 %v1983
        %v2140 = vunpack.c.l.b16 %v1984
        %v2141 = vunpack.c.h.b16 %v1984
        %v2142 = vunpack.c.l.b16 %v1985
        %v2143 = vunpack.c.h.b16 %v1985
        %v2144 = vunpack.c.l.b16 %v1986
        %v2145 = vunpack.c.h.b16 %v1986
        %v2146 = vunpack.c.l.b16 %v1987
        %v2147 = vunpack.c.h.b16 %v1987
        %v2148 = vunpack.c.l.b16 %v1988
        %v2149 = vunpack.c.h.b16 %v1988
        %v2150 = vunpack.c.l.b16 %v1989
        %v2151 = vunpack.c.h.b16 %v1989
        %v2152 = vunpack.c.l.b16 %v1990
        %v2153 = vunpack.c.h.b16 %v1990
        %v2154 = vunpack.c.l.b16 %v1991
        %v2155 = vunpack.c.h.b16 %v1991
        %v2156 = vunpack.c.l.b16 %v1992
        %v2157 = vunpack.c.h.b16 %v1992
        %v2158 = vunpack.c.l.b16 %v1993
        %v2159 = vunpack.c.h.b16 %v1993
        %v2160 = vunpack.c.l.b16 %v1994
        %v2161 = vunpack.c.h.b16 %v1994
        %v2162 = vunpack.c.l.b16 %v1995
        %v2163 = vunpack.c.h.b16 %v1995
        %v2164 = vunpack.c.l.b16 %v1996
        %v2165 = vunpack.c.h.b16 %v1996
        %v2166 = vunpack.c.l.b16 %v1997
        %v2167 = vunpack.c.h.b16 %v1997
        %v2168 = vunpack.c.l.b16 %v1998
        %v2169 = vunpack.c.h.b16 %v1998
        %v2170 = vunpack.c.l.b16 %v1999
        %v2171 = vunpack.c.h.b16 %v1999
        %v2172 = vunpack.c.l.b16 %v2000
        %v2173 = vunpack.c.h.b16 %v2000
        %v2174 = vunpack.c.l.b16 %v2001
        %v2175 = vunpack.c.h.b16 %v2001
        %v2176 = vunpack.c.l.b16 %v2002
        %v2177 = vunpack.c.h.b16 %v2002
        %v2178 = vunpack.c.l.b16 %v2003
        %v2179 = vunpack.c.h.b16 %v2003
        %v2180 = vunpack.c.l.b16 %v2004
        %v2181 = vunpack.c.h.b16 %v2004
        %v2182 = vunpack.c.l.b16 %v2005
        %v2183 = vunpack.c.h.b16 %v2005
        %v2184 = vunpack.c.l.b16 %v2006
        %v2185 = vunpack.c.h.b16 %v2006
        %v2186 = vunpack.c.l.b16 %v2007
        %v2187 = vunpack.c.h.b16 %v2007
        %v2188 = vunpack.c.l.b16 %v2008
        %v2189 = vunpack.c.h.b16 %v2008
        %v2190 = vunpack.c.l.b16 %v2009
        %v2191 = vunpack.c.h.b16 %v2009
        %v2192 = vunpack.c.l.b16 %v2010
        %v2193 = vunpack.c.h.b16 %v2010
        %v2194 = vunpack.c.l.b16 %v2011
        %v2195 = vunpack.c.h.b16 %v2011
        %v2196 = vunpack.c.l.b16 %v2012
        %v2197 = vunpack.c.h.b16 %v2012
        %v2198 = vunpack.c.l.b16 %v2013
        %v2199 = vunpack.c.h.b16 %v2013
        %v2200 = vunpack.c.l.b16 %v2014
        %v2201 = vunpack.c.h.b16 %v2014
        %v2202 = vunpack.c.l.b16 %v2015
        %v2203 = vunpack.c.h.b16 %v2015
        %v2204 = vunpack.c.l.b16 %v2016
        %v2205 = vunpack.c.h.b16 %v2016
        %v2206 = vunpack.c.l.b16 %v2017
        %v2207 = vunpack.c.h.b16 %v2017
        %v2208 = vunpack.c.l.b16 %v2018
        %v2209 = vunpack.c.h.b16 %v2018
        %v2210 = vunpack.c.l.b16 %v2019
        %v2211 = vunpack.c.h.b16 %v2019
        %v2212 = vunpack.c.l.b16 %v2020
        %v2213 = vunpack.c.h.b16 %v2020
        %v2214 = vunpack.c.l.b16 %v2021
        %v2215 = vunpack.c.h.b16 %v2021
        %v2216 = vunpack.c.l.b16 %v2022
        %v2217 = vunpack.c.h.b16 %v2022
        %v2218 = vunpack.c.l.b16 %v2023
        %v2219 = vunpack.c.h.b16 %v2023
        %v2220 = vunpack.c.l.b16 %v2024
        %v2221 = vunpack.c.h.b16 %v2024
        %v2222 = vunpack.c.l.b16 %v2025
        %v2223 = vunpack.c.h.b16 %v2025
        %v2224 = vunpack.c.l.b16 %v2026
        %v2225 = vunpack.c.h.b16 %v2026
        %v2226 = vunpack.c.l.b16 %v2027
        %v2227 = vunpack.c.h.b16 %v2027
        %v2228 = vunpack.c.l.b16 %v2028
        %v2229 = vunpack.c.h.b16 %v2028
        %v2230 = vunpack.c.l.b16 %v2029
        %v2231 = vunpack.c.h.b16 %v2029
        %v2232 = vunpack.c.l.b16 %v2030
        %v2233 = vunpack.c.h.b16 %v2030
        %v2234 = vunpack.c.l.b16 %v2031
        %v2235 = vunpack.c.h.b16 %v2031
        %v2236 = vpack.c.b16 %v2110, %v2108
        %v2237 = vpack.c.b16 %v2111, %v2109
        %v2238 = vpack.c.b16 %v2114, %v2112
        %v2239 = vpack.c.b16 %v2115, %v2113
        %v2240 = vpack.c.b16 %v2118, %v2116
        %v2241 = vpack.c.b16 %v2119, %v2117
        %v2242 = vpack.c.b16 %v2122, %v2120
        %v2243 = vpack.c.b16 %v2123, %v2121
        %v2244 = vpack.c.b16 %v2126, %v2124
        %v2245 = vpack.c.b16 %v2127, %v2125
        %v2246 = vpack.c.b16 %v2130, %v2128
        %v2247 = vpack.c.b16 %v2131, %v2129
        %v2248 = vpack.c.b16 %v2134, %v2132
        %v2249 = vpack.c.b16 %v2135, %v2133
        %v2250 = vpack.c.b16 %v2138, %v2136
        %v2251 = vpack.c.b16 %v2139, %v2137
        %v2252 = vpack.c.b16 %v2142, %v2140
        %v2253 = vpack.c.b16 %v2143, %v2141
        %v2254 = vpack.c.b16 %v2146, %v2144
        %v2255 = vpack.c.b16 %v2147, %v2145
        %v2256 = vpack.c.b16 %v2150, %v2148
        %v2257 = vpack.c.b16 %v2151, %v2149
        %v2258 = vpack.c.b16 %v2154, %v2152
        %v2259 = vpack.c.b16 %v2155, %v2153
        %v2260 = vpack.c.b16 %v2158, %v2156
        %v2261 = vpack.c.b16 %v2159, %v2157
        %v2262 = vpack.c.b16 %v2162, %v2160
        %v2263 = vpack.c.b16 %v2163, %v2161
        %v2264 = vpack.c.b16 %v2166, %v2164
        %v2265 = vpack.c.b16 %v2167, %v2165
        %v2266 = vpack.c.b16 %v2170, %v2168
        %v2267 = vpack.c.b16 %v2171, %v2169
        %v2268 = vpack.c.b16 %v2174, %v2172
        %v2269 = vpack.c.b16 %v2175, %v2173
        %v2270 = vpack.c.b16 %v2178, %v2176
        %v2271 = vpack.c.b16 %v2179, %v2177
        %v2272 = vpack.c.b16 %v2182, %v2180
        %v2273 = vpack.c.b16 %v2183, %v2181
        %v2274 = vpack.c.b16 %v2186, %v2184
        %v2275 = vpack.c.b16 %v2187, %v2185
        %v2276 = vpack.c.b16 %v2190, %v2188
        %v2277 = vpack.c.b16 %v2191, %v2189
        %v2278 = vpack.c.b16 %v2194, %v2192
        %v2279 = vpack.c.b16 %v2195, %v2193
        %v2280 = vpack.c.b16 %v2198, %v2196
        %v2281 = vpack.c.b16 %v2199, %v2197
        %v2282 = vpack.c.b16 %v2202, %v2200
        %v2283 = vpack.c.b16 %v2203, %v2201
        %v2284 = vpack.c.b16 %v2206, %v2204
        %v2285 = vpack.c.b16 %v2207, %v2205
        %v2286 = vpack.c.b16 %v2210, %v2208
        %v2287 = vpack.c.b16 %v2211, %v2209
        %v2288 = vpack.c.b16 %v2214, %v2212
        %v2289 = vpack.c.b16 %v2215, %v2213
        %v2290 = vpack.c.b16 %v2218, %v2216
        %v2291 = vpack.c.b16 %v2219, %v2217
        %v2292 = vpack.c.b16 %v2222, %v2220
        %v2293 = vpack.c.b16 %v2223, %v2221
        %v2294 = vpack.c.b16 %v2226, %v2224
        %v2295 = vpack.c.b16 %v2227, %v2225
        %v2296 = vpack.c.b16 %v2230, %v2228
        %v2297 = vpack.c.b16 %v2231, %v2229
        %v2298 = vpack.c.b16 %v2234, %v2232
        %v2299 = vpack.c.b16 %v2235, %v2233
        %2364 = vmatprep.subr.bf16.mxu0 %v2237
        %2365 = vmatpush1.bf16.msra.mxu0 %v2236
        %2366 = vmatprep.subr.bf16.mxu0 %v2239
        %2367 = vmatpush1.bf16.msra.mxu0 %v2238
        %2368 = vmatprep.subr.bf16.mxu0 %v2241
        %2369 = vmatpush1.bf16.msra.mxu0 %v2240
        %2370 = vmatprep.subr.bf16.mxu0 %v2243
        %2371 = vmatpush1.bf16.msra.mxu0 %v2242
        %2372 = vmatprep.subr.bf16.mxu0 %v2245
        %2373 = vmatpush1.bf16.msra.mxu0 %v2244
        %2374 = vmatprep.subr.bf16.mxu0 %v2247
        %2375 = vmatpush1.bf16.msra.mxu0 %v2246
        %2376 = vmatprep.subr.bf16.mxu0 %v2249
        %2377 = vmatpush1.bf16.msra.mxu0 %v2248
        %2378 = vmatprep.subr.bf16.mxu0 %v2251
        %2379 = vmatpush1.bf16.msra.mxu0 %v2250
        %2380 = vmatprep.subr.bf16.mxu0 %v2253
        %2381 = vmatpush1.bf16.msra.mxu0 %v2252
        %2382 = vmatprep.subr.bf16.mxu0 %v2255
        %2383 = vmatpush1.bf16.msra.mxu0 %v2254
        %2384 = vmatprep.subr.bf16.mxu0 %v2257
        %2385 = vmatpush1.bf16.msra.mxu0 %v2256
        %2386 = vmatprep.subr.bf16.mxu0 %v2259
        %2387 = vmatpush1.bf16.msra.mxu0 %v2258
        %2388 = vmatprep.subr.bf16.mxu0 %v2261
        %2389 = vmatpush1.bf16.msra.mxu0 %v2260
        %2390 = vmatprep.subr.bf16.mxu0 %v2263
        %2391 = vmatpush1.bf16.msra.mxu0 %v2262
        %2392 = vmatprep.subr.bf16.mxu0 %v2265
        %2393 = vmatpush1.bf16.msra.mxu0 %v2264
        %2394 = vmatprep.subr.bf16.mxu0 %v2267
        %2395 = vmatpush1.bf16.msra.mxu0 %v2266
        %2396 = vmatprep.mubr.bf16.mxu0 %v1965
        %2397 = vmatmul.mubr.bf16.gmra.mrb[0].mxu0 %v1964
        %v2398 = vpop.f32.mrb[0].mxu0
        %v2399 = vadd.f32 %v2037, %v2398
        %v2400 = vpop.f32.mrb[0].mxu0
        %v2401 = vadd.f32 %v2041, %v2400
        %v2402 = vpop.f32.mrb[0].mxu0
        %v2403 = vpop.f32.mrb[0].mxu0
        %2404 = vdwg.mxu0
        %2405 = vmatprep.subr.bf16.mxu0 %v2269
        %2406 = vmatpush1.bf16.msra.mxu0 %v2268
        %2407 = vmatprep.subr.bf16.mxu0 %v2271
        %2408 = vmatpush1.bf16.msra.mxu0 %v2270
        %2409 = vmatprep.subr.bf16.mxu0 %v2273
        %2410 = vmatpush1.bf16.msra.mxu0 %v2272
        %2411 = vmatprep.subr.bf16.mxu0 %v2275
        %2412 = vmatpush1.bf16.msra.mxu0 %v2274
        %2413 = vmatprep.subr.bf16.mxu0 %v2277
        %2414 = vmatpush1.bf16.msra.mxu0 %v2276
        %2415 = vmatprep.subr.bf16.mxu0 %v2279
        %2416 = vmatpush1.bf16.msra.mxu0 %v2278
        %2417 = vmatprep.subr.bf16.mxu0 %v2281
        %2418 = vmatpush1.bf16.msra.mxu0 %v2280
        %2419 = vmatprep.subr.bf16.mxu0 %v2283
        %2420 = vmatpush1.bf16.msra.mxu0 %v2282
        %2421 = vmatprep.subr.bf16.mxu0 %v2285
        %2422 = vmatpush1.bf16.msra.mxu0 %v2284
        %2423 = vmatprep.subr.bf16.mxu0 %v2287
        %2424 = vmatpush1.bf16.msra.mxu0 %v2286
        %2425 = vmatprep.subr.bf16.mxu0 %v2289
        %2426 = vmatpush1.bf16.msra.mxu0 %v2288
        %2427 = vmatprep.subr.bf16.mxu0 %v2291
        %2428 = vmatpush1.bf16.msra.mxu0 %v2290
        %2429 = vmatprep.subr.bf16.mxu0 %v2293
        %2430 = vmatpush1.bf16.msra.mxu0 %v2292
        %2431 = vmatprep.subr.bf16.mxu0 %v2295
        %2432 = vmatpush1.bf16.msra.mxu0 %v2294
        %2433 = vmatprep.subr.bf16.mxu0 %v2297
        %2434 = vmatpush1.bf16.msra.mxu0 %v2296
        %2435 = vmatprep.subr.bf16.mxu0 %v2299
        %2436 = vmatpush1.bf16.msra.mxu0 %v2298
        %2437 = vmatprep.mubr.bf16.mxu0 %v1967
        %2438 = vmatmul.mubr.bf16.gmra.mrb[0].mxu0 %v1966
        %v2439 = vpop.f32.mrb[0].mxu0
        %v2440 = vadd.f32 %v2399, %v2439
        %v2441 = vpop.f32.mrb[0].mxu0
        %v2442 = vadd.f32 %v2401, %v2441
        %v2443 = vpop.f32.mrb[0].mxu0
        %v2444 = vpop.f32.mrb[0].mxu0
        %2445 = vdwg.mxu0
        %v2446 = vmul.f32 %v2442, 0.5
        %v2447 = vmul.f32 %v2446, 1.442695
        %v2448 = vpow.pop %v2447
        %v2449 = vld [vmem:[%s409] sm:$0xff]
        %v2450 = vmul.f32 %v2449, %v2448
        %v2451 = vadd.f32 %v2440, %v2450
        %v2452 = vpack.c.bf16 %v2451, %v2451
        %v2453 = vld [vmem:[%s6] sm:$0xff]
        %v2454 = vld [vmem:[%s6 + $0x8] sm:$0xff]
        %v2455 = vld [vmem:[%s6 + $0x10] sm:$0xff]
        %v2456 = vld [vmem:[%s6 + $0x18] sm:$0xff]
        %v2457 = vld [vmem:[%s6 + $0x20] sm:$0xff]
        %v2458 = vld [vmem:[%s6 + $0x28] sm:$0xff]
        %v2459 = vld [vmem:[%s6 + $0x30] sm:$0xff]
        %v2460 = vld [vmem:[%s6 + $0x38] sm:$0xff]
        %v2461 = vld [vmem:[%s6 + $0x40] sm:$0xff]
        %v2462 = vld [vmem:[%s6 + $0x48] sm:$0xff]
        %v2463 = vld [vmem:[%s6 + $0x50] sm:$0xff]
        %v2464 = vld [vmem:[%s6 + $0x58] sm:$0xff]
        %v2465 = vld [vmem:[%s6 + $0x60] sm:$0xff]
        %v2466 = vld [vmem:[%s6 + $0x68] sm:$0xff]
        %v2467 = vld [vmem:[%s6 + $0x70] sm:$0xff]
        %v2468 = vld [vmem:[%s6 + $0x78] sm:$0xff]
        %v2469 = vld [vmem:[%s6 + $0x80] sm:$0xff]
        %v2470 = vld [vmem:[%s6 + $0x88] sm:$0xff]
        %v2471 = vld [vmem:[%s6 + $0x90] sm:$0xff]
        %v2472 = vld [vmem:[%s6 + $0x98] sm:$0xff]
        %v2473 = vld [vmem:[%s6 + $0xa0] sm:$0xff]
        %v2474 = vld [vmem:[%s6 + $0xa8] sm:$0xff]
        %v2475 = vld [vmem:[%s6 + $0xb0] sm:$0xff]
        %v2476 = vld [vmem:[%s6 + $0xb8] sm:$0xff]
        %v2477 = vld [vmem:[%s6 + $0xc0] sm:$0xff]
        %v2478 = vld [vmem:[%s6 + $0xc8] sm:$0xff]
        %v2479 = vld [vmem:[%s6 + $0xd0] sm:$0xff]
        %v2480 = vld [vmem:[%s6 + $0xd8] sm:$0xff]
        %v2481 = vld [vmem:[%s6 + $0xe0] sm:$0xff]
        %v2482 = vld [vmem:[%s6 + $0xe8] sm:$0xff]
        %v2483 = vld [vmem:[%s6 + $0xf0] sm:$0xff]
        %v2484 = vld [vmem:[%s6 + $0xf8] sm:$0xff]
        %v2485 = vld [vmem:[%s7] sm:$0xf]
        %v2487 = vlaneseq
        %v2488 = vshrl.u32 %v2487, 7
        %v2489 = vsub.s32 0, %v2488
        %v2490 = vrot.slane %v2485, %v2489
        %v2491 = vlaneseq
        %v2492 = vshrl.u32 %v2491, 7
        %v2493 = vsub.s32 1, %v2492
        %v2494 = vrot.slane %v2485, %v2493
        %v2495 = vlaneseq
        %v2496 = vshrl.u32 %v2495, 7
        %v2497 = vsub.s32 2, %v2496
        %v2498 = vrot.slane %v2485, %v2497
        %v2499 = vlaneseq
        %v2500 = vshrl.u32 %v2499, 7
        %v2501 = vsub.s32 3, %v2500
        %v2502 = vrot.slane %v2485, %v2501
        %v2539 = vunpack.c.l.b16 %v2453
        %v2540 = vunpack.c.h.b16 %v2453
        %v2541 = vunpack.c.l.b16 %v2454
        %v2542 = vunpack.c.h.b16 %v2454
        %v2543 = vunpack.c.l.b16 %v2455
        %v2544 = vunpack.c.h.b16 %v2455
        %v2545 = vunpack.c.l.b16 %v2456
        %v2546 = vunpack.c.h.b16 %v2456
        %v2547 = vunpack.c.l.b16 %v2457
        %v2548 = vunpack.c.h.b16 %v2457
        %v2549 = vunpack.c.l.b16 %v2458
        %v2550 = vunpack.c.h.b16 %v2458
        %v2551 = vunpack.c.l.b16 %v2459
        %v2552 = vunpack.c.h.b16 %v2459
        %v2553 = vunpack.c.l.b16 %v2460
        %v2554 = vunpack.c.h.b16 %v2460
        %v2555 = vunpack.c.l.b16 %v2461
        %v2556 = vunpack.c.h.b16 %v2461
        %v2557 = vunpack.c.l.b16 %v2462
        %v2558 = vunpack.c.h.b16 %v2462
        %v2559 = vunpack.c.l.b16 %v2463
        %v2560 = vunpack.c.h.b16 %v2463
        %v2561 = vunpack.c.l.b16 %v2464
        %v2562 = vunpack.c.h.b16 %v2464
        %v2563 = vunpack.c.l.b16 %v2465
        %v2564 = vunpack.c.h.b16 %v2465
        %v2565 = vunpack.c.l.b16 %v2466
        %v2566 = vunpack.c.h.b16 %v2466
        %v2567 = vunpack.c.l.b16 %v2467
        %v2568 = vunpack.c.h.b16 %v2467
        %v2569 = vunpack.c.l.b16 %v2468
        %v2570 = vunpack.c.h.b16 %v2468
        %v2571 = vunpack.c.l.b16 %v2469
        %v2572 = vunpack.c.h.b16 %v2469
        %v2573 = vunpack.c.l.b16 %v2470
        %v2574 = vunpack.c.h.b16 %v2470
        %v2575 = vunpack.c.l.b16 %v2471
        %v2576 = vunpack.c.h.b16 %v2471
        %v2577 = vunpack.c.l.b16 %v2472
        %v2578 = vunpack.c.h.b16 %v2472
        %v2579 = vunpack.c.l.b16 %v2473
        %v2580 = vunpack.c.h.b16 %v2473
        %v2581 = vunpack.c.l.b16 %v2474
        %v2582 = vunpack.c.h.b16 %v2474
        %v2583 = vunpack.c.l.b16 %v2475
        %v2584 = vunpack.c.h.b16 %v2475
        %v2585 = vunpack.c.l.b16 %v2476
        %v2586 = vunpack.c.h.b16 %v2476
        %v2587 = vunpack.c.l.b16 %v2477
        %v2588 = vunpack.c.h.b16 %v2477
        %v2589 = vunpack.c.l.b16 %v2478
        %v2590 = vunpack.c.h.b16 %v2478
        %v2591 = vunpack.c.l.b16 %v2479
        %v2592 = vunpack.c.h.b16 %v2479
        %v2593 = vunpack.c.l.b16 %v2480
        %v2594 = vunpack.c.h.b16 %v2480
        %v2595 = vunpack.c.l.b16 %v2481
        %v2596 = vunpack.c.h.b16 %v2481
        %v2597 = vunpack.c.l.b16 %v2482
        %v2598 = vunpack.c.h.b16 %v2482
        %v2599 = vunpack.c.l.b16 %v2483
        %v2600 = vunpack.c.h.b16 %v2483
        %v2601 = vunpack.c.l.b16 %v2484
        %v2602 = vunpack.c.h.b16 %v2484
        %v2603 = vpack.c.b16 %v2543, %v2539
        %v2604 = vpack.c.b16 %v2544, %v2540
        %v2605 = vpack.c.b16 %v2545, %v2541
        %v2606 = vpack.c.b16 %v2546, %v2542
        %v2607 = vpack.c.b16 %v2551, %v2547
        %v2608 = vpack.c.b16 %v2552, %v2548
        %v2609 = vpack.c.b16 %v2553, %v2549
        %v2610 = vpack.c.b16 %v2554, %v2550
        %v2611 = vpack.c.b16 %v2559, %v2555
        %v2612 = vpack.c.b16 %v2560, %v2556
        %v2613 = vpack.c.b16 %v2561, %v2557
        %v2614 = vpack.c.b16 %v2562, %v2558
        %v2615 = vpack.c.b16 %v2567, %v2563
        %v2616 = vpack.c.b16 %v2568, %v2564
        %v2617 = vpack.c.b16 %v2569, %v2565
        %v2618 = vpack.c.b16 %v2570, %v2566
        %v2619 = vpack.c.b16 %v2575, %v2571
        %v2620 = vpack.c.b16 %v2576, %v2572
        %v2621 = vpack.c.b16 %v2577, %v2573
        %v2622 = vpack.c.b16 %v2578, %v2574
        %v2623 = vpack.c.b16 %v2583, %v2579
        %v2624 = vpack.c.b16 %v2584, %v2580
        %v2625 = vpack.c.b16 %v2585, %v2581
        %v2626 = vpack.c.b16 %v2586, %v2582
        %v2627 = vpack.c.b16 %v2591, %v2587
        %v2628 = vpack.c.b16 %v2592, %v2588
        %v2629 = vpack.c.b16 %v2593, %v2589
        %v2630 = vpack.c.b16 %v2594, %v2590
        %v2631 = vpack.c.b16 %v2599, %v2595
        %v2632 = vpack.c.b16 %v2600, %v2596
        %v2633 = vpack.c.b16 %v2601, %v2597
        %v2634 = vpack.c.b16 %v2602, %v2598
        %2667 = vmatprep.subr.bf16.mxu0 %v2604
        %2668 = vmatpush1.bf16.msra.mxu0 %v2603
        %2669 = vmatprep.subr.bf16.mxu0 %v2608
        %2670 = vmatpush1.bf16.msra.mxu0 %v2607
        %2671 = vmatprep.subr.bf16.mxu0 %v2612
        %2672 = vmatpush1.bf16.msra.mxu0 %v2611
        %2673 = vmatprep.subr.bf16.mxu0 %v2616
        %2674 = vmatpush1.bf16.msra.mxu0 %v2615
        %2675 = vmatprep.subr.bf16.mxu0 %v2620
        %2676 = vmatpush1.bf16.msra.mxu0 %v2619
        %2677 = vmatprep.subr.bf16.mxu0 %v2624
        %2678 = vmatpush1.bf16.msra.mxu0 %v2623
        %2679 = vmatprep.subr.bf16.mxu0 %v2628
        %2680 = vmatpush1.bf16.msra.mxu0 %v2627
        %2681 = vmatprep.subr.bf16.mxu0 %v2632
        %2682 = vmatpush1.bf16.msra.mxu0 %v2631
        %2683 = vmatprep.subr.bf16.mxu0 0
        %2684 = vmatpush1.bf16.msra.mxu0 0
        %2685 = vmatprep.subr.bf16.mxu0 0
        %2686 = vmatpush1.bf16.msra.mxu0 0
        %2687 = vmatprep.subr.bf16.mxu0 0
        %2688 = vmatpush1.bf16.msra.mxu0 0
        %2689 = vmatprep.subr.bf16.mxu0 0
        %2690 = vmatpush1.bf16.msra.mxu0 0
        %2691 = vmatprep.subr.bf16.mxu0 0
        %2692 = vmatpush1.bf16.msra.mxu0 0
        %2693 = vmatprep.subr.bf16.mxu0 0
        %2694 = vmatpush1.bf16.msra.mxu0 0
        %2695 = vmatprep.subr.bf16.mxu0 0
        %2696 = vmatpush1.bf16.msra.mxu0 0
        %2697 = vmatprep.subr.bf16.mxu0 0
        %2698 = vmatpush1.bf16.msra.mxu0 0
        %2699 = vmatprep.mubr.bf16.mxu0 0
        %2700 = vmatmul.mubr.bf16.gmra.mrb[0].mxu0 %v2452
        %v2701 = vpop.f32.mrb[0].mxu0
        %v2702 = vadd.f32 %v2490, %v2701
        %v2703 = vpop.f32.mrb[0].mxu0
        %v2704 = vadd.f32 %v2494, %v2703
        %v2705 = vpop.f32.mrb[0].mxu0
        %v2706 = vpop.f32.mrb[0].mxu0
        %2707 = vdwg.mxu0
        %2708 = vmatprep.subr.bf16.mxu0 %v2606
        %2709 = vmatpush1.bf16.msra.mxu0 %v2605
        %2710 = vmatprep.subr.bf16.mxu0 %v2610
        %2711 = vmatpush1.bf16.msra.mxu0 %v2609
        %2712 = vmatprep.subr.bf16.mxu0 %v2614
        %2713 = vmatpush1.bf16.msra.mxu0 %v2613
        %2714 = vmatprep.subr.bf16.mxu0 %v2618
        %2715 = vmatpush1.bf16.msra.mxu0 %v2617
        %2716 = vmatprep.subr.bf16.mxu0 %v2622
        %2717 = vmatpush1.bf16.msra.mxu0 %v2621
        %2718 = vmatprep.subr.bf16.mxu0 %v2626
        %2719 = vmatpush1.bf16.msra.mxu0 %v2625
        %2720 = vmatprep.subr.bf16.mxu0 %v2630
        %2721 = vmatpush1.bf16.msra.mxu0 %v2629
        %2722 = vmatprep.subr.bf16.mxu0 %v2634
        %2723 = vmatpush1.bf16.msra.mxu0 %v2633
        %2724 = vmatprep.subr.bf16.mxu0 0
        %2725 = vmatpush1.bf16.msra.mxu0 0
        %2726 = vmatprep.subr.bf16.mxu0 0
        %2727 = vmatpush1.bf16.msra.mxu0 0
        %2728 = vmatprep.subr.bf16.mxu0 0
        %2729 = vmatpush1.bf16.msra.mxu0 0
        %2730 = vmatprep.subr.bf16.mxu0 0
        %2731 = vmatpush1.bf16.msra.mxu0 0
        %2732 = vmatprep.subr.bf16.mxu0 0
        %2733 = vmatpush1.bf16.msra.mxu0 0
        %2734 = vmatprep.subr.bf16.mxu0 0
        %2735 = vmatpush1.bf16.msra.mxu0 0
        %2736 = vmatprep.subr.bf16.mxu0 0
        %2737 = vmatpush1.bf16.msra.mxu0 0
        %2738 = vmatprep.subr.bf16.mxu0 0
        %2739 = vmatpush1.bf16.msra.mxu0 0
        %2740 = vmatprep.mubr.bf16.mxu0 0
        %2741 = vmatmul.mubr.bf16.gmra.mrb[0].mxu0 %v2452
        %v2742 = vpop.f32.mrb[0].mxu0
        %v2743 = vadd.f32 %v2498, %v2742
        %v2744 = vpop.f32.mrb[0].mxu0
        %v2745 = vadd.f32 %v2502, %v2744
        %v2746 = vpop.f32.mrb[0].mxu0
        %v2747 = vpop.f32.mrb[0].mxu0
        %2748 = vdwg.mxu0
        %v2749 = vmax.f32 %v2702, 0.0
        %v2750 = vmax.f32 %v2704, 0.0
        %v2751 = vmax.f32 %v2743, 0.0
        %v2752 = vmax.f32 %v2745, 0.0
        %v2753 = vpack.c.bf16 %v2749, %v2749
        %v2754 = vpack.c.bf16 %v2750, %v2750
        %v2755 = vpack.c.bf16 %v2751, %v2751
        %v2756 = vpack.c.bf16 %v2752, %v2752
        %v2757 = vld [vmem:[%s8] sm:$0xff]
        %v2758 = vld [vmem:[%s8 + $0x8] sm:$0xff]
        %v2759 = vld [vmem:[%s8 + $0x10] sm:$0xff]
        %v2760 = vld [vmem:[%s8 + $0x18] sm:$0xf]
        %v2761 = vld [vmem:[%s8 + $0x1c] sm:$0xff]
        %v2762 = vld [vmem:[%s8 + $0x24] sm:$0xff]
        %v2763 = vld [vmem:[%s8 + $0x2c] sm:$0xff]
        %v2764 = vld [vmem:[%s8 + $0x34] sm:$0xf]
        %v2765 = vld [vmem:[%s8 + $0x38] sm:$0xff]
        %v2766 = vld [vmem:[%s8 + $0x40] sm:$0xff]
        %v2767 = vld [vmem:[%s8 + $0x48] sm:$0xff]
        %v2768 = vld [vmem:[%s8 + $0x50] sm:$0xf]
        %v2769 = vld [vmem:[%s8 + $0x54] sm:$0xff]
        %v2770 = vld [vmem:[%s8 + $0x5c] sm:$0xff]
        %v2771 = vld [vmem:[%s8 + $0x64] sm:$0xff]
        %v2772 = vld [vmem:[%s8 + $0x6c] sm:$0xf]
        %v2773 = vld [vmem:[%s8 + $0x70] sm:$0xff]
        %v2774 = vld [vmem:[%s8 + $0x78] sm:$0xff]
        %v2775 = vld [vmem:[%s8 + $0x80] sm:$0xff]
        %v2776 = vld [vmem:[%s8 + $0x88] sm:$0xf]
        %v2777 = vld [vmem:[%s8 + $0x8c] sm:$0xff]
        %v2778 = vld [vmem:[%s8 + $0x94] sm:$0xff]
        %v2779 = vld [vmem:[%s8 + $0x9c] sm:$0xff]
        %v2780 = vld [vmem:[%s8 + $0xa4] sm:$0xf]
        %v2781 = vld [vmem:[%s8 + $0xa8] sm:$0xff]
        %v2782 = vld [vmem:[%s8 + $0xb0] sm:$0xff]
        %v2783 = vld [vmem:[%s8 + $0xb8] sm:$0xff]
        %v2784 = vld [vmem:[%s8 + $0xc0] sm:$0xf]
        %v2785 = vld [vmem:[%s8 + $0xc4] sm:$0xff]
        %v2786 = vld [vmem:[%s8 + $0xcc] sm:$0xff]
        %v2787 = vld [vmem:[%s8 + $0xd4] sm:$0xff]
        %v2788 = vld [vmem:[%s8 + $0xdc] sm:$0xf]
        %v2789 = vld [vmem:[%s8 + $0xe0] sm:$0xff]
        %v2790 = vld [vmem:[%s8 + $0xe8] sm:$0xff]
        %v2791 = vld [vmem:[%s8 + $0xf0] sm:$0xff]
        %v2792 = vld [vmem:[%s8 + $0xf8] sm:$0xf]
        %v2793 = vld [vmem:[%s8 + $0xfc] sm:$0xff]
        %v2794 = vld [vmem:[%s8 + $0x104] sm:$0xff]
        %v2795 = vld [vmem:[%s8 + $0x10c] sm:$0xff]
        %v2796 = vld [vmem:[%s8 + $0x114] sm:$0xf]
        %v2797 = vld [vmem:[%s8 + $0x118] sm:$0xff]
        %v2798 = vld [vmem:[%s8 + $0x120] sm:$0xff]
        %v2799 = vld [vmem:[%s8 + $0x128] sm:$0xff]
        %v2800 = vld [vmem:[%s8 + $0x130] sm:$0xf]
        %v2801 = vld [vmem:[%s8 + $0x134] sm:$0xff]
        %v2802 = vld [vmem:[%s8 + $0x13c] sm:$0xff]
        %v2803 = vld [vmem:[%s8 + $0x144] sm:$0xff]
        %v2804 = vld [vmem:[%s8 + $0x14c] sm:$0xf]
        %v2805 = vld [vmem:[%s8 + $0x150] sm:$0xff]
        %v2806 = vld [vmem:[%s8 + $0x158] sm:$0xff]
        %v2807 = vld [vmem:[%s8 + $0x160] sm:$0xff]
        %v2808 = vld [vmem:[%s8 + $0x168] sm:$0xf]
        %v2809 = vld [vmem:[%s8 + $0x16c] sm:$0xff]
        %v2810 = vld [vmem:[%s8 + $0x174] sm:$0xff]
        %v2811 = vld [vmem:[%s8 + $0x17c] sm:$0xff]
        %v2812 = vld [vmem:[%s8 + $0x184] sm:$0xf]
        %v2813 = vld [vmem:[%s8 + $0x188] sm:$0xff]
        %v2814 = vld [vmem:[%s8 + $0x190] sm:$0xff]
        %v2815 = vld [vmem:[%s8 + $0x198] sm:$0xff]
        %v2816 = vld [vmem:[%s8 + $0x1a0] sm:$0xf]
        %v2817 = vld [vmem:[%s8 + $0x1a4] sm:$0xff]
        %v2818 = vld [vmem:[%s8 + $0x1ac] sm:$0xff]
        %v2819 = vld [vmem:[%s8 + $0x1b4] sm:$0xff]
        %v2820 = vld [vmem:[%s8 + $0x1bc] sm:$0xf]
        %v2821 = vld [vmem:[%s8 + $0x1c0] sm:$0xff]
        %v2822 = vld [vmem:[%s8 + $0x1c8] sm:$0xff]
        %v2823 = vld [vmem:[%s8 + $0x1d0] sm:$0xff]
        %v2824 = vld [vmem:[%s8 + $0x1d8] sm:$0xf]
        %v2825 = vld [vmem:[%s8 + $0x1dc] sm:$0xff]
        %v2826 = vld [vmem:[%s8 + $0x1e4] sm:$0xff]
        %v2827 = vld [vmem:[%s8 + $0x1ec] sm:$0xff]
        %v2828 = vld [vmem:[%s8 + $0x1f4] sm:$0xf]
        %v2829 = vld [vmem:[%s8 + $0x1f8] sm:$0xff]
        %v2830 = vld [vmem:[%s8 + $0x200] sm:$0xff]
        %v2831 = vld [vmem:[%s8 + $0x208] sm:$0xff]
        %v2832 = vld [vmem:[%s8 + $0x210] sm:$0xf]
        %v2833 = vld [vmem:[%s8 + $0x214] sm:$0xff]
        %v2834 = vld [vmem:[%s8 + $0x21c] sm:$0xff]
        %v2835 = vld [vmem:[%s8 + $0x224] sm:$0xff]
        %v2836 = vld [vmem:[%s8 + $0x22c] sm:$0xf]
        %v2837 = vld [vmem:[%s8 + $0x230] sm:$0xff]
        %v2838 = vld [vmem:[%s8 + $0x238] sm:$0xff]
        %v2839 = vld [vmem:[%s8 + $0x240] sm:$0xff]
        %v2840 = vld [vmem:[%s8 + $0x248] sm:$0xf]
        %v2841 = vld [vmem:[%s8 + $0x24c] sm:$0xff]
        %v2842 = vld [vmem:[%s8 + $0x254] sm:$0xff]
        %v2843 = vld [vmem:[%s8 + $0x25c] sm:$0xff]
        %v2844 = vld [vmem:[%s8 + $0x264] sm:$0xf]
        %v2845 = vld [vmem:[%s8 + $0x268] sm:$0xff]
        %v2846 = vld [vmem:[%s8 + $0x270] sm:$0xff]
        %v2847 = vld [vmem:[%s8 + $0x278] sm:$0xff]
        %v2848 = vld [vmem:[%s8 + $0x280] sm:$0xf]
        %v2849 = vld [vmem:[%s8 + $0x284] sm:$0xff]
        %v2850 = vld [vmem:[%s8 + $0x28c] sm:$0xff]
        %v2851 = vld [vmem:[%s8 + $0x294] sm:$0xff]
        %v2852 = vld [vmem:[%s8 + $0x29c] sm:$0xf]
        %v2853 = vld [vmem:[%s8 + $0x2a0] sm:$0xff]
        %v2854 = vld [vmem:[%s8 + $0x2a8] sm:$0xff]
        %v2855 = vld [vmem:[%s8 + $0x2b0] sm:$0xff]
        %v2856 = vld [vmem:[%s8 + $0x2b8] sm:$0xf]
        %v2857 = vld [vmem:[%s8 + $0x2bc] sm:$0xff]
        %v2858 = vld [vmem:[%s8 + $0x2c4] sm:$0xff]
        %v2859 = vld [vmem:[%s8 + $0x2cc] sm:$0xff]
        %v2860 = vld [vmem:[%s8 + $0x2d4] sm:$0xf]
        %v2861 = vld [vmem:[%s8 + $0x2d8] sm:$0xff]
        %v2862 = vld [vmem:[%s8 + $0x2e0] sm:$0xff]
        %v2863 = vld [vmem:[%s8 + $0x2e8] sm:$0xff]
        %v2864 = vld [vmem:[%s8 + $0x2f0] sm:$0xf]
        %v2865 = vld [vmem:[%s8 + $0x2f4] sm:$0xff]
        %v2866 = vld [vmem:[%s8 + $0x2fc] sm:$0xff]
        %v2867 = vld [vmem:[%s8 + $0x304] sm:$0xff]
        %v2868 = vld [vmem:[%s8 + $0x30c] sm:$0xf]
        %v2869 = vld [vmem:[%s8 + $0x310] sm:$0xff]
        %v2870 = vld [vmem:[%s8 + $0x318] sm:$0xff]
        %v2871 = vld [vmem:[%s8 + $0x320] sm:$0xff]
        %v2872 = vld [vmem:[%s8 + $0x328] sm:$0xf]
        %v2873 = vld [vmem:[%s8 + $0x32c] sm:$0xff]
        %v2874 = vld [vmem:[%s8 + $0x334] sm:$0xff]
        %v2875 = vld [vmem:[%s8 + $0x33c] sm:$0xff]
        %v2876 = vld [vmem:[%s8 + $0x344] sm:$0xf]
        %v2877 = vld [vmem:[%s8 + $0x348] sm:$0xff]
        %v2878 = vld [vmem:[%s8 + $0x350] sm:$0xff]
        %v2879 = vld [vmem:[%s8 + $0x358] sm:$0xff]
        %v2880 = vld [vmem:[%s8 + $0x360] sm:$0xf]
        %v2881 = vld [vmem:[%s8 + $0x364] sm:$0xff]
        %v2882 = vld [vmem:[%s8 + $0x36c] sm:$0xff]
        %v2883 = vld [vmem:[%s8 + $0x374] sm:$0xff]
        %v2884 = vld [vmem:[%s8 + $0x37c] sm:$0xf]
        %v2885 = vld [vmem:[%s8 + $0x380] sm:$0xff]
        %v2886 = vld [vmem:[%s8 + $0x388] sm:$0xff]
        %v2887 = vld [vmem:[%s8 + $0x390] sm:$0xff]
        %v2888 = vld [vmem:[%s8 + $0x398] sm:$0xf]
        %v2889 = vld [vmem:[%s8 + $0x39c] sm:$0xff]
        %v2890 = vld [vmem:[%s8 + $0x3a4] sm:$0xff]
        %v2891 = vld [vmem:[%s8 + $0x3ac] sm:$0xff]
        %v2892 = vld [vmem:[%s8 + $0x3b4] sm:$0xf]
        %v2893 = vld [vmem:[%s8 + $0x3b8] sm:$0xff]
        %v2894 = vld [vmem:[%s8 + $0x3c0] sm:$0xff]
        %v2895 = vld [vmem:[%s8 + $0x3c8] sm:$0xff]
        %v2896 = vld [vmem:[%s8 + $0x3d0] sm:$0xf]
        %v2897 = vld [vmem:[%s8 + $0x3d4] sm:$0xff]
        %v2898 = vld [vmem:[%s8 + $0x3dc] sm:$0xff]
        %v2899 = vld [vmem:[%s8 + $0x3e4] sm:$0xff]
        %v2900 = vld [vmem:[%s8 + $0x3ec] sm:$0xf]
        %v2901 = vld [vmem:[%s8 + $0x3f0] sm:$0xff]
        %v2902 = vld [vmem:[%s8 + $0x3f8] sm:$0xff]
        %v2903 = vld [vmem:[%s8 + $0x400] sm:$0xff]
        %v2904 = vld [vmem:[%s8 + $0x408] sm:$0xf]
        %v2905 = vld [vmem:[%s8 + $0x40c] sm:$0xff]
        %v2906 = vld [vmem:[%s8 + $0x414] sm:$0xff]
        %v2907 = vld [vmem:[%s8 + $0x41c] sm:$0xff]
        %v2908 = vld [vmem:[%s8 + $0x424] sm:$0xf]
        %v2909 = vld [vmem:[%s8 + $0x428] sm:$0xff]
        %v2910 = vld [vmem:[%s8 + $0x430] sm:$0xff]
        %v2911 = vld [vmem:[%s8 + $0x438] sm:$0xff]
        %v2912 = vld [vmem:[%s8 + $0x440] sm:$0xf]
        %v2913 = vld [vmem:[%s8 + $0x444] sm:$0xff]
        %v2914 = vld [vmem:[%s8 + $0x44c] sm:$0xff]
        %v2915 = vld [vmem:[%s8 + $0x454] sm:$0xff]
        %v2916 = vld [vmem:[%s8 + $0x45c] sm:$0xf]
        %v2917 = vld [vmem:[%s8 + $0x460] sm:$0xff]
        %v2918 = vld [vmem:[%s8 + $0x468] sm:$0xff]
        %v2919 = vld [vmem:[%s8 + $0x470] sm:$0xff]
        %v2920 = vld [vmem:[%s8 + $0x478] sm:$0xf]
        %v2921 = vld [vmem:[%s8 + $0x47c] sm:$0xff]
        %v2922 = vld [vmem:[%s8 + $0x484] sm:$0xff]
        %v2923 = vld [vmem:[%s8 + $0x48c] sm:$0xff]
        %v2924 = vld [vmem:[%s8 + $0x494] sm:$0xf]
        %v2925 = vld [vmem:[%s8 + $0x498] sm:$0xff]
        %v2926 = vld [vmem:[%s8 + $0x4a0] sm:$0xff]
        %v2927 = vld [vmem:[%s8 + $0x4a8] sm:$0xff]
        %v2928 = vld [vmem:[%s8 + $0x4b0] sm:$0xf]
        %v2929 = vld [vmem:[%s8 + $0x4b4] sm:$0xff]
        %v2930 = vld [vmem:[%s8 + $0x4bc] sm:$0xff]
        %v2931 = vld [vmem:[%s8 + $0x4c4] sm:$0xff]
        %v2932 = vld [vmem:[%s8 + $0x4cc] sm:$0xf]
        %v2933 = vld [vmem:[%s8 + $0x4d0] sm:$0xff]
        %v2934 = vld [vmem:[%s8 + $0x4d8] sm:$0xff]
        %v2935 = vld [vmem:[%s8 + $0x4e0] sm:$0xff]
        %v2936 = vld [vmem:[%s8 + $0x4e8] sm:$0xf]
        %v2937 = vld [vmem:[%s8 + $0x4ec] sm:$0xff]
        %v2938 = vld [vmem:[%s8 + $0x4f4] sm:$0xff]
        %v2939 = vld [vmem:[%s8 + $0x4fc] sm:$0xff]
        %v2940 = vld [vmem:[%s8 + $0x504] sm:$0xf]
        %v2941 = vld [vmem:[%s8 + $0x508] sm:$0xff]
        %v2942 = vld [vmem:[%s8 + $0x510] sm:$0xff]
        %v2943 = vld [vmem:[%s8 + $0x518] sm:$0xff]
        %v2944 = vld [vmem:[%s8 + $0x520] sm:$0xf]
        %v2945 = vld [vmem:[%s8 + $0x524] sm:$0xff]
        %v2946 = vld [vmem:[%s8 + $0x52c] sm:$0xff]
        %v2947 = vld [vmem:[%s8 + $0x534] sm:$0xff]
        %v2948 = vld [vmem:[%s8 + $0x53c] sm:$0xf]
        %v2949 = vld [vmem:[%s8 + $0x540] sm:$0xff]
        %v2950 = vld [vmem:[%s8 + $0x548] sm:$0xff]
        %v2951 = vld [vmem:[%s8 + $0x550] sm:$0xff]
        %v2952 = vld [vmem:[%s8 + $0x558] sm:$0xf]
        %v2953 = vld [vmem:[%s8 + $0x55c] sm:$0xff]
        %v2954 = vld [vmem:[%s8 + $0x564] sm:$0xff]
        %v2955 = vld [vmem:[%s8 + $0x56c] sm:$0xff]
        %v2956 = vld [vmem:[%s8 + $0x574] sm:$0xf]
        %v2957 = vld [vmem:[%s8 + $0x578] sm:$0xff]
        %v2958 = vld [vmem:[%s8 + $0x580] sm:$0xff]
        %v2959 = vld [vmem:[%s8 + $0x588] sm:$0xff]
        %v2960 = vld [vmem:[%s8 + $0x590] sm:$0xf]
        %v2961 = vld [vmem:[%s8 + $0x594] sm:$0xff]
        %v2962 = vld [vmem:[%s8 + $0x59c] sm:$0xff]
        %v2963 = vld [vmem:[%s8 + $0x5a4] sm:$0xff]
        %v2964 = vld [vmem:[%s8 + $0x5ac] sm:$0xf]
        %v2965 = vld [vmem:[%s8 + $0x5b0] sm:$0xff]
        %v2966 = vld [vmem:[%s8 + $0x5b8] sm:$0xff]
        %v2967 = vld [vmem:[%s8 + $0x5c0] sm:$0xff]
        %v2968 = vld [vmem:[%s8 + $0x5c8] sm:$0xf]
        %v2969 = vld [vmem:[%s8 + $0x5cc] sm:$0xff]
        %v2970 = vld [vmem:[%s8 + $0x5d4] sm:$0xff]
        %v2971 = vld [vmem:[%s8 + $0x5dc] sm:$0xff]
        %v2972 = vld [vmem:[%s8 + $0x5e4] sm:$0xf]
        %v2973 = vld [vmem:[%s8 + $0x5e8] sm:$0xff]
        %v2974 = vld [vmem:[%s8 + $0x5f0] sm:$0xff]
        %v2975 = vld [vmem:[%s8 + $0x5f8] sm:$0xff]
        %v2976 = vld [vmem:[%s8 + $0x600] sm:$0xf]
        %v2977 = vld [vmem:[%s8 + $0x604] sm:$0xff]
        %v2978 = vld [vmem:[%s8 + $0x60c] sm:$0xff]
        %v2979 = vld [vmem:[%s8 + $0x614] sm:$0xff]
        %v2980 = vld [vmem:[%s8 + $0x61c] sm:$0xf]
        %v2981 = vld [vmem:[%s8 + $0x620] sm:$0xff]
        %v2982 = vld [vmem:[%s8 + $0x628] sm:$0xff]
        %v2983 = vld [vmem:[%s8 + $0x630] sm:$0xff]
        %v2984 = vld [vmem:[%s8 + $0x638] sm:$0xf]
        %v2985 = vld [vmem:[%s8 + $0x63c] sm:$0xff]
        %v2986 = vld [vmem:[%s8 + $0x644] sm:$0xff]
        %v2987 = vld [vmem:[%s8 + $0x64c] sm:$0xff]
        %v2988 = vld [vmem:[%s8 + $0x654] sm:$0xf]
        %v2989 = vld [vmem:[%s8 + $0x658] sm:$0xff]
        %v2990 = vld [vmem:[%s8 + $0x660] sm:$0xff]
        %v2991 = vld [vmem:[%s8 + $0x668] sm:$0xff]
        %v2992 = vld [vmem:[%s8 + $0x670] sm:$0xf]
        %v2993 = vld [vmem:[%s8 + $0x674] sm:$0xff]
        %v2994 = vld [vmem:[%s8 + $0x67c] sm:$0xff]
        %v2995 = vld [vmem:[%s8 + $0x684] sm:$0xff]
        %v2996 = vld [vmem:[%s8 + $0x68c] sm:$0xf]
        %v2997 = vld [vmem:[%s8 + $0x690] sm:$0xff]
        %v2998 = vld [vmem:[%s8 + $0x698] sm:$0xff]
        %v2999 = vld [vmem:[%s8 + $0x6a0] sm:$0xff]
        %v3000 = vld [vmem:[%s8 + $0x6a8] sm:$0xf]
        %v3001 = vld [vmem:[%s8 + $0x6ac] sm:$0xff]
        %v3002 = vld [vmem:[%s8 + $0x6b4] sm:$0xff]
        %v3003 = vld [vmem:[%s8 + $0x6bc] sm:$0xff]
        %v3004 = vld [vmem:[%s8 + $0x6c4] sm:$0xf]
        %v3005 = vld [vmem:[%s8 + $0x6c8] sm:$0xff]
        %v3006 = vld [vmem:[%s8 + $0x6d0] sm:$0xff]
        %v3007 = vld [vmem:[%s8 + $0x6d8] sm:$0xff]
        %v3008 = vld [vmem:[%s8 + $0x6e0] sm:$0xf]
        %v3009 = vld [vmem:[%s8 + $0x6e4] sm:$0xff]
        %v3010 = vld [vmem:[%s8 + $0x6ec] sm:$0xff]
        %v3011 = vld [vmem:[%s8 + $0x6f4] sm:$0xff]
        %v3012 = vld [vmem:[%s8 + $0x6fc] sm:$0xf]
        %v3013 = vld [vmem:[%s9] sm:$0x7f]
        %v3015 = vlaneseq
        %v3016 = vshrl.u32 %v3015, 7
        %v3017 = vsub.s32 0, %v3016
        %v3018 = vrot.slane %v3013, %v3017
        %v3019 = vlaneseq
        %v3020 = vshrl.u32 %v3019, 7
        %v3021 = vsub.s32 1, %v3020
        %v3022 = vrot.slane %v3013, %v3021
        %v3023 = vlaneseq
        %v3024 = vshrl.u32 %v3023, 7
        %v3025 = vsub.s32 2, %v3024
        %v3026 = vrot.slane %v3013, %v3025
        %v3027 = vlaneseq
        %v3028 = vshrl.u32 %v3027, 7
        %v3029 = vsub.s32 3, %v3028
        %v3030 = vrot.slane %v3013, %v3029
        %v3031 = vlaneseq
        %v3032 = vshrl.u32 %v3031, 7
        %v3033 = vsub.s32 4, %v3032
        %v3034 = vrot.slane %v3013, %v3033
        %v3035 = vlaneseq
        %v3036 = vshrl.u32 %v3035, 7
        %v3037 = vsub.s32 5, %v3036
        %v3038 = vrot.slane %v3013, %v3037
        %v3039 = vlaneseq
        %v3040 = vshrl.u32 %v3039, 7
        %v3041 = vsub.s32 6, %v3040
        %v3042 = vrot.slane %v3013, %v3041
        %v3306 = vunpack.c.l.b16 %v2757
        %v3307 = vunpack.c.h.b16 %v2757
        %v3308 = vunpack.c.l.b16 %v2758
        %v3309 = vunpack.c.h.b16 %v2758
        %v3310 = vunpack.c.l.b16 %v2759
        %v3311 = vunpack.c.h.b16 %v2759
        %v3312 = vunpack.c.l.b16 %v2760
        %v3313 = vunpack.c.l.b16 %v2761
        %v3314 = vunpack.c.h.b16 %v2761
        %v3315 = vunpack.c.l.b16 %v2762
        %v3316 = vunpack.c.h.b16 %v2762
        %v3317 = vunpack.c.l.b16 %v2763
        %v3318 = vunpack.c.h.b16 %v2763
        %v3319 = vunpack.c.l.b16 %v2764
        %v3320 = vunpack.c.l.b16 %v2765
        %v3321 = vunpack.c.h.b16 %v2765
        %v3322 = vunpack.c.l.b16 %v2766
        %v3323 = vunpack.c.h.b16 %v2766
        %v3324 = vunpack.c.l.b16 %v2767
        %v3325 = vunpack.c.h.b16 %v2767
        %v3326 = vunpack.c.l.b16 %v2768
        %v3327 = vunpack.c.l.b16 %v2769
        %v3328 = vunpack.c.h.b16 %v2769
        %v3329 = vunpack.c.l.b16 %v2770
        %v3330 = vunpack.c.h.b16 %v2770
        %v3331 = vunpack.c.l.b16 %v2771
        %v3332 = vunpack.c.h.b16 %v2771
        %v3333 = vunpack.c.l.b16 %v2772
        %v3334 = vunpack.c.l.b16 %v2773
        %v3335 = vunpack.c.h.b16 %v2773
        %v3336 = vunpack.c.l.b16 %v2774
        %v3337 = vunpack.c.h.b16 %v2774
        %v3338 = vunpack.c.l.b16 %v2775
        %v3339 = vunpack.c.h.b16 %v2775
        %v3340 = vunpack.c.l.b16 %v2776
        %v3341 = vunpack.c.l.b16 %v2777
        %v3342 = vunpack.c.h.b16 %v2777
        %v3343 = vunpack.c.l.b16 %v2778
        %v3344 = vunpack.c.h.b16 %v2778
        %v3345 = vunpack.c.l.b16 %v2779
        %v3346 = vunpack.c.h.b16 %v2779
        %v3347 = vunpack.c.l.b16 %v2780
        %v3348 = vunpack.c.l.b16 %v2781
        %v3349 = vunpack.c.h.b16 %v2781
        %v3350 = vunpack.c.l.b16 %v2782
        %v3351 = vunpack.c.h.b16 %v2782
        %v3352 = vunpack.c.l.b16 %v2783
        %v3353 = vunpack.c.h.b16 %v2783
        %v3354 = vunpack.c.l.b16 %v2784
        %v3355 = vunpack.c.l.b16 %v2785
        %v3356 = vunpack.c.h.b16 %v2785
        %v3357 = vunpack.c.l.b16 %v2786
        %v3358 = vunpack.c.h.b16 %v2786
        %v3359 = vunpack.c.l.b16 %v2787
        %v3360 = vunpack.c.h.b16 %v2787
        %v3361 = vunpack.c.l.b16 %v2788
        %v3362 = vunpack.c.l.b16 %v2789
        %v3363 = vunpack.c.h.b16 %v2789
        %v3364 = vunpack.c.l.b16 %v2790
        %v3365 = vunpack.c.h.b16 %v2790
        %v3366 = vunpack.c.l.b16 %v2791
        %v3367 = vunpack.c.h.b16 %v2791
        %v3368 = vunpack.c.l.b16 %v2792
        %v3369 = vunpack.c.l.b16 %v2793
        %v3370 = vunpack.c.h.b16 %v2793
        %v3371 = vunpack.c.l.b16 %v2794
        %v3372 = vunpack.c.h.b16 %v2794
        %v3373 = vunpack.c.l.b16 %v2795
        %v3374 = vunpack.c.h.b16 %v2795
        %v3375 = vunpack.c.l.b16 %v2796
        %v3376 = vunpack.c.l.b16 %v2797
        %v3377 = vunpack.c.h.b16 %v2797
        %v3378 = vunpack.c.l.b16 %v2798
        %v3379 = vunpack.c.h.b16 %v2798
        %v3380 = vunpack.c.l.b16 %v2799
        %v3381 = vunpack.c.h.b16 %v2799
        %v3382 = vunpack.c.l.b16 %v2800
        %v3383 = vunpack.c.l.b16 %v2801
        %v3384 = vunpack.c.h.b16 %v2801
        %v3385 = vunpack.c.l.b16 %v2802
        %v3386 = vunpack.c.h.b16 %v2802
        %v3387 = vunpack.c.l.b16 %v2803
        %v3388 = vunpack.c.h.b16 %v2803
        %v3389 = vunpack.c.l.b16 %v2804
        %v3390 = vunpack.c.l.b16 %v2805
        %v3391 = vunpack.c.h.b16 %v2805
        %v3392 = vunpack.c.l.b16 %v2806
        %v3393 = vunpack.c.h.b16 %v2806
        %v3394 = vunpack.c.l.b16 %v2807
        %v3395 = vunpack.c.h.b16 %v2807
        %v3396 = vunpack.c.l.b16 %v2808
        %v3397 = vunpack.c.l.b16 %v2809
        %v3398 = vunpack.c.h.b16 %v2809
        %v3399 = vunpack.c.l.b16 %v2810
        %v3400 = vunpack.c.h.b16 %v2810
        %v3401 = vunpack.c.l.b16 %v2811
        %v3402 = vunpack.c.h.b16 %v2811
        %v3403 = vunpack.c.l.b16 %v2812
        %v3404 = vunpack.c.l.b16 %v2813
        %v3405 = vunpack.c.h.b16 %v2813
        %v3406 = vunpack.c.l.b16 %v2814
        %v3407 = vunpack.c.h.b16 %v2814
        %v3408 = vunpack.c.l.b16 %v2815
        %v3409 = vunpack.c.h.b16 %v2815
        %v3410 = vunpack.c.l.b16 %v2816
        %v3411 = vunpack.c.l.b16 %v2817
        %v3412 = vunpack.c.h.b16 %v2817
        %v3413 = vunpack.c.l.b16 %v2818
        %v3414 = vunpack.c.h.b16 %v2818
        %v3415 = vunpack.c.l.b16 %v2819
        %v3416 = vunpack.c.h.b16 %v2819
        %v3417 = vunpack.c.l.b16 %v2820
        %v3418 = vunpack.c.l.b16 %v2821
        %v3419 = vunpack.c.h.b16 %v2821
        %v3420 = vunpack.c.l.b16 %v2822
        %v3421 = vunpack.c.h.b16 %v2822
        %v3422 = vunpack.c.l.b16 %v2823
        %v3423 = vunpack.c.h.b16 %v2823
        %v3424 = vunpack.c.l.b16 %v2824
        %v3425 = vunpack.c.l.b16 %v2825
        %v3426 = vunpack.c.h.b16 %v2825
        %v3427 = vunpack.c.l.b16 %v2826
        %v3428 = vunpack.c.h.b16 %v2826
        %v3429 = vunpack.c.l.b16 %v2827
        %v3430 = vunpack.c.h.b16 %v2827
        %v3431 = vunpack.c.l.b16 %v2828
        %v3432 = vunpack.c.l.b16 %v2829
        %v3433 = vunpack.c.h.b16 %v2829
        %v3434 = vunpack.c.l.b16 %v2830
        %v3435 = vunpack.c.h.b16 %v2830
        %v3436 = vunpack.c.l.b16 %v2831
        %v3437 = vunpack.c.h.b16 %v2831
        %v3438 = vunpack.c.l.b16 %v2832
        %v3439 = vunpack.c.l.b16 %v2833
        %v3440 = vunpack.c.h.b16 %v2833
        %v3441 = vunpack.c.l.b16 %v2834
        %v3442 = vunpack.c.h.b16 %v2834
        %v3443 = vunpack.c.l.b16 %v2835
        %v3444 = vunpack.c.h.b16 %v2835
        %v3445 = vunpack.c.l.b16 %v2836
        %v3446 = vunpack.c.l.b16 %v2837
        %v3447 = vunpack.c.h.b16 %v2837
        %v3448 = vunpack.c.l.b16 %v2838
        %v3449 = vunpack.c.h.b16 %v2838
        %v3450 = vunpack.c.l.b16 %v2839
        %v3451 = vunpack.c.h.b16 %v2839
        %v3452 = vunpack.c.l.b16 %v2840
        %v3453 = vunpack.c.l.b16 %v2841
        %v3454 = vunpack.c.h.b16 %v2841
        %v3455 = vunpack.c.l.b16 %v2842
        %v3456 = vunpack.c.h.b16 %v2842
        %v3457 = vunpack.c.l.b16 %v2843
        %v3458 = vunpack.c.h.b16 %v2843
        %v3459 = vunpack.c.l.b16 %v2844
        %v3460 = vunpack.c.l.b16 %v2845
        %v3461 = vunpack.c.h.b16 %v2845
        %v3462 = vunpack.c.l.b16 %v2846
        %v3463 = vunpack.c.h.b16 %v2846
        %v3464 = vunpack.c.l.b16 %v2847
        %v3465 = vunpack.c.h.b16 %v2847
        %v3466 = vunpack.c.l.b16 %v2848
        %v3467 = vunpack.c.l.b16 %v2849
        %v3468 = vunpack.c.h.b16 %v2849
        %v3469 = vunpack.c.l.b16 %v2850
        %v3470 = vunpack.c.h.b16 %v2850
        %v3471 = vunpack.c.l.b16 %v2851
        %v3472 = vunpack.c.h.b16 %v2851
        %v3473 = vunpack.c.l.b16 %v2852
        %v3474 = vunpack.c.l.b16 %v2853
        %v3475 = vunpack.c.h.b16 %v2853
        %v3476 = vunpack.c.l.b16 %v2854
        %v3477 = vunpack.c.h.b16 %v2854
        %v3478 = vunpack.c.l.b16 %v2855
        %v3479 = vunpack.c.h.b16 %v2855
        %v3480 = vunpack.c.l.b16 %v2856
        %v3481 = vunpack.c.l.b16 %v2857
        %v3482 = vunpack.c.h.b16 %v2857
        %v3483 = vunpack.c.l.b16 %v2858
        %v3484 = vunpack.c.h.b16 %v2858
        %v3485 = vunpack.c.l.b16 %v2859
        %v3486 = vunpack.c.h.b16 %v2859
        %v3487 = vunpack.c.l.b16 %v2860
        %v3488 = vunpack.c.l.b16 %v2861
        %v3489 = vunpack.c.h.b16 %v2861
        %v3490 = vunpack.c.l.b16 %v2862
        %v3491 = vunpack.c.h.b16 %v2862
        %v3492 = vunpack.c.l.b16 %v2863
        %v3493 = vunpack.c.h.b16 %v2863
        %v3494 = vunpack.c.l.b16 %v2864
        %v3495 = vunpack.c.l.b16 %v2865
        %v3496 = vunpack.c.h.b16 %v2865
        %v3497 = vunpack.c.l.b16 %v2866
        %v3498 = vunpack.c.h.b16 %v2866
        %v3499 = vunpack.c.l.b16 %v2867
        %v3500 = vunpack.c.h.b16 %v2867
        %v3501 = vunpack.c.l.b16 %v2868
        %v3502 = vunpack.c.l.b16 %v2869
        %v3503 = vunpack.c.h.b16 %v2869
        %v3504 = vunpack.c.l.b16 %v2870
        %v3505 = vunpack.c.h.b16 %v2870
        %v3506 = vunpack.c.l.b16 %v2871
        %v3507 = vunpack.c.h.b16 %v2871
        %v3508 = vunpack.c.l.b16 %v2872
        %v3509 = vunpack.c.l.b16 %v2873
        %v3510 = vunpack.c.h.b16 %v2873
        %v3511 = vunpack.c.l.b16 %v2874
        %v3512 = vunpack.c.h.b16 %v2874
        %v3513 = vunpack.c.l.b16 %v2875
        %v3514 = vunpack.c.h.b16 %v2875
        %v3515 = vunpack.c.l.b16 %v2876
        %v3516 = vunpack.c.l.b16 %v2877
        %v3517 = vunpack.c.h.b16 %v2877
        %v3518 = vunpack.c.l.b16 %v2878
        %v3519 = vunpack.c.h.b16 %v2878
        %v3520 = vunpack.c.l.b16 %v2879
        %v3521 = vunpack.c.h.b16 %v2879
        %v3522 = vunpack.c.l.b16 %v2880
        %v3523 = vunpack.c.l.b16 %v2881
        %v3524 = vunpack.c.h.b16 %v2881
        %v3525 = vunpack.c.l.b16 %v2882
        %v3526 = vunpack.c.h.b16 %v2882
        %v3527 = vunpack.c.l.b16 %v2883
        %v3528 = vunpack.c.h.b16 %v2883
        %v3529 = vunpack.c.l.b16 %v2884
        %v3530 = vunpack.c.l.b16 %v2885
        %v3531 = vunpack.c.h.b16 %v2885
        %v3532 = vunpack.c.l.b16 %v2886
        %v3533 = vunpack.c.h.b16 %v2886
        %v3534 = vunpack.c.l.b16 %v2887
        %v3535 = vunpack.c.h.b16 %v2887
        %v3536 = vunpack.c.l.b16 %v2888
        %v3537 = vunpack.c.l.b16 %v2889
        %v3538 = vunpack.c.h.b16 %v2889
        %v3539 = vunpack.c.l.b16 %v2890
        %v3540 = vunpack.c.h.b16 %v2890
        %v3541 = vunpack.c.l.b16 %v2891
        %v3542 = vunpack.c.h.b16 %v2891
        %v3543 = vunpack.c.l.b16 %v2892
        %v3544 = vunpack.c.l.b16 %v2893
        %v3545 = vunpack.c.h.b16 %v2893
        %v3546 = vunpack.c.l.b16 %v2894
        %v3547 = vunpack.c.h.b16 %v2894
        %v3548 = vunpack.c.l.b16 %v2895
        %v3549 = vunpack.c.h.b16 %v2895
        %v3550 = vunpack.c.l.b16 %v2896
        %v3551 = vunpack.c.l.b16 %v2897
        %v3552 = vunpack.c.h.b16 %v2897
        %v3553 = vunpack.c.l.b16 %v2898
        %v3554 = vunpack.c.h.b16 %v2898
        %v3555 = vunpack.c.l.b16 %v2899
        %v3556 = vunpack.c.h.b16 %v2899
        %v3557 = vunpack.c.l.b16 %v2900
        %v3558 = vunpack.c.l.b16 %v2901
        %v3559 = vunpack.c.h.b16 %v2901
        %v3560 = vunpack.c.l.b16 %v2902
        %v3561 = vunpack.c.h.b16 %v2902
        %v3562 = vunpack.c.l.b16 %v2903
        %v3563 = vunpack.c.h.b16 %v2903
        %v3564 = vunpack.c.l.b16 %v2904
        %v3565 = vunpack.c.l.b16 %v2905
        %v3566 = vunpack.c.h.b16 %v2905
        %v3567 = vunpack.c.l.b16 %v2906
        %v3568 = vunpack.c.h.b16 %v2906
        %v3569 = vunpack.c.l.b16 %v2907
        %v3570 = vunpack.c.h.b16 %v2907
        %v3571 = vunpack.c.l.b16 %v2908
        %v3572 = vunpack.c.l.b16 %v2909
        %v3573 = vunpack.c.h.b16 %v2909
        %v3574 = vunpack.c.l.b16 %v2910
        %v3575 = vunpack.c.h.b16 %v2910
        %v3576 = vunpack.c.l.b16 %v2911
        %v3577 = vunpack.c.h.b16 %v2911
        %v3578 = vunpack.c.l.b16 %v2912
        %v3579 = vunpack.c.l.b16 %v2913
        %v3580 = vunpack.c.h.b16 %v2913
        %v3581 = vunpack.c.l.b16 %v2914
        %v3582 = vunpack.c.h.b16 %v2914
        %v3583 = vunpack.c.l.b16 %v2915
        %v3584 = vunpack.c.h.b16 %v2915
        %v3585 = vunpack.c.l.b16 %v2916
        %v3586 = vunpack.c.l.b16 %v2917
        %v3587 = vunpack.c.h.b16 %v2917
        %v3588 = vunpack.c.l.b16 %v2918
        %v3589 = vunpack.c.h.b16 %v2918
        %v3590 = vunpack.c.l.b16 %v2919
        %v3591 = vunpack.c.h.b16 %v2919
        %v3592 = vunpack.c.l.b16 %v2920
        %v3593 = vunpack.c.l.b16 %v2921
        %v3594 = vunpack.c.h.b16 %v2921
        %v3595 = vunpack.c.l.b16 %v2922
        %v3596 = vunpack.c.h.b16 %v2922
        %v3597 = vunpack.c.l.b16 %v2923
        %v3598 = vunpack.c.h.b16 %v2923
        %v3599 = vunpack.c.l.b16 %v2924
        %v3600 = vunpack.c.l.b16 %v2925
        %v3601 = vunpack.c.h.b16 %v2925
        %v3602 = vunpack.c.l.b16 %v2926
        %v3603 = vunpack.c.h.b16 %v2926
        %v3604 = vunpack.c.l.b16 %v2927
        %v3605 = vunpack.c.h.b16 %v2927
        %v3606 = vunpack.c.l.b16 %v2928
        %v3607 = vunpack.c.l.b16 %v2929
        %v3608 = vunpack.c.h.b16 %v2929
        %v3609 = vunpack.c.l.b16 %v2930
        %v3610 = vunpack.c.h.b16 %v2930
        %v3611 = vunpack.c.l.b16 %v2931
        %v3612 = vunpack.c.h.b16 %v2931
        %v3613 = vunpack.c.l.b16 %v2932
        %v3614 = vunpack.c.l.b16 %v2933
        %v3615 = vunpack.c.h.b16 %v2933
        %v3616 = vunpack.c.l.b16 %v2934
        %v3617 = vunpack.c.h.b16 %v2934
        %v3618 = vunpack.c.l.b16 %v2935
        %v3619 = vunpack.c.h.b16 %v2935
        %v3620 = vunpack.c.l.b16 %v2936
        %v3621 = vunpack.c.l.b16 %v2937
        %v3622 = vunpack.c.h.b16 %v2937
        %v3623 = vunpack.c.l.b16 %v2938
        %v3624 = vunpack.c.h.b16 %v2938
        %v3625 = vunpack.c.l.b16 %v2939
        %v3626 = vunpack.c.h.b16 %v2939
        %v3627 = vunpack.c.l.b16 %v2940
        %v3628 = vunpack.c.l.b16 %v2941
        %v3629 = vunpack.c.h.b16 %v2941
        %v3630 = vunpack.c.l.b16 %v2942
        %v3631 = vunpack.c.h.b16 %v2942
        %v3632 = vunpack.c.l.b16 %v2943
        %v3633 = vunpack.c.h.b16 %v2943
        %v3634 = vunpack.c.l.b16 %v2944
        %v3635 = vunpack.c.l.b16 %v2945
        %v3636 = vunpack.c.h.b16 %v2945
        %v3637 = vunpack.c.l.b16 %v2946
        %v3638 = vunpack.c.h.b16 %v2946
        %v3639 = vunpack.c.l.b16 %v2947
        %v3640 = vunpack.c.h.b16 %v2947
        %v3641 = vunpack.c.l.b16 %v2948
        %v3642 = vunpack.c.l.b16 %v2949
        %v3643 = vunpack.c.h.b16 %v2949
        %v3644 = vunpack.c.l.b16 %v2950
        %v3645 = vunpack.c.h.b16 %v2950
        %v3646 = vunpack.c.l.b16 %v2951
        %v3647 = vunpack.c.h.b16 %v2951
        %v3648 = vunpack.c.l.b16 %v2952
        %v3649 = vunpack.c.l.b16 %v2953
        %v3650 = vunpack.c.h.b16 %v2953
        %v3651 = vunpack.c.l.b16 %v2954
        %v3652 = vunpack.c.h.b16 %v2954
        %v3653 = vunpack.c.l.b16 %v2955
        %v3654 = vunpack.c.h.b16 %v2955
        %v3655 = vunpack.c.l.b16 %v2956
        %v3656 = vunpack.c.l.b16 %v2957
        %v3657 = vunpack.c.h.b16 %v2957
        %v3658 = vunpack.c.l.b16 %v2958
        %v3659 = vunpack.c.h.b16 %v2958
        %v3660 = vunpack.c.l.b16 %v2959
        %v3661 = vunpack.c.h.b16 %v2959
        %v3662 = vunpack.c.l.b16 %v2960
        %v3663 = vunpack.c.l.b16 %v2961
        %v3664 = vunpack.c.h.b16 %v2961
        %v3665 = vunpack.c.l.b16 %v2962
        %v3666 = vunpack.c.h.b16 %v2962
        %v3667 = vunpack.c.l.b16 %v2963
        %v3668 = vunpack.c.h.b16 %v2963
        %v3669 = vunpack.c.l.b16 %v2964
        %v3670 = vunpack.c.l.b16 %v2965
        %v3671 = vunpack.c.h.b16 %v2965
        %v3672 = vunpack.c.l.b16 %v2966
        %v3673 = vunpack.c.h.b16 %v2966
        %v3674 = vunpack.c.l.b16 %v2967
        %v3675 = vunpack.c.h.b16 %v2967
        %v3676 = vunpack.c.l.b16 %v2968
        %v3677 = vunpack.c.l.b16 %v2969
        %v3678 = vunpack.c.h.b16 %v2969
        %v3679 = vunpack.c.l.b16 %v2970
        %v3680 = vunpack.c.h.b16 %v2970
        %v3681 = vunpack.c.l.b16 %v2971
        %v3682 = vunpack.c.h.b16 %v2971
        %v3683 = vunpack.c.l.b16 %v2972
        %v3684 = vunpack.c.l.b16 %v2973
        %v3685 = vunpack.c.h.b16 %v2973
        %v3686 = vunpack.c.l.b16 %v2974
        %v3687 = vunpack.c.h.b16 %v2974
        %v3688 = vunpack.c.l.b16 %v2975
        %v3689 = vunpack.c.h.b16 %v2975
        %v3690 = vunpack.c.l.b16 %v2976
        %v3691 = vunpack.c.l.b16 %v2977
        %v3692 = vunpack.c.h.b16 %v2977
        %v3693 = vunpack.c.l.b16 %v2978
        %v3694 = vunpack.c.h.b16 %v2978
        %v3695 = vunpack.c.l.b16 %v2979
        %v3696 = vunpack.c.h.b16 %v2979
        %v3697 = vunpack.c.l.b16 %v2980
        %v3698 = vunpack.c.l.b16 %v2981
        %v3699 = vunpack.c.h.b16 %v2981
        %v3700 = vunpack.c.l.b16 %v2982
        %v3701 = vunpack.c.h.b16 %v2982
        %v3702 = vunpack.c.l.b16 %v2983
        %v3703 = vunpack.c.h.b16 %v2983
        %v3704 = vunpack.c.l.b16 %v2984
        %v3705 = vunpack.c.l.b16 %v2985
        %v3706 = vunpack.c.h.b16 %v2985
        %v3707 = vunpack.c.l.b16 %v2986
        %v3708 = vunpack.c.h.b16 %v2986
        %v3709 = vunpack.c.l.b16 %v2987
        %v3710 = vunpack.c.h.b16 %v2987
        %v3711 = vunpack.c.l.b16 %v2988
        %v3712 = vunpack.c.l.b16 %v2989
        %v3713 = vunpack.c.h.b16 %v2989
        %v3714 = vunpack.c.l.b16 %v2990
        %v3715 = vunpack.c.h.b16 %v2990
        %v3716 = vunpack.c.l.b16 %v2991
        %v3717 = vunpack.c.h.b16 %v2991
        %v3718 = vunpack.c.l.b16 %v2992
        %v3719 = vunpack.c.l.b16 %v2993
        %v3720 = vunpack.c.h.b16 %v2993
        %v3721 = vunpack.c.l.b16 %v2994
        %v3722 = vunpack.c.h.b16 %v2994
        %v3723 = vunpack.c.l.b16 %v2995
        %v3724 = vunpack.c.h.b16 %v2995
        %v3725 = vunpack.c.l.b16 %v2996
        %v3726 = vunpack.c.l.b16 %v2997
        %v3727 = vunpack.c.h.b16 %v2997
        %v3728 = vunpack.c.l.b16 %v2998
        %v3729 = vunpack.c.h.b16 %v2998
        %v3730 = vunpack.c.l.b16 %v2999
        %v3731 = vunpack.c.h.b16 %v2999
        %v3732 = vunpack.c.l.b16 %v3000
        %v3733 = vunpack.c.l.b16 %v3001
        %v3734 = vunpack.c.h.b16 %v3001
        %v3735 = vunpack.c.l.b16 %v3002
        %v3736 = vunpack.c.h.b16 %v3002
        %v3737 = vunpack.c.l.b16 %v3003
        %v3738 = vunpack.c.h.b16 %v3003
        %v3739 = vunpack.c.l.b16 %v3004
        %v3740 = vunpack.c.l.b16 %v3005
        %v3741 = vunpack.c.h.b16 %v3005
        %v3742 = vunpack.c.l.b16 %v3006
        %v3743 = vunpack.c.h.b16 %v3006
        %v3744 = vunpack.c.l.b16 %v3007
        %v3745 = vunpack.c.h.b16 %v3007
        %v3746 = vunpack.c.l.b16 %v3008
        %v3747 = vunpack.c.l.b16 %v3009
        %v3748 = vunpack.c.h.b16 %v3009
        %v3749 = vunpack.c.l.b16 %v3010
        %v3750 = vunpack.c.h.b16 %v3010
        %v3751 = vunpack.c.l.b16 %v3011
        %v3752 = vunpack.c.h.b16 %v3011
        %v3753 = vunpack.c.l.b16 %v3012
        %v3754 = vpack.c.b16 %v3313, %v3306
        %v3755 = vpack.c.b16 %v3314, %v3307
        %v3756 = vpack.c.b16 %v3315, %v3308
        %v3757 = vpack.c.b16 %v3316, %v3309
        %v3758 = vpack.c.b16 %v3317, %v3310
        %v3759 = vpack.c.b16 %v3318, %v3311
        %v3760 = vpack.c.b16 %v3319, %v3312
        %v3761 = vpack.c.b16 %v3327, %v3320
        %v3762 = vpack.c.b16 %v3328, %v3321
        %v3763 = vpack.c.b16 %v3329, %v3322
        %v3764 = vpack.c.b16 %v3330, %v3323
        %v3765 = vpack.c.b16 %v3331, %v3324
        %v3766 = vpack.c.b16 %v3332, %v3325
        %v3767 = vpack.c.b16 %v3333, %v3326
        %v3768 = vpack.c.b16 %v3341, %v3334
        %v3769 = vpack.c.b16 %v3342, %v3335
        %v3770 = vpack.c.b16 %v3343, %v3336
        %v3771 = vpack.c.b16 %v3344, %v3337
        %v3772 = vpack.c.b16 %v3345, %v3338
        %v3773 = vpack.c.b16 %v3346, %v3339
        %v3774 = vpack.c.b16 %v3347, %v3340
        %v3775 = vpack.c.b16 %v3355, %v3348
        %v3776 = vpack.c.b16 %v3356, %v3349
        %v3777 = vpack.c.b16 %v3357, %v3350
        %v3778 = vpack.c.b16 %v3358, %v3351
        %v3779 = vpack.c.b16 %v3359, %v3352
        %v3780 = vpack.c.b16 %v3360, %v3353
        %v3781 = vpack.c.b16 %v3361, %v3354
        %v3782 = vpack.c.b16 %v3369, %v3362
        %v3783 = vpack.c.b16 %v3370, %v3363
        %v3784 = vpack.c.b16 %v3371, %v3364
        %v3785 = vpack.c.b16 %v3372, %v3365
        %v3786 = vpack.c.b16 %v3373, %v3366
        %v3787 = vpack.c.b16 %v3374, %v3367
        %v3788 = vpack.c.b16 %v3375, %v3368
        %v3789 = vpack.c.b16 %v3383, %v3376
        %v3790 = vpack.c.b16 %v3384, %v3377
        %v3791 = vpack.c.b16 %v3385, %v3378
        %v3792 = vpack.c.b16 %v3386, %v3379
        %v3793 = vpack.c.b16 %v3387, %v3380
        %v3794 = vpack.c.b16 %v3388, %v3381
        %v3795 = vpack.c.b16 %v3389, %v3382
        %v3796 = vpack.c.b16 %v3397, %v3390
        %v3797 = vpack.c.b16 %v3398, %v3391
        %v3798 = vpack.c.b16 %v3399, %v3392
        %v3799 = vpack.c.b16 %v3400, %v3393
        %v3800 = vpack.c.b16 %v3401, %v3394
        %v3801 = vpack.c.b16 %v3402, %v3395
        %v3802 = vpack.c.b16 %v3403, %v3396
        %v3803 = vpack.c.b16 %v3411, %v3404
        %v3804 = vpack.c.b16 %v3412, %v3405
        %v3805 = vpack.c.b16 %v3413, %v3406
        %v3806 = vpack.c.b16 %v3414, %v3407
        %v3807 = vpack.c.b16 %v3415, %v3408
        %v3808 = vpack.c.b16 %v3416, %v3409
        %v3809 = vpack.c.b16 %v3417, %v3410
        %v3810 = vpack.c.b16 %v3425, %v3418
        %v3811 = vpack.c.b16 %v3426, %v3419
        %v3812 = vpack.c.b16 %v3427, %v3420
        %v3813 = vpack.c.b16 %v3428, %v3421
        %v3814 = vpack.c.b16 %v3429, %v3422
        %v3815 = vpack.c.b16 %v3430, %v3423
        %v3816 = vpack.c.b16 %v3431, %v3424
        %v3817 = vpack.c.b16 %v3439, %v3432
        %v3818 = vpack.c.b16 %v3440, %v3433
        %v3819 = vpack.c.b16 %v3441, %v3434
        %v3820 = vpack.c.b16 %v3442, %v3435
        %v3821 = vpack.c.b16 %v3443, %v3436
        %v3822 = vpack.c.b16 %v3444, %v3437
        %v3823 = vpack.c.b16 %v3445, %v3438
        %v3824 = vpack.c.b16 %v3453, %v3446
        %v3825 = vpack.c.b16 %v3454, %v3447
        %v3826 = vpack.c.b16 %v3455, %v3448
        %v3827 = vpack.c.b16 %v3456, %v3449
        %v3828 = vpack.c.b16 %v3457, %v3450
        %v3829 = vpack.c.b16 %v3458, %v3451
        %v3830 = vpack.c.b16 %v3459, %v3452
        %v3831 = vpack.c.b16 %v3467, %v3460
        %v3832 = vpack.c.b16 %v3468, %v3461
        %v3833 = vpack.c.b16 %v3469, %v3462
        %v3834 = vpack.c.b16 %v3470, %v3463
        %v3835 = vpack.c.b16 %v3471, %v3464
        %v3836 = vpack.c.b16 %v3472, %v3465
        %v3837 = vpack.c.b16 %v3473, %v3466
        %v3838 = vpack.c.b16 %v3481, %v3474
        %v3839 = vpack.c.b16 %v3482, %v3475
        %v3840 = vpack.c.b16 %v3483, %v3476
        %v3841 = vpack.c.b16 %v3484, %v3477
        %v3842 = vpack.c.b16 %v3485, %v3478
        %v3843 = vpack.c.b16 %v3486, %v3479
        %v3844 = vpack.c.b16 %v3487, %v3480
        %v3845 = vpack.c.b16 %v3495, %v3488
        %v3846 = vpack.c.b16 %v3496, %v3489
        %v3847 = vpack.c.b16 %v3497, %v3490
        %v3848 = vpack.c.b16 %v3498, %v3491
        %v3849 = vpack.c.b16 %v3499, %v3492
        %v3850 = vpack.c.b16 %v3500, %v3493
        %v3851 = vpack.c.b16 %v3501, %v3494
        %v3852 = vpack.c.b16 %v3509, %v3502
        %v3853 = vpack.c.b16 %v3510, %v3503
        %v3854 = vpack.c.b16 %v3511, %v3504
        %v3855 = vpack.c.b16 %v3512, %v3505
        %v3856 = vpack.c.b16 %v3513, %v3506
        %v3857 = vpack.c.b16 %v3514, %v3507
        %v3858 = vpack.c.b16 %v3515, %v3508
        %v3859 = vpack.c.b16 %v3523, %v3516
        %v3860 = vpack.c.b16 %v3524, %v3517
        %v3861 = vpack.c.b16 %v3525, %v3518
        %v3862 = vpack.c.b16 %v3526, %v3519
        %v3863 = vpack.c.b16 %v3527, %v3520
        %v3864 = vpack.c.b16 %v3528, %v3521
        %v3865 = vpack.c.b16 %v3529, %v3522
        %v3866 = vpack.c.b16 %v3537, %v3530
        %v3867 = vpack.c.b16 %v3538, %v3531
        %v3868 = vpack.c.b16 %v3539, %v3532
        %v3869 = vpack.c.b16 %v3540, %v3533
        %v3870 = vpack.c.b16 %v3541, %v3534
        %v3871 = vpack.c.b16 %v3542, %v3535
        %v3872 = vpack.c.b16 %v3543, %v3536
        %v3873 = vpack.c.b16 %v3551, %v3544
        %v3874 = vpack.c.b16 %v3552, %v3545
        %v3875 = vpack.c.b16 %v3553, %v3546
        %v3876 = vpack.c.b16 %v3554, %v3547
        %v3877 = vpack.c.b16 %v3555, %v3548
        %v3878 = vpack.c.b16 %v3556, %v3549
        %v3879 = vpack.c.b16 %v3557, %v3550
        %v3880 = vpack.c.b16 %v3565, %v3558
        %v3881 = vpack.c.b16 %v3566, %v3559
        %v3882 = vpack.c.b16 %v3567, %v3560
        %v3883 = vpack.c.b16 %v3568, %v3561
        %v3884 = vpack.c.b16 %v3569, %v3562
        %v3885 = vpack.c.b16 %v3570, %v3563
        %v3886 = vpack.c.b16 %v3571, %v3564
        %v3887 = vpack.c.b16 %v3579, %v3572
        %v3888 = vpack.c.b16 %v3580, %v3573
        %v3889 = vpack.c.b16 %v3581, %v3574
        %v3890 = vpack.c.b16 %v3582, %v3575
        %v3891 = vpack.c.b16 %v3583, %v3576
        %v3892 = vpack.c.b16 %v3584, %v3577
        %v3893 = vpack.c.b16 %v3585, %v3578
        %v3894 = vpack.c.b16 %v3593, %v3586
        %v3895 = vpack.c.b16 %v3594, %v3587
        %v3896 = vpack.c.b16 %v3595, %v3588
        %v3897 = vpack.c.b16 %v3596, %v3589
        %v3898 = vpack.c.b16 %v3597, %v3590
        %v3899 = vpack.c.b16 %v3598, %v3591
        %v3900 = vpack.c.b16 %v3599, %v3592
        %v3901 = vpack.c.b16 %v3607, %v3600
        %v3902 = vpack.c.b16 %v3608, %v3601
        %v3903 = vpack.c.b16 %v3609, %v3602
        %v3904 = vpack.c.b16 %v3610, %v3603
        %v3905 = vpack.c.b16 %v3611, %v3604
        %v3906 = vpack.c.b16 %v3612, %v3605
        %v3907 = vpack.c.b16 %v3613, %v3606
        %v3908 = vpack.c.b16 %v3621, %v3614
        %v3909 = vpack.c.b16 %v3622, %v3615
        %v3910 = vpack.c.b16 %v3623, %v3616
        %v3911 = vpack.c.b16 %v3624, %v3617
        %v3912 = vpack.c.b16 %v3625, %v3618
        %v3913 = vpack.c.b16 %v3626, %v3619
        %v3914 = vpack.c.b16 %v3627, %v3620
        %v3915 = vpack.c.b16 %v3635, %v3628
        %v3916 = vpack.c.b16 %v3636, %v3629
        %v3917 = vpack.c.b16 %v3637, %v3630
        %v3918 = vpack.c.b16 %v3638, %v3631
        %v3919 = vpack.c.b16 %v3639, %v3632
        %v3920 = vpack.c.b16 %v3640, %v3633
        %v3921 = vpack.c.b16 %v3641, %v3634
        %v3922 = vpack.c.b16 %v3649, %v3642
        %v3923 = vpack.c.b16 %v3650, %v3643
        %v3924 = vpack.c.b16 %v3651, %v3644
        %v3925 = vpack.c.b16 %v3652, %v3645
        %v3926 = vpack.c.b16 %v3653, %v3646
        %v3927 = vpack.c.b16 %v3654, %v3647
        %v3928 = vpack.c.b16 %v3655, %v3648
        %v3929 = vpack.c.b16 %v3663, %v3656
        %v3930 = vpack.c.b16 %v3664, %v3657
        %v3931 = vpack.c.b16 %v3665, %v3658
        %v3932 = vpack.c.b16 %v3666, %v3659
        %v3933 = vpack.c.b16 %v3667, %v3660
        %v3934 = vpack.c.b16 %v3668, %v3661
        %v3935 = vpack.c.b16 %v3669, %v3662
        %v3936 = vpack.c.b16 %v3677, %v3670
        %v3937 = vpack.c.b16 %v3678, %v3671
        %v3938 = vpack.c.b16 %v3679, %v3672
        %v3939 = vpack.c.b16 %v3680, %v3673
        %v3940 = vpack.c.b16 %v3681, %v3674
        %v3941 = vpack.c.b16 %v3682, %v3675
        %v3942 = vpack.c.b16 %v3683, %v3676
        %v3943 = vpack.c.b16 %v3691, %v3684
        %v3944 = vpack.c.b16 %v3692, %v3685
        %v3945 = vpack.c.b16 %v3693, %v3686
        %v3946 = vpack.c.b16 %v3694, %v3687
        %v3947 = vpack.c.b16 %v3695, %v3688
        %v3948 = vpack.c.b16 %v3696, %v3689
        %v3949 = vpack.c.b16 %v3697, %v3690
        %v3950 = vpack.c.b16 %v3705, %v3698
        %v3951 = vpack.c.b16 %v3706, %v3699
        %v3952 = vpack.c.b16 %v3707, %v3700
        %v3953 = vpack.c.b16 %v3708, %v3701
        %v3954 = vpack.c.b16 %v3709, %v3702
        %v3955 = vpack.c.b16 %v3710, %v3703
        %v3956 = vpack.c.b16 %v3711, %v3704
        %v3957 = vpack.c.b16 %v3719, %v3712
        %v3958 = vpack.c.b16 %v3720, %v3713
        %v3959 = vpack.c.b16 %v3721, %v3714
        %v3960 = vpack.c.b16 %v3722, %v3715
        %v3961 = vpack.c.b16 %v3723, %v3716
        %v3962 = vpack.c.b16 %v3724, %v3717
        %v3963 = vpack.c.b16 %v3725, %v3718
        %v3964 = vpack.c.b16 %v3733, %v3726
        %v3965 = vpack.c.b16 %v3734, %v3727
        %v3966 = vpack.c.b16 %v3735, %v3728
        %v3967 = vpack.c.b16 %v3736, %v3729
        %v3968 = vpack.c.b16 %v3737, %v3730
        %v3969 = vpack.c.b16 %v3738, %v3731
        %v3970 = vpack.c.b16 %v3739, %v3732
        %v3971 = vpack.c.b16 %v3747, %v3740
        %v3972 = vpack.c.b16 %v3748, %v3741
        %v3973 = vpack.c.b16 %v3749, %v3742
        %v3974 = vpack.c.b16 %v3750, %v3743
        %v3975 = vpack.c.b16 %v3751, %v3744
        %v3976 = vpack.c.b16 %v3752, %v3745
        %v3977 = vpack.c.b16 %v3753, %v3746
        %4202 = vmatprep.subr.bf16.mxu0 %v3755
        %4203 = vmatpush1.bf16.msra.mxu0 %v3754
        %4204 = vmatprep.subr.bf16.mxu0 %v3762
        %4205 = vmatpush1.bf16.msra.mxu0 %v3761
        %4206 = vmatprep.subr.bf16.mxu0 %v3769
        %4207 = vmatpush1.bf16.msra.mxu0 %v3768
        %4208 = vmatprep.subr.bf16.mxu0 %v3776
        %4209 = vmatpush1.bf16.msra.mxu0 %v3775
        %4210 = vmatprep.subr.bf16.mxu0 %v3783
        %4211 = vmatpush1.bf16.msra.mxu0 %v3782
        %4212 = vmatprep.subr.bf16.mxu0 %v3790
        %4213 = vmatpush1.bf16.msra.mxu0 %v3789
        %4214 = vmatprep.subr.bf16.mxu0 %v3797
        %4215 = vmatpush1.bf16.msra.mxu0 %v3796
        %4216 = vmatprep.subr.bf16.mxu0 %v3804
        %4217 = vmatpush1.bf16.msra.mxu0 %v3803
        %4218 = vmatprep.subr.bf16.mxu0 %v3811
        %4219 = vmatpush1.bf16.msra.mxu0 %v3810
        %4220 = vmatprep.subr.bf16.mxu0 %v3818
        %4221 = vmatpush1.bf16.msra.mxu0 %v3817
        %4222 = vmatprep.subr.bf16.mxu0 %v3825
        %4223 = vmatpush1.bf16.msra.mxu0 %v3824
        %4224 = vmatprep.subr.bf16.mxu0 %v3832
        %4225 = vmatpush1.bf16.msra.mxu0 %v3831
        %4226 = vmatprep.subr.bf16.mxu0 %v3839
        %4227 = vmatpush1.bf16.msra.mxu0 %v3838
        %4228 = vmatprep.subr.bf16.mxu0 %v3846
        %4229 = vmatpush1.bf16.msra.mxu0 %v3845
        %4230 = vmatprep.subr.bf16.mxu0 %v3853
        %4231 = vmatpush1.bf16.msra.mxu0 %v3852
        %4232 = vmatprep.subr.bf16.mxu0 %v3860
        %4233 = vmatpush1.bf16.msra.mxu0 %v3859
        %4234 = vmatprep.mubr.bf16.mxu0 %v2754
        %4235 = vmatmul.mubr.bf16.gmra.mrb[0].mxu0 %v2753
        %v4236 = vpop.f32.mrb[0].mxu0
        %v4237 = vadd.f32 %v3018, %v4236
        %v4238 = vpop.f32.mrb[0].mxu0
        %v4239 = vadd.f32 %v3022, %v4238
        %v4240 = vpop.f32.mrb[0].mxu0
        %v4241 = vpop.f32.mrb[0].mxu0
        %4242 = vdwg.mxu0
        %4243 = vmatprep.subr.bf16.mxu0 %v3867
        %4244 = vmatpush1.bf16.msra.mxu0 %v3866
        %4245 = vmatprep.subr.bf16.mxu0 %v3874
        %4246 = vmatpush1.bf16.msra.mxu0 %v3873
        %4247 = vmatprep.subr.bf16.mxu0 %v3881
        %4248 = vmatpush1.bf16.msra.mxu0 %v3880
        %4249 = vmatprep.subr.bf16.mxu0 %v3888
        %4250 = vmatpush1.bf16.msra.mxu0 %v3887
        %4251 = vmatprep.subr.bf16.mxu0 %v3895
        %4252 = vmatpush1.bf16.msra.mxu0 %v3894
        %4253 = vmatprep.subr.bf16.mxu0 %v3902
        %4254 = vmatpush1.bf16.msra.mxu0 %v3901
        %4255 = vmatprep.subr.bf16.mxu0 %v3909
        %4256 = vmatpush1.bf16.msra.mxu0 %v3908
        %4257 = vmatprep.subr.bf16.mxu0 %v3916
        %4258 = vmatpush1.bf16.msra.mxu0 %v3915
        %4259 = vmatprep.subr.bf16.mxu0 %v3923
        %4260 = vmatpush1.bf16.msra.mxu0 %v3922
        %4261 = vmatprep.subr.bf16.mxu0 %v3930
        %4262 = vmatpush1.bf16.msra.mxu0 %v3929
        %4263 = vmatprep.subr.bf16.mxu0 %v3937
        %4264 = vmatpush1.bf16.msra.mxu0 %v3936
        %4265 = vmatprep.subr.bf16.mxu0 %v3944
        %4266 = vmatpush1.bf16.msra.mxu0 %v3943
        %4267 = vmatprep.subr.bf16.mxu0 %v3951
        %4268 = vmatpush1.bf16.msra.mxu0 %v3950
        %4269 = vmatprep.subr.bf16.mxu0 %v3958
        %4270 = vmatpush1.bf16.msra.mxu0 %v3957
        %4271 = vmatprep.subr.bf16.mxu0 %v3965
        %4272 = vmatpush1.bf16.msra.mxu0 %v3964
        %4273 = vmatprep.subr.bf16.mxu0 %v3972
        %4274 = vmatpush1.bf16.msra.mxu0 %v3971
        %4275 = vmatprep.mubr.bf16.mxu0 %v2756
        %4276 = vmatmul.mubr.bf16.gmra.mrb[0].mxu0 %v2755
        %v4277 = vpop.f32.mrb[0].mxu0
        %v4278 = vadd.f32 %v4237, %v4277
        %v4279 = vpop.f32.mrb[0].mxu0
        %v4280 = vadd.f32 %v4239, %v4279
        %v4281 = vpop.f32.mrb[0].mxu0
        %v4282 = vpop.f32.mrb[0].mxu0
        %4283 = vdwg.mxu0
        %4284 = vmatprep.subr.bf16.mxu0 %v3757
        %4285 = vmatpush1.bf16.msra.mxu0 %v3756
        %4286 = vmatprep.subr.bf16.mxu0 %v3764
        %4287 = vmatpush1.bf16.msra.mxu0 %v3763
        %4288 = vmatprep.subr.bf16.mxu0 %v3771
        %4289 = vmatpush1.bf16.msra.mxu0 %v3770
        %4290 = vmatprep.subr.bf16.mxu0 %v3778
        %4291 = vmatpush1.bf16.msra.mxu0 %v3777
        %4292 = vmatprep.subr.bf16.mxu0 %v3785
        %4293 = vmatpush1.bf16.msra.mxu0 %v3784
        %4294 = vmatprep.subr.bf16.mxu0 %v3792
        %4295 = vmatpush1.bf16.msra.mxu0 %v3791
        %4296 = vmatprep.subr.bf16.mxu0 %v3799
        %4297 = vmatpush1.bf16.msra.mxu0 %v3798
        %4298 = vmatprep.subr.bf16.mxu0 %v3806
        %4299 = vmatpush1.bf16.msra.mxu0 %v3805
        %4300 = vmatprep.subr.bf16.mxu0 %v3813
        %4301 = vmatpush1.bf16.msra.mxu0 %v3812
        %4302 = vmatprep.subr.bf16.mxu0 %v3820
        %4303 = vmatpush1.bf16.msra.mxu0 %v3819
        %4304 = vmatprep.subr.bf16.mxu0 %v3827
        %4305 = vmatpush1.bf16.msra.mxu0 %v3826
        %4306 = vmatprep.subr.bf16.mxu0 %v3834
        %4307 = vmatpush1.bf16.msra.mxu0 %v3833
        %4308 = vmatprep.subr.bf16.mxu0 %v3841
        %4309 = vmatpush1.bf16.msra.mxu0 %v3840
        %4310 = vmatprep.subr.bf16.mxu0 %v3848
        %4311 = vmatpush1.bf16.msra.mxu0 %v3847
        %4312 = vmatprep.subr.bf16.mxu0 %v3855
        %4313 = vmatpush1.bf16.msra.mxu0 %v3854
        %4314 = vmatprep.subr.bf16.mxu0 %v3862
        %4315 = vmatpush1.bf16.msra.mxu0 %v3861
        %4316 = vmatprep.mubr.bf16.mxu0 %v2754
        %4317 = vmatmul.mubr.bf16.gmra.mrb[0].mxu0 %v2753
        %v4318 = vpop.f32.mrb[0].mxu0
        %v4319 = vadd.f32 %v3026, %v4318
        %v4320 = vpop.f32.mrb[0].mxu0
        %v4321 = vadd.f32 %v3030, %v4320
        %v4322 = vpop.f32.mrb[0].mxu0
        %v4323 = vpop.f32.mrb[0].mxu0
        %4324 = vdwg.mxu0
        %4325 = vmatprep.subr.bf16.mxu0 %v3869
        %4326 = vmatpush1.bf16.msra.mxu0 %v3868
        %4327 = vmatprep.subr.bf16.mxu0 %v3876
        %4328 = vmatpush1.bf16.msra.mxu0 %v3875
        %4329 = vmatprep.subr.bf16.mxu0 %v3883
        %4330 = vmatpush1.bf16.msra.mxu0 %v3882
        %4331 = vmatprep.subr.bf16.mxu0 %v3890
        %4332 = vmatpush1.bf16.msra.mxu0 %v3889
        %4333 = vmatprep.subr.bf16.mxu0 %v3897
        %4334 = vmatpush1.bf16.msra.mxu0 %v3896
        %4335 = vmatprep.subr.bf16.mxu0 %v3904
        %4336 = vmatpush1.bf16.msra.mxu0 %v3903
        %4337 = vmatprep.subr.bf16.mxu0 %v3911
        %4338 = vmatpush1.bf16.msra.mxu0 %v3910
        %4339 = vmatprep.subr.bf16.mxu0 %v3918
        %4340 = vmatpush1.bf16.msra.mxu0 %v3917
        %4341 = vmatprep.subr.bf16.mxu0 %v3925
        %4342 = vmatpush1.bf16.msra.mxu0 %v3924
        %4343 = vmatprep.subr.bf16.mxu0 %v3932
        %4344 = vmatpush1.bf16.msra.mxu0 %v3931
        %4345 = vmatprep.subr.bf16.mxu0 %v3939
        %4346 = vmatpush1.bf16.msra.mxu0 %v3938
        %4347 = vmatprep.subr.bf16.mxu0 %v3946
        %4348 = vmatpush1.bf16.msra.mxu0 %v3945
        %4349 = vmatprep.subr.bf16.mxu0 %v3953
        %4350 = vmatpush1.bf16.msra.mxu0 %v3952
        %4351 = vmatprep.subr.bf16.mxu0 %v3960
        %4352 = vmatpush1.bf16.msra.mxu0 %v3959
        %4353 = vmatprep.subr.bf16.mxu0 %v3967
        %4354 = vmatpush1.bf16.msra.mxu0 %v3966
        %4355 = vmatprep.subr.bf16.mxu0 %v3974
        %4356 = vmatpush1.bf16.msra.mxu0 %v3973
        %4357 = vmatprep.mubr.bf16.mxu0 %v2756
        %4358 = vmatmul.mubr.bf16.gmra.mrb[0].mxu0 %v2755
        %v4359 = vpop.f32.mrb[0].mxu0
        %v4360 = vadd.f32 %v4319, %v4359
        %v4361 = vpop.f32.mrb[0].mxu0
        %v4362 = vadd.f32 %v4321, %v4361
        %v4363 = vpop.f32.mrb[0].mxu0
        %v4364 = vpop.f32.mrb[0].mxu0
        %4365 = vdwg.mxu0
        %4366 = vmatprep.subr.bf16.mxu0 %v3759
        %4367 = vmatpush1.bf16.msra.mxu0 %v3758
        %4368 = vmatprep.subr.bf16.mxu0 %v3766
        %4369 = vmatpush1.bf16.msra.mxu0 %v3765
        %4370 = vmatprep.subr.bf16.mxu0 %v3773
        %4371 = vmatpush1.bf16.msra.mxu0 %v3772
        %4372 = vmatprep.subr.bf16.mxu0 %v3780
        %4373 = vmatpush1.bf16.msra.mxu0 %v3779
        %4374 = vmatprep.subr.bf16.mxu0 %v3787
        %4375 = vmatpush1.bf16.msra.mxu0 %v3786
        %4376 = vmatprep.subr.bf16.mxu0 %v3794
        %4377 = vmatpush1.bf16.msra.mxu0 %v3793
        %4378 = vmatprep.subr.bf16.mxu0 %v3801
        %4379 = vmatpush1.bf16.msra.mxu0 %v3800
        %4380 = vmatprep.subr.bf16.mxu0 %v3808
        %4381 = vmatpush1.bf16.msra.mxu0 %v3807
        %4382 = vmatprep.subr.bf16.mxu0 %v3815
        %4383 = vmatpush1.bf16.msra.mxu0 %v3814
        %4384 = vmatprep.subr.bf16.mxu0 %v3822
        %4385 = vmatpush1.bf16.msra.mxu0 %v3821
        %4386 = vmatprep.subr.bf16.mxu0 %v3829
        %4387 = vmatpush1.bf16.msra.mxu0 %v3828
        %4388 = vmatprep.subr.bf16.mxu0 %v3836
        %4389 = vmatpush1.bf16.msra.mxu0 %v3835
        %4390 = vmatprep.subr.bf16.mxu0 %v3843
        %4391 = vmatpush1.bf16.msra.mxu0 %v3842
        %4392 = vmatprep.subr.bf16.mxu0 %v3850
        %4393 = vmatpush1.bf16.msra.mxu0 %v3849
        %4394 = vmatprep.subr.bf16.mxu0 %v3857
        %4395 = vmatpush1.bf16.msra.mxu0 %v3856
        %4396 = vmatprep.subr.bf16.mxu0 %v3864
        %4397 = vmatpush1.bf16.msra.mxu0 %v3863
        %4398 = vmatprep.mubr.bf16.mxu0 %v2754
        %4399 = vmatmul.mubr.bf16.gmra.mrb[0].mxu0 %v2753
        %v4400 = vpop.f32.mrb[0].mxu0
        %v4401 = vadd.f32 %v3034, %v4400
        %v4402 = vpop.f32.mrb[0].mxu0
        %v4403 = vadd.f32 %v3038, %v4402
        %v4404 = vpop.f32.mrb[0].mxu0
        %v4405 = vpop.f32.mrb[0].mxu0
        %4406 = vdwg.mxu0
        %4407 = vmatprep.subr.bf16.mxu0 %v3871
        %4408 = vmatpush1.bf16.msra.mxu0 %v3870
        %4409 = vmatprep.subr.bf16.mxu0 %v3878
        %4410 = vmatpush1.bf16.msra.mxu0 %v3877
        %4411 = vmatprep.subr.bf16.mxu0 %v3885
        %4412 = vmatpush1.bf16.msra.mxu0 %v3884
        %4413 = vmatprep.subr.bf16.mxu0 %v3892
        %4414 = vmatpush1.bf16.msra.mxu0 %v3891
        %4415 = vmatprep.subr.bf16.mxu0 %v3899
        %4416 = vmatpush1.bf16.msra.mxu0 %v3898
        %4417 = vmatprep.subr.bf16.mxu0 %v3906
        %4418 = vmatpush1.bf16.msra.mxu0 %v3905
        %4419 = vmatprep.subr.bf16.mxu0 %v3913
        %4420 = vmatpush1.bf16.msra.mxu0 %v3912
        %4421 = vmatprep.subr.bf16.mxu0 %v3920
        %4422 = vmatpush1.bf16.msra.mxu0 %v3919
        %4423 = vmatprep.subr.bf16.mxu0 %v3927
        %4424 = vmatpush1.bf16.msra.mxu0 %v3926
        %4425 = vmatprep.subr.bf16.mxu0 %v3934
        %4426 = vmatpush1.bf16.msra.mxu0 %v3933
        %4427 = vmatprep.subr.bf16.mxu0 %v3941
        %4428 = vmatpush1.bf16.msra.mxu0 %v3940
        %4429 = vmatprep.subr.bf16.mxu0 %v3948
        %4430 = vmatpush1.bf16.msra.mxu0 %v3947
        %4431 = vmatprep.subr.bf16.mxu0 %v3955
        %4432 = vmatpush1.bf16.msra.mxu0 %v3954
        %4433 = vmatprep.subr.bf16.mxu0 %v3962
        %4434 = vmatpush1.bf16.msra.mxu0 %v3961
        %4435 = vmatprep.subr.bf16.mxu0 %v3969
        %4436 = vmatpush1.bf16.msra.mxu0 %v3968
        %4437 = vmatprep.subr.bf16.mxu0 %v3976
        %4438 = vmatpush1.bf16.msra.mxu0 %v3975
        %4439 = vmatprep.mubr.bf16.mxu0 %v2756
        %4440 = vmatmul.mubr.bf16.gmra.mrb[0].mxu0 %v2755
        %v4441 = vpop.f32.mrb[0].mxu0
        %v4442 = vadd.f32 %v4401, %v4441
        %v4443 = vpop.f32.mrb[0].mxu0
        %v4444 = vadd.f32 %v4403, %v4443
        %v4445 = vpop.f32.mrb[0].mxu0
        %v4446 = vpop.f32.mrb[0].mxu0
        %4447 = vdwg.mxu0
        %4448 = vmatprep.subr.bf16.mxu0 0
        %4449 = vmatpush1.bf16.msra.mxu0 %v3760
        %4450 = vmatprep.subr.bf16.mxu0 0
        %4451 = vmatpush1.bf16.msra.mxu0 %v3767
        %4452 = vmatprep.subr.bf16.mxu0 0
        %4453 = vmatpush1.bf16.msra.mxu0 %v3774
        %4454 = vmatprep.subr.bf16.mxu0 0
        %4455 = vmatpush1.bf16.msra.mxu0 %v3781
        %4456 = vmatprep.subr.bf16.mxu0 0
        %4457 = vmatpush1.bf16.msra.mxu0 %v3788
        %4458 = vmatprep.subr.bf16.mxu0 0
        %4459 = vmatpush1.bf16.msra.mxu0 %v3795
        %4460 = vmatprep.subr.bf16.mxu0 0
        %4461 = vmatpush1.bf16.msra.mxu0 %v3802
        %4462 = vmatprep.subr.bf16.mxu0 0
        %4463 = vmatpush1.bf16.msra.mxu0 %v3809
        %4464 = vmatprep.subr.bf16.mxu0 0
        %4465 = vmatpush1.bf16.msra.mxu0 %v3816
        %4466 = vmatprep.subr.bf16.mxu0 0
        %4467 = vmatpush1.bf16.msra.mxu0 %v3823
        %4468 = vmatprep.subr.bf16.mxu0 0
        %4469 = vmatpush1.bf16.msra.mxu0 %v3830
        %4470 = vmatprep.subr.bf16.mxu0 0
        %4471 = vmatpush1.bf16.msra.mxu0 %v3837
        %4472 = vmatprep.subr.bf16.mxu0 0
        %4473 = vmatpush1.bf16.msra.mxu0 %v3844
        %4474 = vmatprep.subr.bf16.mxu0 0
        %4475 = vmatpush1.bf16.msra.mxu0 %v3851
        %4476 = vmatprep.subr.bf16.mxu0 0
        %4477 = vmatpush1.bf16.msra.mxu0 %v3858
        %4478 = vmatprep.subr.bf16.mxu0 0
        %4479 = vmatpush1.bf16.msra.mxu0 %v3865
        %4480 = vmatprep.mubr.bf16.mxu0 %v2754
        %4481 = vmatmul.mubr.bf16.gmra.mrb[0].mxu0 %v2753
        %v4482 = vpop.f32.mrb[0].mxu0
        %v4483 = vadd.f32 %v3042, %v4482
        %v4484 = vpop.f32.mrb[0].mxu0
        %v4485 = vpop.f32.mrb[0].mxu0
        %v4486 = vpop.f32.mrb[0].mxu0
        %4487 = vdwg.mxu0
        %4488 = vmatprep.subr.bf16.mxu0 0
        %4489 = vmatpush1.bf16.msra.mxu0 %v3872
        %4490 = vmatprep.subr.bf16.mxu0 0
        %4491 = vmatpush1.bf16.msra.mxu0 %v3879
        %4492 = vmatprep.subr.bf16.mxu0 0
        %4493 = vmatpush1.bf16.msra.mxu0 %v3886
        %4494 = vmatprep.subr.bf16.mxu0 0
        %4495 = vmatpush1.bf16.msra.mxu0 %v3893
        %4496 = vmatprep.subr.bf16.mxu0 0
        %4497 = vmatpush1.bf16.msra.mxu0 %v3900
        %4498 = vmatprep.subr.bf16.mxu0 0
        %4499 = vmatpush1.bf16.msra.mxu0 %v3907
        %4500 = vmatprep.subr.bf16.mxu0 0
        %4501 = vmatpush1.bf16.msra.mxu0 %v3914
        %4502 = vmatprep.subr.bf16.mxu0 0
        %4503 = vmatpush1.bf16.msra.mxu0 %v3921
        %4504 = vmatprep.subr.bf16.mxu0 0
        %4505 = vmatpush1.bf16.msra.mxu0 %v3928
        %4506 = vmatprep.subr.bf16.mxu0 0
        %4507 = vmatpush1.bf16.msra.mxu0 %v3935
        %4508 = vmatprep.subr.bf16.mxu0 0
        %4509 = vmatpush1.bf16.msra.mxu0 %v3942
        %4510 = vmatprep.subr.bf16.mxu0 0
        %4511 = vmatpush1.bf16.msra.mxu0 %v3949
        %4512 = vmatprep.subr.bf16.mxu0 0
        %4513 = vmatpush1.bf16.msra.mxu0 %v3956
        %4514 = vmatprep.subr.bf16.mxu0 0
        %4515 = vmatpush1.bf16.msra.mxu0 %v3963
        %4516 = vmatprep.subr.bf16.mxu0 0
        %4517 = vmatpush1.bf16.msra.mxu0 %v3970
        %4518 = vmatprep.subr.bf16.mxu0 0
        %4519 = vmatpush1.bf16.msra.mxu0 %v3977
        %4520 = vmatprep.mubr.bf16.mxu0 %v2756
        %4521 = vmatmul.mubr.bf16.gmra.mrb[0].mxu0 %v2755
        %v4522 = vpop.f32.mrb[0].mxu0
        %v4523 = vadd.f32 %v4483, %v4522
        %v4524 = vpop.f32.mrb[0].mxu0
        %v4525 = vpop.f32.mrb[0].mxu0
        %v4526 = vpop.f32.mrb[0].mxu0
        %4527 = vdwg.mxu0
        %v4528 = vxor.u32 %v4278, 2147483648
        %v4529 = vxor.u32 %v4280, 2147483648
        %v4530 = vxor.u32 %v4360, 2147483648
        %v4531 = vxor.u32 %v4362, 2147483648
        %v4532 = vxor.u32 %v4442, 2147483648
        %v4533 = vxor.u32 %v4444, 2147483648
        %v4534 = vxor.u32 %v4523, 2147483648
        %v4535 = vmul.f32 %v4528, 1.442695
        %v4536 = vpow.pop %v4535
        %v4537 = vmul.f32 %v4529, 1.442695
        %v4538 = vpow.pop %v4537
        %v4539 = vmul.f32 %v4530, 1.442695
        %v4540 = vpow.pop %v4539
        %v4541 = vmul.f32 %v4531, 1.442695
        %v4542 = vpow.pop %v4541
        %v4543 = vmul.f32 %v4532, 1.442695
        %v4544 = vpow.pop %v4543
        %v4545 = vmul.f32 %v4533, 1.442695
        %v4546 = vpow.pop %v4545
        %v4547 = vmul.f32 %v4534, 1.442695
        %v4548 = vpow.pop %v4547
        %v4549 = vadd.f32 %v4536, 1.0
        %v4550 = vadd.f32 %v4538, 1.0
        %v4551 = vadd.f32 %v4540, 1.0
        %v4552 = vadd.f32 %v4542, 1.0
        %v4553 = vadd.f32 %v4544, 1.0
        %v4554 = vadd.f32 %v4546, 1.0
        %v4555 = vadd.f32 %v4548, 1.0
        %v4556 = vrcp.pop %v4549
        %v4557 = vmul.f32 1.0, %v4556
        %v4558 = vrcp.pop %v4550
        %v4559 = vmul.f32 1.0, %v4558
        %v4560 = vrcp.pop %v4551
        %v4561 = vmul.f32 1.0, %v4560
        %v4562 = vrcp.pop %v4552
        %v4563 = vmul.f32 1.0, %v4562
        %v4564 = vrcp.pop %v4553
        %v4565 = vmul.f32 1.0, %v4564
        %v4566 = vrcp.pop %v4554
        %v4567 = vmul.f32 1.0, %v4566
        %v4568 = vrcp.pop %v4555
        %v4569 = vmul.f32 1.0, %v4568
        %v4570 = vpack.c.bf16 %v4557, %v4557
        %v4571 = vpack.c.bf16 %v4559, %v4559
        %v4572 = vpack.c.bf16 %v4561, %v4561
        %v4573 = vpack.c.bf16 %v4563, %v4563
        %v4574 = vpack.c.bf16 %v4565, %v4565
        %v4575 = vpack.c.bf16 %v4567, %v4567
        %v4576 = vpack.c.bf16 %v4569, %v4569
        %v4584 = vunpack.c.l.b16 %v4570
        %v4585 = vunpack.c.l.b16 %v4571
        %v4586 = vunpack.c.l.b16 %v4572
        %v4587 = vunpack.c.l.b16 %v4573
        %v4588 = vunpack.c.l.b16 %v4574
        %v4589 = vunpack.c.l.b16 %v4575
        %v4590 = vunpack.c.l.b16 %v4576
        %v4591 = vpack.c.b16 %v4585, %v4584
        %v4592 = vpack.c.b16 %v4587, %v4586
        %v4593 = vpack.c.b16 %v4589, %v4588
        %v4594 = vpack.c.b16 %v4590, %v4590
        %4599 = vst [vmem:[%s393] sm:$0xff] %v4591
        %4600 = vst [vmem:[%s393 + $0x8] sm:$0xff] %v4592
        %4601 = vst [vmem:[%s393 + $0x10] sm:$0xff] %v4593
        %vm4602 = vcmask 125952
        %4603 = vst.msk [vmem:[%s393 + $0x18] sm:$0xf] %vm4602, %v4594
        %4604 = vst [vmem:[%s414] sm:$0xff] %v2440
        %4605 = vst [vmem:[%s414 + $0x8] sm:$0xff] %v2442
        %s4606 = sand.u32 %s254, 1
        %s4607 = scalar_lea.sflag [#allocation3], %s4606
        %s4608 = sand.u32 %s254, 1
        %s4609 = smul.addr %s4608, 28
        %s4610 = scalar_lea.vmem [#allocation2], %s4609
        %p4611 = scmp.lt.s32.totalorder %s26, 1
        %s4612 = scalar_select %p4611, %s26, 1
        %s4613 = smul.addr %s4612, 2
        %s4614 = smul.addr %s4613, 8
        %s4615 = scalar_lea.vmem %s11, %s4614
        // Predicated region
        $region61: #{vae_forward.1} parent=59 // pred_check
          %p4616 = pneg %p264
        $region62: #{vae_forward.1} parent=59 // pred_check_branch
          %4618 = sbr.rel (%p4616) target = $region64
        $region63: #{vae_forward.1} parent=59 // pred_region
          %s4620 = ssub.s32 448, 448
          %4621 = vsyncadd %s4607, %s4620
          %s4622 = smul.addr %s26, 7
          %s4623 = smul.addr %s4622, 64
          %s4624 = scalar_lea.hbm %s10, %s4623
          %s4626 = sshll.u32 %s4610, 4
          %s4627 = int_to_ptr.vmem [resolvable:$true] %s4626
          %4629 = dma.vmem_to_hbm [thread:$0]  %s4627, 448, %s4624, %s4607
        $region64: #{vae_forward.1} parent=59 // pred_fallthru
          _
        // Predicated region
        $region65: #{vae_forward.1} parent=59 // pred_check
          %p4630 = pneg %p290
        $region66: #{vae_forward.1} parent=59 // pred_check_branch
          %4632 = sbr.rel (%p4630) target = $region68
        $region67: #{vae_forward.1} parent=59 // pred_region
          _
        $region68: #{vae_forward.1} parent=59 // pred_fallthru
          _
      $region60: #{vae_forward.1} parent=5 // pred_fallthru
        _
      %p4633 = scmp.le.s32.totalorder 2, %s21
      // Predicated region
      $region69: #{vae_forward.1} parent=5 // pred_check
        %p4634 = pneg %p4633
      $region70: #{vae_forward.1} parent=5 // pred_check_branch
        %4636 = sbr.rel (%p4634) target = $region72
      $region71: #{vae_forward.1} parent=5 // pred_region
        %s4637 = ssub.s32 %s21, 2
        // Predicated region
        $region73: #{vae_forward.1} parent=71 // pred_check
          %p4638 = pneg %p270
        $region74: #{vae_forward.1} parent=71 // pred_check_branch
          %4640 = sbr.rel (%p4638) target = $region76
        $region75: #{vae_forward.1} parent=71 // pred_region
          %s4641 = sand.u32 %s255, 1
          %s4642 = scalar_lea.sflag [#allocation3], %s4641
          %s4643 = sand.u32 %s255, 1
          %s4644 = smul.addr %s4643, 28
          %s4645 = scalar_lea.vmem [#allocation2], %s4644
          %4646 = dma.done %s4642, 448
        $region76: #{vae_forward.1} parent=71 // pred_fallthru
          _
        // Predicated region
        $region77: #{vae_forward.1} parent=71 // pred_check
          %p4647 = pneg %p296
        $region78: #{vae_forward.1} parent=71 // pred_check_branch
          %4649 = sbr.rel (%p4647) target = $region80
        $region79: #{vae_forward.1} parent=71 // pred_region
          %p4650 = scmp.lt.s32.totalorder %s27, 1
          %s4651 = scalar_select %p4650, %s27, 1
          %s4652 = smul.addr %s4651, 2
          %s4653 = smul.addr %s4652, 8
          %s4654 = scalar_lea.vmem %s11, %s4653
        $region80: #{vae_forward.1} parent=71 // pred_fallthru
          _
      $region72: #{vae_forward.1} parent=5 // pred_fallthru
        _
    $region6: #{vae_forward.1} parent=1 // loop_footer
      %s25 = sadd.s32 1, %s21
    $region7: #{vae_forward.1} parent=1 // loop_footer_branch
      %20 = sbr.rel target = $region3
    $region8: #{vae_forward.1} parent=1 // loop_exit
      _
    %4655 = vsyncpa [#allocation3], 1
    %s4656 = scalar_lea.sflag [#allocation3], 1
    %4657 = vsyncpa %s4656, 1

</llo_original>
